<compile_context>
chip_gen: v6e
topology: v6e:2x2x1
jax: 0.10.0
libtpu: 0.0.40
codegen_flags: <defaults>
</compile_context>

<pallas_src>
import math
from functools import partial

import jax
import jax.numpy as jnp
from jax import lax
from jax.experimental import pallas as pl
from jax.experimental.pallas import tpu as pltpu

MXU_DTYPE = jnp.bfloat16
BN_EPS = 1e-5                       # PyTorch BatchNorm2d default


def _pick_tile_h(H, W, pool, row_budget=512):
    """Largest divisor of H (even if pooling) with TH*W matmul rows <= budget."""
    cands = [th for th in range(1, H + 1)
             if H % th == 0 and (not pool or th % 2 == 0)]
    fitting = [th for th in cands if th * W <= row_budget]
    if fitting:
        return max(fitting)
    return min(cands)


def _vmem_limit(estimate_bytes):
    # Never below the 32 MiB default; the tile picker keeps the estimate small,
    # so the upper clamp only matters for very large images.
    return int(min(max(2 * estimate_bytes, 32 * 1024 * 1024), 96 * 1024 * 1024))


# ----------------------------------------------------------------------------
# Pass 1: im2col in VMEM scratch -> single K=9*Cin MXU dot -> bf16 y tile
#         + per-tile BN partial statistics (exact, reduced in the wrapper)
# ----------------------------------------------------------------------------
def _make_conv_stats_kernel(TH, W, Cin, KC, CPAD, Cout):
    def kernel(xp_ref, w_ref, y_ref, stat_ref, im_ref):
        # xp_ref  : (1, H+2, W+2, Cin) padded sample (resident across H-tiles)
        # w_ref   : (KC=9*Cin, CPAD)   packed 3x3 weights (bf16)
        # y_ref   : (1, TH, W, Cout)   bf16 conv pre-activation tile
        # stat_ref: (1, 1, 2, Cout)    f32 per-tile [sum; sum-of-squares]
        # im_ref  : (TH, W, KC)        bf16 VMEM im2col scratch
        i = pl.program_id(1)
        row0 = pl.multiple_of(i * TH, TH)
        for kh in range(3):
            for kw in range(3):
                tap = kh * 3 + kw
                im_ref[:, :, tap * Cin:(tap + 1) * Cin] = (
                    xp_ref[0, pl.ds(row0 + kh, TH), pl.ds(kw, W), :])
        # one MXU dot, K = 9*Cin, f32 accumulation
        acc = jnp.dot(im_ref[...].reshape(TH * W, KC), w_ref[...],
                      preferred_element_type=jnp.float32)        # (TH*W, CPAD)
        acc = acc[:, :Cout]                                      # drop lane pad
        y_ref[0] = acc.reshape(TH, W, Cout).astype(y_ref.dtype)
        psum = jnp.sum(acc, axis=0, keepdims=True)               # (1, Cout)
        psq = jnp.sum(acc * acc, axis=0, keepdims=True)          # (1, Cout)
        stat_ref[0, 0] = jnp.concatenate([psum, psq], axis=0)    # (2, Cout)
    return kernel


# ----------------------------------------------------------------------------
# Pass 2: BN apply (folded scale/shift) + ReLU + fused 2x2 max-pool
# ----------------------------------------------------------------------------
def _make_bn_relu_pool_kernel(TH, W, C, pool):
    def kernel(y_ref, scale_ref, shift_ref, o_ref):
        s = scale_ref[...].reshape(1, 1, C)
        t = shift_ref[...].reshape(1, 1, C)
        z = jnp.maximum(y_ref[0].astype(jnp.float32) * s + t, 0.0)  # (TH, W, C)
        if pool:
            # contiguous 2x2 max-pool: pair rows (leading-dim split), then pair
            # columns (sublane split) -- no strided loads anywhere.
            z = z.reshape(TH // 2, 2, W, C)
            z = jnp.max(z, axis=1)                   # (TH//2, W, C)
            z = z.reshape(TH // 2, W // 2, 2, C)
            z = jnp.max(z, axis=2)                   # (TH//2, W//2, C)
        o_ref[0] = z.astype(o_ref.dtype)
    return kernel


# ----------------------------------------------------------------------------
# ConvBlock2D forward (wrapper: NCHW in / NCHW out, like the nn.Module)
# ----------------------------------------------------------------------------
@partial(jax.jit, static_argnames=("reduce_res",))
def conv_block_2d(x_nchw, w, b, gamma, beta, reduce_res=False):
    N, Cin, H, W = x_nchw.shape
    Cout = w.shape[0]
    if reduce_res:
        assert H % 2 == 0 and W % 2 == 0, "2x2 pooling needs even H, W"
    # b (conv bias) is intentionally unused: train-mode BatchNorm subtracts the
    # batch mean, which cancels the bias exactly (forward output identical).
    del b

    CPAD = ((Cout + 127) // 128) * 128      # lane-dense width, used in VMEM only
    KC = 9 * Cin
    TH = _pick_tile_h(H, W, reduce_res)
    HT = H // TH
    Ho, Wo = (H // 2, W // 2) if reduce_res else (H, W)
    THo = TH // 2 if reduce_res else TH

    # glue: NCHW -> NHWC, zero-pad H/W by 1, cast MXU operand dtype.
    # TODO(synk): if this block is embedded in a larger network, keep activations
    # NHWC end-to-end to drop these wrapper transposes.
    x = jnp.transpose(x_nchw, (0, 2, 3, 1)).astype(MXU_DTYPE)
    xp = jnp.pad(x, ((0, 0), (1, 1), (1, 1), (0, 0)))
    # weights (Cout, Cin, 3, 3) -> (9*Cin, CPAD), row order (kh, kw, cin)
    wk = jnp.transpose(w, (2, 3, 1, 0)).reshape(KC, Cout)
    wk = jnp.pad(wk, ((0, 0), (0, CPAD - Cout))).astype(MXU_DTYPE)

    # ---- pass 1: conv (single K=9*Cin MXU dot) + per-tile BN partial stats --
    est1 = (2 * (H + 2) * (W + 2) * Cin * 2      # resident padded sample (x2 buf)
            + 2 * KC * CPAD * 2                  # weights (x2 buf)
            + 2 * TH * W * Cout * 2              # bf16 y tile (x2 buf)
            + 2 * 8 * 128 * 4                    # stats tile (padded, x2 buf)
            + TH * W * KC * 2                    # im2col scratch
            + 2 * TH * W * CPAD * 4)             # f32 acc + temporaries
    y, stats = pl.pallas_call(
        _make_conv_stats_kernel(TH, W, Cin, KC, CPAD, Cout),
        out_shape=(
            jax.ShapeDtypeStruct((N, H, W, Cout), MXU_DTYPE),
            jax.ShapeDtypeStruct((N, HT, 2, Cout), jnp.float32),
        ),
        grid=(N, HT),
        in_specs=[
            pl.BlockSpec((1, H + 2, W + 2, Cin), lambda n, i: (n, 0, 0, 0)),
            pl.BlockSpec((KC, CPAD), lambda n, i: (0, 0)),
        ],
        out_specs=(
            pl.BlockSpec((1, TH, W, Cout), lambda n, i: (n, i, 0, 0)),
            pl.BlockSpec((1, 1, 2, Cout), lambda n, i: (n, i, 0, 0)),
        ),
        scratch_shapes=[pltpu.VMEM((TH, W, KC), MXU_DTYPE)],
        compiler_params=pltpu.CompilerParams(
            dimension_semantics=("parallel", "parallel"),
            vmem_limit_bytes=_vmem_limit(est1)),
    )(xp, wk)

    # ---- exact batch statistics + folded BN affine (tiny, done in XLA) ------
    # TODO(synk): BatchNorm2d running_mean/running_var updates (training-time
    # side effect) are not modeled; forward math uses batch stats (train mode).
    cnt = jnp.float32(N * H * W)
    ssum = jnp.sum(stats[:, :, 0, :], axis=(0, 1))
    ssq = jnp.sum(stats[:, :, 1, :], axis=(0, 1))
    mean = ssum / cnt
    var = jnp.maximum(ssq / cnt - mean * mean, 0.0)   # biased var (train mode)
    inv = lax.rsqrt(var + BN_EPS)
    g = gamma.astype(jnp.float32)
    scale = (g * inv).reshape(1, Cout)
    shift = (beta.astype(jnp.float32) - mean * g * inv).reshape(1, Cout)

    # ---- pass 2: BN apply + ReLU (+ fused 2x2 max-pool) ---------------------
    est2 = (2 * TH * W * Cout * 2                # bf16 y tile (x2 buf)
            + 2 * THo * Wo * Cout * 4            # f32 out tile (x2 buf)
            + 4 * TH * W * Cout * 4              # f32 temporaries
            + 4 * 8 * 128 * 4)                   # scale/shift (padded)
    out = pl.pallas_call(
        _make_bn_relu_pool_kernel(TH, W, Cout, reduce_res),
        out_shape=jax.ShapeDtypeStruct((N, Ho, Wo, Cout), jnp.float32),
        grid=(N, HT),
        in_specs=[
            pl.BlockSpec((1, TH, W, Cout), lambda n, i: (n, i, 0, 0)),
            pl.BlockSpec((1, Cout), lambda n, i: (0, 0)),
            pl.BlockSpec((1, Cout), lambda n, i: (0, 0)),
        ],
        out_specs=pl.BlockSpec((1, THo, Wo, Cout), lambda n, i: (n, i, 0, 0)),
        compiler_params=pltpu.CompilerParams(
            dimension_semantics=("parallel", "parallel"),
            vmem_limit_bytes=_vmem_limit(est2)),
    )(y, scale, shift)

    # back to NCHW (module contract); channel dim is already Cout (no slice).
    return jnp.transpose(out, (0, 3, 1, 2))


# ----------------------------------------------------------------------------
# Pure-JAX reference (module semantics; for the in-script correctness check)
# ----------------------------------------------------------------------------
def _reference(x, w, b, gamma, beta, reduce_res):
    # mirror the kernel's intentional bf16 quantization of the MXU operands
    xq = x.astype(jnp.bfloat16).astype(jnp.float32)
    wq = w.astype(jnp.bfloat16).astype(jnp.float32)
    y = lax.conv_general_dilated(xq, wq, (1, 1), 'SAME',
                                 dimension_numbers=('NCHW', 'OIHW', 'NCHW'))
    y = y + b[None, :, None, None]
    mean = jnp.mean(y, axis=(0, 2, 3), keepdims=True)
    var = jnp.var(y, axis=(0, 2, 3), keepdims=True)
    y = (y - mean) * lax.rsqrt(var + BN_EPS)
    y = y * gamma[None, :, None, None] + beta[None, :, None, None]
    y = jnp.maximum(y, 0.0)
    if reduce_res:
        y = lax.reduce_window(y, -jnp.inf, lax.max,
                              (1, 1, 2, 2), (1, 1, 2, 2), 'VALID')
    return y


if __name__ == "__main__":
    key = jax.random.PRNGKey(0)
    k_w, k_b, k_x = jax.random.split(key, 3)

    in_ch, out_ch = 4, 8
    N, H, W = 2, 16, 16

    # deterministic parameter init (shapes from the module's __init__)
    fan_in = in_ch * 3 * 3
    bound = 1.0 / math.sqrt(fan_in)
    w = jax.random.uniform(k_w, (out_ch, in_ch, 3, 3), jnp.float32, -bound, bound)
    b = jax.random.uniform(k_b, (out_ch,), jnp.float32, -bound, bound)
    gamma = jnp.ones((out_ch,), jnp.float32)    # BatchNorm2d default weight
    beta = jnp.zeros((out_ch,), jnp.float32)    # BatchNorm2d default bias
    x = jax.random.normal(k_x, (N, in_ch, H, W), jnp.float32)

    # reduce_res=True: conv + BN + ReLU + 2x2 max-pool
    out = jax.block_until_ready(
        conv_block_2d(x, w, b, gamma, beta, reduce_res=True))
    assert out.shape == (N, out_ch, H // 2, W // 2), out.shape
    ref = _reference(x, w, b, gamma, beta, True)
    err = float(jnp.max(jnp.abs(out - ref)))
    assert jnp.allclose(out, ref, atol=2e-2, rtol=2e-2), err

    # reduce_res=False: conv + BN + ReLU
    out2 = jax.block_until_ready(
        conv_block_2d(x, w, b, gamma, beta, reduce_res=False))
    assert out2.shape == (N, out_ch, H, W), out2.shape
    ref2 = _reference(x, w, b, gamma, beta, False)
    err2 = float(jnp.max(jnp.abs(out2 - ref2)))
    assert jnp.allclose(out2, ref2, atol=2e-2, rtol=2e-2), err2

    print("KERNEL_OK")
</pallas_src>

<mosaic_0001>
module attributes {stable_mosaic.version = 11 : i64} {
  func.func @kernel(%arg0: i32, %arg1: i32, %arg2: memref<1x18x18x4xbf16, #tpu.memory_space<vmem>>, %arg3: memref<36x128xbf16, #tpu.memory_space<vmem>>, %arg4: memref<1x16x16x8xbf16, #tpu.memory_space<vmem>>, %arg5: memref<1x1x2x8xf32, #tpu.memory_space<vmem>>, %arg6: memref<16x16x36xbf16, #tpu.memory_space<vmem>>) attributes {dimension_semantics = [#tpu.dimension_semantics<parallel>, #tpu.dimension_semantics<parallel>], iteration_bounds = array<i64: 2, 1>, scalar_prefetch = 0 : i64, scratch_operands = 1 : i64, tpu.core_type = #tpu.core_type<tc>, window_params = [{transform_indices = @transform_0, window_bounds = array<i64: 1, 18, 18, 4>}, {pipeline_mode = #tpu.pipeline_mode<synchronous>, transform_indices = @transform_1, window_bounds = array<i64: 36, 128>}, {transform_indices = @transform_2, window_bounds = array<i64: 1, 16, 16, 8>}, {transform_indices = @transform_3, window_bounds = array<i64: 1, 1, 2, 8>}]} {
    %c16_i32 = arith.constant 16 : i32
    %0 = arith.muli %arg1, %c16_i32 : i32
    %1 = tpu.assume_multiple %0, 16 : i32
    %c0_i32 = arith.constant 0 : i32
    %2 = arith.addi %1, %c0_i32 : i32
    %c0 = arith.constant 0 : index
    %3 = arith.index_cast %2 : i32 to index
    %c0_0 = arith.constant 0 : index
    %c0_1 = arith.constant 0 : index
    %4 = vector.load %arg2[%c0, %3, %c0_0, %c0_1] : memref<1x18x18x4xbf16, #tpu.memory_space<vmem>>, vector<1x16x16x4xbf16>
    %5 = vector.shape_cast %4 : vector<1x16x16x4xbf16> to vector<16x16x4xbf16>
    %c0_2 = arith.constant 0 : index
    %c0_3 = arith.constant 0 : index
    %c0_4 = arith.constant 0 : index
    %6 = vector.load %arg6[%c0_2, %c0_3, %c0_4] : memref<16x16x36xbf16, #tpu.memory_space<vmem>>, vector<16x16x4xbf16>
    tpu.vector_store %arg6[%c0_2, %c0_3, %c0_4], %5 {strides = array<i32>} : memref<16x16x36xbf16, #tpu.memory_space<vmem>>, vector<16x16x4xbf16>,
    %c0_i32_5 = arith.constant 0 : i32
    %7 = arith.addi %1, %c0_i32_5 : i32
    %c0_6 = arith.constant 0 : index
    %8 = arith.index_cast %7 : i32 to index
    %c1 = arith.constant 1 : index
    %c0_7 = arith.constant 0 : index
    %9 = vector.load %arg2[%c0_6, %8, %c1, %c0_7] : memref<1x18x18x4xbf16, #tpu.memory_space<vmem>>, vector<1x16x16x4xbf16>
    %10 = vector.shape_cast %9 : vector<1x16x16x4xbf16> to vector<16x16x4xbf16>
    %c0_8 = arith.constant 0 : index
    %c0_9 = arith.constant 0 : index
    %c4 = arith.constant 4 : index
    %11 = vector.load %arg6[%c0_8, %c0_9, %c4] : memref<16x16x36xbf16, #tpu.memory_space<vmem>>, vector<16x16x4xbf16>
    tpu.vector_store %arg6[%c0_8, %c0_9, %c4], %10 {strides = array<i32>} : memref<16x16x36xbf16, #tpu.memory_space<vmem>>, vector<16x16x4xbf16>,
    %c0_i32_10 = arith.constant 0 : i32
    %12 = arith.addi %1, %c0_i32_10 : i32
    %c0_11 = arith.constant 0 : index
    %13 = arith.index_cast %12 : i32 to index
    %c2 = arith.constant 2 : index
    %c0_12 = arith.constant 0 : index
    %14 = vector.load %arg2[%c0_11, %13, %c2, %c0_12] : memref<1x18x18x4xbf16, #tpu.memory_space<vmem>>, vector<1x16x16x4xbf16>
    %15 = vector.shape_cast %14 : vector<1x16x16x4xbf16> to vector<16x16x4xbf16>
    %c0_13 = arith.constant 0 : index
    %c0_14 = arith.constant 0 : index
    %c8 = arith.constant 8 : index
    %16 = vector.load %arg6[%c0_13, %c0_14, %c8] : memref<16x16x36xbf16, #tpu.memory_space<vmem>>, vector<16x16x4xbf16>
    tpu.vector_store %arg6[%c0_13, %c0_14, %c8], %15 {strides = array<i32>} : memref<16x16x36xbf16, #tpu.memory_space<vmem>>, vector<16x16x4xbf16>,
    %c1_i32 = arith.constant 1 : i32
    %17 = arith.addi %1, %c1_i32 : i32
    %c0_15 = arith.constant 0 : index
    %18 = arith.index_cast %17 : i32 to index
    %c0_16 = arith.constant 0 : index
    %c0_17 = arith.constant 0 : index
    %19 = vector.load %arg2[%c0_15, %18, %c0_16, %c0_17] : memref<1x18x18x4xbf16, #tpu.memory_space<vmem>>, vector<1x16x16x4xbf16>
    %20 = vector.shape_cast %19 : vector<1x16x16x4xbf16> to vector<16x16x4xbf16>
    %c0_18 = arith.constant 0 : index
    %c0_19 = arith.constant 0 : index
    %c12 = arith.constant 12 : index
    %21 = vector.load %arg6[%c0_18, %c0_19, %c12] : memref<16x16x36xbf16, #tpu.memory_space<vmem>>, vector<16x16x4xbf16>
    tpu.vector_store %arg6[%c0_18, %c0_19, %c12], %20 {strides = array<i32>} : memref<16x16x36xbf16, #tpu.memory_space<vmem>>, vector<16x16x4xbf16>,
    %c1_i32_20 = arith.constant 1 : i32
    %22 = arith.addi %1, %c1_i32_20 : i32
    %c0_21 = arith.constant 0 : index
    %23 = arith.index_cast %22 : i32 to index
    %c1_22 = arith.constant 1 : index
    %c0_23 = arith.constant 0 : index
    %24 = vector.load %arg2[%c0_21, %23, %c1_22, %c0_23] : memref<1x18x18x4xbf16, #tpu.memory_space<vmem>>, vector<1x16x16x4xbf16>
    %25 = vector.shape_cast %24 : vector<1x16x16x4xbf16> to vector<16x16x4xbf16>
    %c0_24 = arith.constant 0 : index
    %c0_25 = arith.constant 0 : index
    %c16 = arith.constant 16 : index
    %26 = vector.load %arg6[%c0_24, %c0_25, %c16] : memref<16x16x36xbf16, #tpu.memory_space<vmem>>, vector<16x16x4xbf16>
    tpu.vector_store %arg6[%c0_24, %c0_25, %c16], %25 {strides = array<i32>} : memref<16x16x36xbf16, #tpu.memory_space<vmem>>, vector<16x16x4xbf16>,
    %c1_i32_26 = arith.constant 1 : i32
    %27 = arith.addi %1, %c1_i32_26 : i32
    %c0_27 = arith.constant 0 : index
    %28 = arith.index_cast %27 : i32 to index
    %c2_28 = arith.constant 2 : index
    %c0_29 = arith.constant 0 : index
    %29 = vector.load %arg2[%c0_27, %28, %c2_28, %c0_29] : memref<1x18x18x4xbf16, #tpu.memory_space<vmem>>, vector<1x16x16x4xbf16>
    %30 = vector.shape_cast %29 : vector<1x16x16x4xbf16> to vector<16x16x4xbf16>
    %c0_30 = arith.constant 0 : index
    %c0_31 = arith.constant 0 : index
    %c20 = arith.constant 20 : index
    %31 = vector.load %arg6[%c0_30, %c0_31, %c20] : memref<16x16x36xbf16, #tpu.memory_space<vmem>>, vector<16x16x4xbf16>
    tpu.vector_store %arg6[%c0_30, %c0_31, %c20], %30 {strides = array<i32>} : memref<16x16x36xbf16, #tpu.memory_space<vmem>>, vector<16x16x4xbf16>,
    %c2_i32 = arith.constant 2 : i32
    %32 = arith.addi %1, %c2_i32 : i32
    %c0_32 = arith.constant 0 : index
    %33 = arith.index_cast %32 : i32 to index
    %c0_33 = arith.constant 0 : index
    %c0_34 = arith.constant 0 : index
    %34 = vector.load %arg2[%c0_32, %33, %c0_33, %c0_34] : memref<1x18x18x4xbf16, #tpu.memory_space<vmem>>, vector<1x16x16x4xbf16>
    %35 = vector.shape_cast %34 : vector<1x16x16x4xbf16> to vector<16x16x4xbf16>
    %c0_35 = arith.constant 0 : index
    %c0_36 = arith.constant 0 : index
    %c24 = arith.constant 24 : index
    %36 = vector.load %arg6[%c0_35, %c0_36, %c24] : memref<16x16x36xbf16, #tpu.memory_space<vmem>>, vector<16x16x4xbf16>
    tpu.vector_store %arg6[%c0_35, %c0_36, %c24], %35 {strides = array<i32>} : memref<16x16x36xbf16, #tpu.memory_space<vmem>>, vector<16x16x4xbf16>,
    %c2_i32_37 = arith.constant 2 : i32
    %37 = arith.addi %1, %c2_i32_37 : i32
    %c0_38 = arith.constant 0 : index
    %38 = arith.index_cast %37 : i32 to index
    %c1_39 = arith.constant 1 : index
    %c0_40 = arith.constant 0 : index
    %39 = vector.load %arg2[%c0_38, %38, %c1_39, %c0_40] : memref<1x18x18x4xbf16, #tpu.memory_space<vmem>>, vector<1x16x16x4xbf16>
    %40 = vector.shape_cast %39 : vector<1x16x16x4xbf16> to vector<16x16x4xbf16>
    %c0_41 = arith.constant 0 : index
    %c0_42 = arith.constant 0 : index
    %c28 = arith.constant 28 : index
    %41 = vector.load %arg6[%c0_41, %c0_42, %c28] : memref<16x16x36xbf16, #tpu.memory_space<vmem>>, vector<16x16x4xbf16>
    tpu.vector_store %arg6[%c0_41, %c0_42, %c28], %40 {strides = array<i32>} : memref<16x16x36xbf16, #tpu.memory_space<vmem>>, vector<16x16x4xbf16>,
    %c2_i32_43 = arith.constant 2 : i32
    %42 = arith.addi %1, %c2_i32_43 : i32
    %c0_44 = arith.constant 0 : index
    %43 = arith.index_cast %42 : i32 to index
    %c2_45 = arith.constant 2 : index
    %c0_46 = arith.constant 0 : index
    %44 = vector.load %arg2[%c0_44, %43, %c2_45, %c0_46] : memref<1x18x18x4xbf16, #tpu.memory_space<vmem>>, vector<1x16x16x4xbf16>
    %45 = vector.shape_cast %44 : vector<1x16x16x4xbf16> to vector<16x16x4xbf16>
    %c0_47 = arith.constant 0 : index
    %c0_48 = arith.constant 0 : index
    %c32 = arith.constant 32 : index
    %46 = vector.load %arg6[%c0_47, %c0_48, %c32] : memref<16x16x36xbf16, #tpu.memory_space<vmem>>, vector<16x16x4xbf16>
    tpu.vector_store %arg6[%c0_47, %c0_48, %c32], %45 {strides = array<i32>} : memref<16x16x36xbf16, #tpu.memory_space<vmem>>, vector<16x16x4xbf16>,
    %c0_49 = arith.constant 0 : index
    %c0_50 = arith.constant 0 : index
    %c0_51 = arith.constant 0 : index
    %47 = vector.load %arg6[%c0_49, %c0_50, %c0_51] : memref<16x16x36xbf16, #tpu.memory_space<vmem>>, vector<16x16x36xbf16>
    %48 = vector.shape_cast %47 : vector<16x16x36xbf16> to vector<256x36xbf16>
    %c0_52 = arith.constant 0 : index
    %c0_53 = arith.constant 0 : index
    %49 = vector.load %arg3[%c0_52, %c0_53] : memref<36x128xbf16, #tpu.memory_space<vmem>>, vector<36x128xbf16>
    %cst = arith.constant dense<0.000000e+00> : vector<256x128xf32>
    %50 = tpu.matmul %48, %49, %cst {dimension_numbers = #tpu.dot_dimension_numbers<[1], [0], [0], [1], [0, 0, 1, 1], [], []>} : vector<256x36xbf16>, vector<36x128xbf16>, vector<256x128xf32> -> vector<256x128xf32>
    %51 = vector.extract_strided_slice %50 {offsets = [0, 0], sizes = [256, 8], strides = [1, 1]} : vector<256x128xf32> to vector<256x8xf32>
    %52 = vector.shape_cast %51 : vector<256x8xf32> to vector<16x16x8xf32>
    %53 = arith.truncf %52 : vector<16x16x8xf32> to vector<16x16x8xbf16>
    %c0_54 = arith.constant 0 : index
    %c0_55 = arith.constant 0 : index
    %c0_56 = arith.constant 0 : index
    %c0_57 = arith.constant 0 : index
    %54 = vector.load %arg4[%c0_54, %c0_55, %c0_56, %c0_57] : memref<1x16x16x8xbf16, #tpu.memory_space<vmem>>, vector<1x16x16x8xbf16>
    %55 = vector.shape_cast %54 : vector<1x16x16x8xbf16> to vector<16x16x8xbf16>
    %56 = vector.shape_cast %53 : vector<16x16x8xbf16> to vector<1x16x16x8xbf16>
    tpu.vector_store %arg4[%c0_54, %c0_55, %c0_56, %c0_57], %56 {strides = array<i32>} : memref<1x16x16x8xbf16, #tpu.memory_space<vmem>>, vector<1x16x16x8xbf16>,
    %cst_58 = arith.constant dense<0.000000e+00> : vector<8xf32>
    %57 = vector.multi_reduction <add>, %51, %cst_58 [0] : vector<256x8xf32> to vector<8xf32>
    %58 = vector.shape_cast %57 : vector<8xf32> to vector<1x8xf32>
    %59 = arith.mulf %51, %51 : vector<256x8xf32>
    %cst_59 = arith.constant dense<0.000000e+00> : vector<8xf32>
    %60 = vector.multi_reduction <add>, %59, %cst_59 [0] : vector<256x8xf32> to vector<8xf32>
    %61 = vector.shape_cast %60 : vector<8xf32> to vector<1x8xf32>
    %62 = tpu.concatenate %58, %61 in 0 : vector<1x8xf32>, vector<1x8xf32> -> vector<2x8xf32>
    %c0_60 = arith.constant 0 : index
    %c0_61 = arith.constant 0 : index
    %c0_62 = arith.constant 0 : index
    %c0_63 = arith.constant 0 : index
    %63 = vector.load %arg5[%c0_60, %c0_61, %c0_62, %c0_63] : memref<1x1x2x8xf32, #tpu.memory_space<vmem>>, vector<1x1x2x8xf32>
    %64 = vector.shape_cast %63 : vector<1x1x2x8xf32> to vector<2x8xf32>
    %65 = vector.shape_cast %62 : vector<2x8xf32> to vector<1x1x2x8xf32>
    tpu.vector_store %arg5[%c0_60, %c0_61, %c0_62, %c0_63], %65 {strides = array<i32>} : memref<1x1x2x8xf32, #tpu.memory_space<vmem>>, vector<1x1x2x8xf32>,
    return
  }
  func.func @transform_0(%arg0: i32, %arg1: i32) -> (i32, i32, i32, i32) {
    %c0_i32 = arith.constant 0 : i32
    %c0_i32_0 = arith.constant 0 : i32
    %c0_i32_1 = arith.constant 0 : i32
    %c0_i32_2 = arith.constant 0 : i32
    return %arg0, %c0_i32, %c0_i32_0, %c0_i32_1 : i32, i32, i32, i32
  }
  func.func @transform_1(%arg0: i32, %arg1: i32) -> (i32, i32) {
    %c0_i32 = arith.constant 0 : i32
    %c0_i32_0 = arith.constant 0 : i32
    %c0_i32_1 = arith.constant 0 : i32
    return %c0_i32, %c0_i32_0 : i32, i32
  }
  func.func @transform_2(%arg0: i32, %arg1: i32) -> (i32, i32, i32, i32) {
    %c0_i32 = arith.constant 0 : i32
    %c0_i32_0 = arith.constant 0 : i32
    %c0_i32_1 = arith.constant 0 : i32
    return %arg0, %arg1, %c0_i32, %c0_i32_0 : i32, i32, i32, i32
  }
  func.func @transform_3(%arg0: i32, %arg1: i32) -> (i32, i32, i32, i32) {
    %c0_i32 = arith.constant 0 : i32
    %c0_i32_0 = arith.constant 0 : i32
    %c0_i32_1 = arith.constant 0 : i32
    return %arg0, %arg1, %c0_i32, %c0_i32_0 : i32, i32, i32, i32
  }
}

module attributes {stable_mosaic.version = 11 : i64} {
  func.func @kernel(%arg0: i32, %arg1: i32, %arg2: memref<1x16x16x8xbf16, #tpu.memory_space<vmem>>, %arg3: memref<1x8xf32, #tpu.memory_space<vmem>>, %arg4: memref<1x8xf32, #tpu.memory_space<vmem>>, %arg5: memref<1x8x8x8xf32, #tpu.memory_space<vmem>>) attributes {dimension_semantics = [#tpu.dimension_semantics<parallel>, #tpu.dimension_semantics<parallel>], iteration_bounds = array<i64: 2, 1>, scalar_prefetch = 0 : i64, scratch_operands = 0 : i64, tpu.core_type = #tpu.core_type<tc>, window_params = [{transform_indices = @transform_0, window_bounds = array<i64: 1, 16, 16, 8>}, {pipeline_mode = #tpu.pipeline_mode<synchronous>, transform_indices = @transform_1, window_bounds = array<i64: 1, 8>}, {pipeline_mode = #tpu.pipeline_mode<synchronous>, transform_indices = @transform_2, window_bounds = array<i64: 1, 8>}, {transform_indices = @transform_3, window_bounds = array<i64: 1, 8, 8, 8>}]} {
    %c0 = arith.constant 0 : index
    %c0_0 = arith.constant 0 : index
    %0 = vector.load %arg3[%c0, %c0_0] : memref<1x8xf32, #tpu.memory_space<vmem>>, vector<1x8xf32>
    %1 = vector.shape_cast %0 : vector<1x8xf32> to vector<1x1x8xf32>
    %c0_1 = arith.constant 0 : index
    %c0_2 = arith.constant 0 : index
    %2 = vector.load %arg4[%c0_1, %c0_2] : memref<1x8xf32, #tpu.memory_space<vmem>>, vector<1x8xf32>
    %3 = vector.shape_cast %2 : vector<1x8xf32> to vector<1x1x8xf32>
    %c0_3 = arith.constant 0 : index
    %c0_4 = arith.constant 0 : index
    %c0_5 = arith.constant 0 : index
    %c0_6 = arith.constant 0 : index
    %4 = vector.load %arg2[%c0_3, %c0_4, %c0_5, %c0_6] : memref<1x16x16x8xbf16, #tpu.memory_space<vmem>>, vector<1x16x16x8xbf16>
    %5 = vector.shape_cast %4 : vector<1x16x16x8xbf16> to vector<16x16x8xbf16>
    %6 = arith.extf %5 : vector<16x16x8xbf16> to vector<16x16x8xf32>
    %7 = vector.broadcast %1 : vector<1x1x8xf32> to vector<16x16x8xf32>
    %8 = arith.mulf %6, %7 : vector<16x16x8xf32>
    %9 = vector.broadcast %3 : vector<1x1x8xf32> to vector<16x16x8xf32>
    %10 = arith.addf %8, %9 : vector<16x16x8xf32>
    %cst = arith.constant 0.000000e+00 : f32
    %11 = vector.broadcast %cst : f32 to vector<16x16x8xf32>
    %12 = arith.maximumf %10, %11 : vector<16x16x8xf32>
    %13 = vector.shape_cast %12 : vector<16x16x8xf32> to vector<8x2x16x8xf32>
    %cst_7 = arith.constant dense<0xFF800000> : vector<8x16x8xf32>
    %14 = vector.multi_reduction <maximumf>, %13, %cst_7 [1] : vector<8x2x16x8xf32> to vector<8x16x8xf32>
    %15 = vector.shape_cast %14 : vector<8x16x8xf32> to vector<8x8x2x8xf32>
    %cst_8 = arith.constant dense<0xFF800000> : vector<8x8x8xf32>
    %16 = vector.multi_reduction <maximumf>, %15, %cst_8 [2] : vector<8x8x2x8xf32> to vector<8x8x8xf32>
    %c0_9 = arith.constant 0 : index
    %c0_10 = arith.constant 0 : index
    %c0_11 = arith.constant 0 : index
    %c0_12 = arith.constant 0 : index
    %17 = vector.load %arg5[%c0_9, %c0_10, %c0_11, %c0_12] : memref<1x8x8x8xf32, #tpu.memory_space<vmem>>, vector<1x8x8x8xf32>
    %18 = vector.shape_cast %17 : vector<1x8x8x8xf32> to vector<8x8x8xf32>
    %19 = vector.shape_cast %16 : vector<8x8x8xf32> to vector<1x8x8x8xf32>
    tpu.vector_store %arg5[%c0_9, %c0_10, %c0_11, %c0_12], %19 {strides = array<i32>} : memref<1x8x8x8xf32, #tpu.memory_space<vmem>>, vector<1x8x8x8xf32>,
    return
  }
  func.func @transform_0(%arg0: i32, %arg1: i32) -> (i32, i32, i32, i32) {
    %c0_i32 = arith.constant 0 : i32
    %c0_i32_0 = arith.constant 0 : i32
    %c0_i32_1 = arith.constant 0 : i32
    return %arg0, %arg1, %c0_i32, %c0_i32_0 : i32, i32, i32, i32
  }
  func.func @transform_1(%arg0: i32, %arg1: i32) -> (i32, i32) {
    %c0_i32 = arith.constant 0 : i32
    %c0_i32_0 = arith.constant 0 : i32
    %c0_i32_1 = arith.constant 0 : i32
    return %c0_i32, %c0_i32_0 : i32, i32
  }
  func.func @transform_2(%arg0: i32, %arg1: i32) -> (i32, i32) {
    %c0_i32 = arith.constant 0 : i32
    %c0_i32_0 = arith.constant 0 : i32
    %c0_i32_1 = arith.constant 0 : i32
    return %c0_i32, %c0_i32_0 : i32, i32
  }
  func.func @transform_3(%arg0: i32, %arg1: i32) -> (i32, i32, i32, i32) {
    %c0_i32 = arith.constant 0 : i32
    %c0_i32_0 = arith.constant 0 : i32
    %c0_i32_1 = arith.constant 0 : i32
    return %arg0, %arg1, %c0_i32, %c0_i32_0 : i32, i32, i32, i32
  }
}

</mosaic_0001>

<llo_original>
// kernel: conv_block_2d.3
$region0: #{conv_block_2d.3}
  #allocation0 [shape = 'u32[]', space=smem, size = 0x4, offset = 0x4, fixed_abs, tag = 'smem constant byte address 0x4 - core index']
  #allocation1 [shape = 'u32[144,128]{1,0:T(1,128)}', space=vmem, size = 0x12000, scoped, tag = 'internal scratch']
  %s0 = inlined_call_operand.vmem [shape: bf16[2,16,16,8], index: 0, kind: input, shape index: {}]
  %s1 = inlined_call_operand.vmem [shape: f32[1,8], index: 1, kind: input, shape index: {}]
  %s2 = inlined_call_operand.vmem [shape: f32[1,8], index: 2, kind: input, shape index: {}]
  %s3 = inlined_call_operand.vmem [shape: f32[2,8,8,8], index: 3, kind: output, shape index: {}]
  %s4 = sld [smem:[#allocation0]]
  $region45: #{conv_block_2d.3} parent=0
    _
  %s6 = ssub.s32 1, %s4
  %s7 = scalar_select 0, %s6, %s4
  loop: start=0, step=1, limit=4
  $region2: #{conv_block_2d.3} parent=0 // loop_pre_header
    _
  $region3: #{conv_block_2d.3} parent=0 // loop_header
    %s9 = sphi 0, %s13
    %p10 = scmp.ge.s32.totalorder %s9, 4
    %s16 = sphi 0, %s28
    %s17 = sphi 0, %s24
    %s18 = sphi 0, %s16
    %s19 = sphi 0, %s17
    %s20 = sphi 0, %s18
    %s21 = sphi 0, %s19
    %s33 = sphi 0, %s35
    %s36 = sphi 0, %s33
    %s37 = sphi 0, %s36
    %s53 = sphi 0, %s37
    %s57 = sphi 0, %s57
    %s59 = sphi 0, %s57
    %s60 = sphi 0, %s59
    %s74 = sphi 0, %s60
    %s78 = sphi 0, %s78
    %s80 = sphi 0, %s78
    %s81 = sphi 0, %s80
    %s95 = sphi 0, %s81
    %s103 = sphi 0, %s105
    %s106 = sphi 0, %s103
    %s107 = sphi 0, %s106
    %s123 = sphi 0, %s107
  $region4: #{conv_block_2d.3} parent=0 // loop_header_branch
    %12 = sbr.rel (%p10) target = $region8
  $region5: #{conv_block_2d.3} parent=0 // loop_body
    %s14 = ssub.s32 %s9, 1
    %s15 = ssub.s32 %s9, 2
    %s22 = sadd.s32 1, %s17
    %p23 = scmp.ge.s32.totalorder %s22, 1
    %s24 = scalar_select %p23, 0, %s22
    %s25 = sadd.s32 1, %s16
    %s26 = scalar_select %p23, %s25, %s16
    %p27 = scmp.ge.s32.totalorder %s26, 2
    %s28 = scalar_select %p27, 0, %s26
    %s29 = ssub.s32 %s16, %s28
    %s30 = ssub.s32 %s17, %s24
    %s31 = sor.u32 %s29, %s30
    %p32 = scmp.eq.s32.totalorder %s31, 0
    %s34 = sadd.s32 %s33, 1
    %s35 = scalar_select %p32, %s33, %s34
    %p38 = pneg %p32
    %p39 = scmp.eq.s32.totalorder %s9, 1
    %p40 = por %p38, %p39
    %p41 = scmp.ne.s32.totalorder %s33, %s36
    %p42 = scmp.eq.s32.totalorder %s9, 0
    %p43 = por %p41, %p42
    %p44 = scmp.ne.s32.totalorder %s33, %s36
    %p45 = scmp.eq.s32.totalorder %s14, 1
    %p46 = por %p44, %p45
    %p47 = scmp.ne.s32.totalorder %s36, %s37
    %p48 = scmp.eq.s32.totalorder %s14, 0
    %p49 = por %p47, %p48
    %p50 = scmp.ne.s32.totalorder %s36, %s37
    %p51 = scmp.eq.s32.totalorder %s15, 1
    %p52 = por %p50, %p51
    %p54 = scmp.ne.s32.totalorder %s37, %s53
    %p55 = scmp.eq.s32.totalorder %s15, 0
    %p56 = por %p54, %p55
    %s58 = sadd.s32 %s57, 1
    %p61 = scmp.eq.s32.totalorder %s9, 1
    %p62 = scmp.ne.s32.totalorder %s57, %s59
    %p63 = scmp.eq.s32.totalorder %s9, 0
    %p64 = por %p62, %p63
    %p65 = scmp.ne.s32.totalorder %s57, %s59
    %p66 = scmp.eq.s32.totalorder %s14, 1
    %p67 = por %p65, %p66
    %p68 = scmp.ne.s32.totalorder %s59, %s60
    %p69 = scmp.eq.s32.totalorder %s14, 0
    %p70 = por %p68, %p69
    %p71 = scmp.ne.s32.totalorder %s59, %s60
    %p72 = scmp.eq.s32.totalorder %s15, 1
    %p73 = por %p71, %p72
    %p75 = scmp.ne.s32.totalorder %s60, %s74
    %p76 = scmp.eq.s32.totalorder %s15, 0
    %p77 = por %p75, %p76
    %s79 = sadd.s32 %s78, 1
    %p82 = scmp.eq.s32.totalorder %s9, 1
    %p83 = scmp.ne.s32.totalorder %s78, %s80
    %p84 = scmp.eq.s32.totalorder %s9, 0
    %p85 = por %p83, %p84
    %p86 = scmp.ne.s32.totalorder %s78, %s80
    %p87 = scmp.eq.s32.totalorder %s14, 1
    %p88 = por %p86, %p87
    %p89 = scmp.ne.s32.totalorder %s80, %s81
    %p90 = scmp.eq.s32.totalorder %s14, 0
    %p91 = por %p89, %p90
    %p92 = scmp.ne.s32.totalorder %s80, %s81
    %p93 = scmp.eq.s32.totalorder %s15, 1
    %p94 = por %p92, %p93
    %p96 = scmp.ne.s32.totalorder %s81, %s95
    %p97 = scmp.eq.s32.totalorder %s15, 0
    %p98 = por %p96, %p97
    %s99 = ssub.s32 %s16, %s28
    %s100 = ssub.s32 %s17, %s24
    %s101 = sor.u32 %s99, %s100
    %p102 = scmp.eq.s32.totalorder %s101, 0
    %s104 = sadd.s32 %s103, 1
    %s105 = scalar_select %p102, %s103, %s104
    %p108 = pneg %p102
    %p109 = scmp.eq.s32.totalorder %s9, 1
    %p110 = por %p108, %p109
    %p111 = scmp.ne.s32.totalorder %s103, %s106
    %p112 = scmp.eq.s32.totalorder %s9, 0
    %p113 = por %p111, %p112
    %p114 = scmp.ne.s32.totalorder %s103, %s106
    %p115 = scmp.eq.s32.totalorder %s14, 1
    %p116 = por %p114, %p115
    %p117 = scmp.ne.s32.totalorder %s106, %s107
    %p118 = scmp.eq.s32.totalorder %s14, 0
    %p119 = por %p117, %p118
    %p120 = scmp.ne.s32.totalorder %s106, %s107
    %p121 = scmp.eq.s32.totalorder %s15, 1
    %p122 = por %p120, %p121
    %p124 = scmp.ne.s32.totalorder %s107, %s123
    %p125 = scmp.eq.s32.totalorder %s15, 0
    %p126 = por %p124, %p125
    %p127 = scmp.le.s32.totalorder 1, %s9
    %p128 = scmp.lt.s32.totalorder %s9, 3
    %p129 = pnand %p127, %p128
    %p130 = pneg %p129
    // Predicated region
    $region9: #{conv_block_2d.3} parent=5 // pred_check
      _
    $region10: #{conv_block_2d.3} parent=5 // pred_check_branch
      %132 = sbr.rel (%p129) target = $region12
    $region11: #{conv_block_2d.3} parent=5 // pred_region
      %s133 = ssub.s32 %s9, 1
      // Predicated region
      $region13: #{conv_block_2d.3} parent=11 // pred_check
        %p134 = pneg %p70
      $region14: #{conv_block_2d.3} parent=11 // pred_check_branch
        %136 = sbr.rel (%p134) target = $region16
      $region15: #{conv_block_2d.3} parent=11 // pred_region
        _
      $region16: #{conv_block_2d.3} parent=11 // pred_fallthru
        _
      // Predicated region
      $region17: #{conv_block_2d.3} parent=11 // pred_check
        %p137 = pneg %p91
      $region18: #{conv_block_2d.3} parent=11 // pred_check_branch
        %139 = sbr.rel (%p137) target = $region20
      $region19: #{conv_block_2d.3} parent=11 // pred_region
        _
      $region20: #{conv_block_2d.3} parent=11 // pred_fallthru
        _
    $region12: #{conv_block_2d.3} parent=5 // pred_fallthru
      _
    %p140 = scmp.lt.s32.totalorder %s9, 2
    // Predicated region
    $region21: #{conv_block_2d.3} parent=5 // pred_check
      %p141 = pneg %p140
    $region22: #{conv_block_2d.3} parent=5 // pred_check_branch
      %143 = sbr.rel (%p141) target = $region24
    $region23: #{conv_block_2d.3} parent=5 // pred_region
      // Predicated region
      $region25: #{conv_block_2d.3} parent=23 // pred_check
        %p144 = pneg %p43
      $region26: #{conv_block_2d.3} parent=23 // pred_check_branch
        %146 = sbr.rel (%p144) target = $region28
      $region27: #{conv_block_2d.3} parent=23 // pred_region
        %s147 = smul.u32 16, %s17
        %p148 = scmp.lt.s32.totalorder %s16, 1
        %s149 = scalar_select %p148, %s16, 1
        %p150 = scmp.lt.s32.totalorder %s147, 15
        %s151 = scalar_select %p150, %s147, 15
        %s152 = smul.addr %s151, 2
        %s153 = smul.addr %s149, 32
        %s154 = sadd.s32 %s152, %s153
        %s155 = smul.addr %s154, 4
        %s156 = scalar_lea.vmem %s0, %s155
        %s157 = smul.u32 16, %s17
      $region28: #{conv_block_2d.3} parent=23 // pred_fallthru
        _
    $region24: #{conv_block_2d.3} parent=5 // pred_fallthru
      _
    %p158 = scmp.le.s32.totalorder 1, %s9
    %p159 = scmp.lt.s32.totalorder %s9, 3
    %p160 = pnand %p158, %p159
    %p161 = pneg %p160
    // Predicated region
    $region29: #{conv_block_2d.3} parent=5 // pred_check
      _
    $region30: #{conv_block_2d.3} parent=5 // pred_check_branch
      %163 = sbr.rel (%p160) target = $region32
    $region31: #{conv_block_2d.3} parent=5 // pred_region
      %s164 = ssub.s32 %s9, 1
      %s165 = smul.u32 16, %s19
      %p166 = scmp.lt.s32.totalorder %s18, 1
      %s167 = scalar_select %p166, %s18, 1
      %p168 = scmp.lt.s32.totalorder %s165, 15
      %s169 = scalar_select %p168, %s165, 15
      %s170 = smul.addr %s169, 2
      %s171 = smul.addr %s167, 32
      %s172 = sadd.s32 %s170, %s171
      %s173 = smul.addr %s172, 4
      %s174 = scalar_lea.vmem %s0, %s173
      %p175 = pneg %p49
      %p176 = pneg %p46
      %p177 = pneg %p70
      %p178 = pneg %p67
      %p179 = pneg %p91
      %p180 = pneg %p88
      %p181 = pneg %p119
      %p182 = pneg %p116
      %s183 = smul.u32 8, %s19
      %p184 = scmp.lt.s32.totalorder %s18, 1
      %s185 = scalar_select %p184, %s18, 1
      %p186 = scmp.lt.s32.totalorder %s183, 7
      %s187 = scalar_select %p186, %s183, 7
      %s188 = smul.addr %s185, 8
      %s189 = sadd.s32 %s187, %s188
      %s190 = smul.addr %s189, 8
      %s191 = scalar_lea.vmem %s3, %s190
      %s192 = smul.u32 16, %s19
      %p193 = scmp.lt.s32.totalorder %s18, 1
      %s194 = scalar_select %p193, %s18, 1
      %p195 = scmp.lt.s32.totalorder %s192, 15
      %s196 = scalar_select %p195, %s192, 15
      %s197 = smul.addr %s196, 2
      %s198 = smul.addr %s194, 32
      %s199 = sadd.s32 %s197, %s198
      %s200 = smul.addr %s199, 4
      %s201 = scalar_lea.vmem %s0, %s200
      %s202 = smul.u32 16, %s19
      %s203 = smul.u32 8, %s19
      %p204 = scmp.lt.s32.totalorder %s18, 1
      %s205 = scalar_select %p204, %s18, 1
      %p206 = scmp.lt.s32.totalorder %s203, 7
      %s207 = scalar_select %p206, %s203, 7
      %s208 = smul.addr %s205, 8
      %s209 = sadd.s32 %s207, %s208
      %s210 = smul.addr %s209, 8
      %s211 = scalar_lea.vmem %s3, %s210
      %s212 = smul.u32 8, %s19
      %v213 = vld [vmem:[%s1] sm:$0x1]
      %v214 = vld [vmem:[%s2] sm:$0x1]
      %v215 = vld [vmem:[%s201] sm:$0xf]
      %v216 = vld [vmem:[%s201 + $0x4] sm:$0xf]
      %v217 = vld [vmem:[%s201 + $0x8] sm:$0xf]
      %v218 = vld [vmem:[%s201 + $0xc] sm:$0xf]
      %v219 = vld [vmem:[%s201 + $0x10] sm:$0xf]
      %v220 = vld [vmem:[%s201 + $0x14] sm:$0xf]
      %v221 = vld [vmem:[%s201 + $0x18] sm:$0xf]
      %v222 = vld [vmem:[%s201 + $0x1c] sm:$0xf]
      %v223 = vld [vmem:[%s201 + $0x20] sm:$0xf]
      %v224 = vld [vmem:[%s201 + $0x24] sm:$0xf]
      %v225 = vld [vmem:[%s201 + $0x28] sm:$0xf]
      %v226 = vld [vmem:[%s201 + $0x2c] sm:$0xf]
      %v227 = vld [vmem:[%s201 + $0x30] sm:$0xf]
      %v228 = vld [vmem:[%s201 + $0x34] sm:$0xf]
      %v229 = vld [vmem:[%s201 + $0x38] sm:$0xf]
      %v230 = vld [vmem:[%s201 + $0x3c] sm:$0xf]
      %v231 = vld [vmem:[%s201 + $0x40] sm:$0xf]
      %v232 = vld [vmem:[%s201 + $0x44] sm:$0xf]
      %v233 = vld [vmem:[%s201 + $0x48] sm:$0xf]
      %v234 = vld [vmem:[%s201 + $0x4c] sm:$0xf]
      %v235 = vld [vmem:[%s201 + $0x50] sm:$0xf]
      %v236 = vld [vmem:[%s201 + $0x54] sm:$0xf]
      %v237 = vld [vmem:[%s201 + $0x58] sm:$0xf]
      %v238 = vld [vmem:[%s201 + $0x5c] sm:$0xf]
      %v239 = vld [vmem:[%s201 + $0x60] sm:$0xf]
      %v240 = vld [vmem:[%s201 + $0x64] sm:$0xf]
      %v241 = vld [vmem:[%s201 + $0x68] sm:$0xf]
      %v242 = vld [vmem:[%s201 + $0x6c] sm:$0xf]
      %v243 = vld [vmem:[%s201 + $0x70] sm:$0xf]
      %v244 = vld [vmem:[%s201 + $0x74] sm:$0xf]
      %v245 = vld [vmem:[%s201 + $0x78] sm:$0xf]
      %v246 = vld [vmem:[%s201 + $0x7c] sm:$0xf]
      %v247 = vunpack.c.l.bf16 %v215
      %v248 = vunpack.c.l.bf16 %v216
      %v249 = vunpack.c.l.bf16 %v217
      %v250 = vunpack.c.l.bf16 %v218
      %v251 = vunpack.c.l.bf16 %v219
      %v252 = vunpack.c.l.bf16 %v220
      %v253 = vunpack.c.l.bf16 %v221
      %v254 = vunpack.c.l.bf16 %v222
      %v255 = vunpack.c.l.bf16 %v223
      %v256 = vunpack.c.l.bf16 %v224
      %v257 = vunpack.c.l.bf16 %v225
      %v258 = vunpack.c.l.bf16 %v226
      %v259 = vunpack.c.l.bf16 %v227
      %v260 = vunpack.c.l.bf16 %v228
      %v261 = vunpack.c.l.bf16 %v229
      %v262 = vunpack.c.l.bf16 %v230
      %v263 = vunpack.c.l.bf16 %v231
      %v264 = vunpack.c.l.bf16 %v232
      %v265 = vunpack.c.l.bf16 %v233
      %v266 = vunpack.c.l.bf16 %v234
      %v267 = vunpack.c.l.bf16 %v235
      %v268 = vunpack.c.l.bf16 %v236
      %v269 = vunpack.c.l.bf16 %v237
      %v270 = vunpack.c.l.bf16 %v238
      %v271 = vunpack.c.l.bf16 %v239
      %v272 = vunpack.c.l.bf16 %v240
      %v273 = vunpack.c.l.bf16 %v241
      %v274 = vunpack.c.l.bf16 %v242
      %v275 = vunpack.c.l.bf16 %v243
      %v276 = vunpack.c.l.bf16 %v244
      %v277 = vunpack.c.l.bf16 %v245
      %v278 = vunpack.c.l.bf16 %v246
      %v280 = vlaneseq
      %v281 = vshrl.u32 %v280, 7
      %v282 = vsub.s32 0, %v281
      %v283 = vrot.slane %v213, %v282
      %v285 = vmul.f32 %v247, %v283
      %v286 = vmul.f32 %v248, %v283
      %v287 = vmul.f32 %v249, %v283
      %v288 = vmul.f32 %v250, %v283
      %v289 = vmul.f32 %v251, %v283
      %v290 = vmul.f32 %v252, %v283
      %v291 = vmul.f32 %v253, %v283
      %v292 = vmul.f32 %v254, %v283
      %v293 = vmul.f32 %v255, %v283
      %v294 = vmul.f32 %v256, %v283
      %v295 = vmul.f32 %v257, %v283
      %v296 = vmul.f32 %v258, %v283
      %v297 = vmul.f32 %v259, %v283
      %v298 = vmul.f32 %v260, %v283
      %v299 = vmul.f32 %v261, %v283
      %v300 = vmul.f32 %v262, %v283
      %v301 = vmul.f32 %v263, %v283
      %v302 = vmul.f32 %v264, %v283
      %v303 = vmul.f32 %v265, %v283
      %v304 = vmul.f32 %v266, %v283
      %v305 = vmul.f32 %v267, %v283
      %v306 = vmul.f32 %v268, %v283
      %v307 = vmul.f32 %v269, %v283
      %v308 = vmul.f32 %v270, %v283
      %v309 = vmul.f32 %v271, %v283
      %v310 = vmul.f32 %v272, %v283
      %v311 = vmul.f32 %v273, %v283
      %v312 = vmul.f32 %v274, %v283
      %v313 = vmul.f32 %v275, %v283
      %v314 = vmul.f32 %v276, %v283
      %v315 = vmul.f32 %v277, %v283
      %v316 = vmul.f32 %v278, %v283
      %v318 = vlaneseq
      %v319 = vshrl.u32 %v318, 7
      %v320 = vsub.s32 0, %v319
      %v321 = vrot.slane %v214, %v320
      %v323 = vadd.f32 %v285, %v321
      %v324 = vadd.f32 %v286, %v321
      %v325 = vadd.f32 %v287, %v321
      %v326 = vadd.f32 %v288, %v321
      %v327 = vadd.f32 %v289, %v321
      %v328 = vadd.f32 %v290, %v321
      %v329 = vadd.f32 %v291, %v321
      %v330 = vadd.f32 %v292, %v321
      %v331 = vadd.f32 %v293, %v321
      %v332 = vadd.f32 %v294, %v321
      %v333 = vadd.f32 %v295, %v321
      %v334 = vadd.f32 %v296, %v321
      %v335 = vadd.f32 %v297, %v321
      %v336 = vadd.f32 %v298, %v321
      %v337 = vadd.f32 %v299, %v321
      %v338 = vadd.f32 %v300, %v321
      %v339 = vadd.f32 %v301, %v321
      %v340 = vadd.f32 %v302, %v321
      %v341 = vadd.f32 %v303, %v321
      %v342 = vadd.f32 %v304, %v321
      %v343 = vadd.f32 %v305, %v321
      %v344 = vadd.f32 %v306, %v321
      %v345 = vadd.f32 %v307, %v321
      %v346 = vadd.f32 %v308, %v321
      %v347 = vadd.f32 %v309, %v321
      %v348 = vadd.f32 %v310, %v321
      %v349 = vadd.f32 %v311, %v321
      %v350 = vadd.f32 %v312, %v321
      %v351 = vadd.f32 %v313, %v321
      %v352 = vadd.f32 %v314, %v321
      %v353 = vadd.f32 %v315, %v321
      %v354 = vadd.f32 %v316, %v321
      %v355 = vmax.f32 %v323, 0.0
      %v356 = vmax.f32 %v324, 0.0
      %v357 = vmax.f32 %v325, 0.0
      %v358 = vmax.f32 %v326, 0.0
      %v359 = vmax.f32 %v327, 0.0
      %v360 = vmax.f32 %v328, 0.0
      %v361 = vmax.f32 %v329, 0.0
      %v362 = vmax.f32 %v330, 0.0
      %v363 = vmax.f32 %v331, 0.0
      %v364 = vmax.f32 %v332, 0.0
      %v365 = vmax.f32 %v333, 0.0
      %v366 = vmax.f32 %v334, 0.0
      %v367 = vmax.f32 %v335, 0.0
      %v368 = vmax.f32 %v336, 0.0
      %v369 = vmax.f32 %v337, 0.0
      %v370 = vmax.f32 %v338, 0.0
      %v371 = vmax.f32 %v339, 0.0
      %v372 = vmax.f32 %v340, 0.0
      %v373 = vmax.f32 %v341, 0.0
      %v374 = vmax.f32 %v342, 0.0
      %v375 = vmax.f32 %v343, 0.0
      %v376 = vmax.f32 %v344, 0.0
      %v377 = vmax.f32 %v345, 0.0
      %v378 = vmax.f32 %v346, 0.0
      %v379 = vmax.f32 %v347, 0.0
      %v380 = vmax.f32 %v348, 0.0
      %v381 = vmax.f32 %v349, 0.0
      %v382 = vmax.f32 %v350, 0.0
      %v383 = vmax.f32 %v351, 0.0
      %v384 = vmax.f32 %v352, 0.0
      %v385 = vmax.f32 %v353, 0.0
      %v386 = vmax.f32 %v354, 0.0
      %vm387 = vcmask 64512
      %v388 = vsel %vm387, %v355, -inf
      %v389 = vsel %vm387, %v357, -inf
      %v390 = vmax.f32 %v388, %v389
      %v391 = vsel %vm387, %v356, -inf
      %v392 = vsel %vm387, %v358, -inf
      %v393 = vmax.f32 %v391, %v392
      %v394 = vsel %vm387, %v359, -inf
      %v395 = vsel %vm387, %v361, -inf
      %v396 = vmax.f32 %v394, %v395
      %v397 = vsel %vm387, %v360, -inf
      %v398 = vsel %vm387, %v362, -inf
      %v399 = vmax.f32 %v397, %v398
      %v400 = vsel %vm387, %v363, -inf
      %v401 = vsel %vm387, %v365, -inf
      %v402 = vmax.f32 %v400, %v401
      %v403 = vsel %vm387, %v364, -inf
      %v404 = vsel %vm387, %v366, -inf
      %v405 = vmax.f32 %v403, %v404
      %v406 = vsel %vm387, %v367, -inf
      %v407 = vsel %vm387, %v369, -inf
      %v408 = vmax.f32 %v406, %v407
      %v409 = vsel %vm387, %v368, -inf
      %v410 = vsel %vm387, %v370, -inf
      %v411 = vmax.f32 %v409, %v410
      %v412 = vsel %vm387, %v371, -inf
      %v413 = vsel %vm387, %v373, -inf
      %v414 = vmax.f32 %v412, %v413
      %v415 = vsel %vm387, %v372, -inf
      %v416 = vsel %vm387, %v374, -inf
      %v417 = vmax.f32 %v415, %v416
      %v418 = vsel %vm387, %v375, -inf
      %v419 = vsel %vm387, %v377, -inf
      %v420 = vmax.f32 %v418, %v419
      %v421 = vsel %vm387, %v376, -inf
      %v422 = vsel %vm387, %v378, -inf
      %v423 = vmax.f32 %v421, %v422
      %v424 = vsel %vm387, %v379, -inf
      %v425 = vsel %vm387, %v381, -inf
      %v426 = vmax.f32 %v424, %v425
      %v427 = vsel %vm387, %v380, -inf
      %v428 = vsel %vm387, %v382, -inf
      %v429 = vmax.f32 %v427, %v428
      %v430 = vsel %vm387, %v383, -inf
      %v431 = vsel %vm387, %v385, -inf
      %v432 = vmax.f32 %v430, %v431
      %v433 = vsel %vm387, %v384, -inf
      %v434 = vsel %vm387, %v386, -inf
      %v435 = vmax.f32 %v433, %v434
      %v452 = vcombine.high %v390, %v390
      %v454 = vunpack.c.l.s4 1983009808
      %v455 = vunpack.c.0.s8 %v454
      %v456 = vlaneseq
      %v457 = vshrl.u32 %v456, 7
      %v458 = vsub.s32 %v455, %v457
      %v459 = vrot.slane %v390, %v458
      %v461 = vunpack.c.l.s4 1983009808
      %v462 = vunpack.c.0.s8 %v461
      %v463 = vlaneseq
      %v464 = vshrl.u32 %v463, 7
      %v465 = vsub.s32 %v462, %v464
      %v466 = vrot.slane %v452, %v465
      %v467 = vcombine.high %v459, %v459
      %v468 = vcombine.high %v466, %v466
      %v469 = vcombine.high %v393, %v393
      %v471 = vunpack.c.l.s4 1983009808
      %v472 = vunpack.c.0.s8 %v471
      %v473 = vlaneseq
      %v474 = vshrl.u32 %v473, 7
      %v475 = vsub.s32 %v472, %v474
      %v476 = vrot.slane %v393, %v475
      %v478 = vunpack.c.l.s4 1983009808
      %v479 = vunpack.c.0.s8 %v478
      %v480 = vlaneseq
      %v481 = vshrl.u32 %v480, 7
      %v482 = vsub.s32 %v479, %v481
      %v483 = vrot.slane %v469, %v482
      %v484 = vcombine.high %v476, %v476
      %v485 = vcombine.high %v483, %v483
      %v486 = vcombine.high %v396, %v396
      %v488 = vunpack.c.l.s4 1983009808
      %v489 = vunpack.c.0.s8 %v488
      %v490 = vlaneseq
      %v491 = vshrl.u32 %v490, 7
      %v492 = vsub.s32 %v489, %v491
      %v493 = vrot.slane %v396, %v492
      %v495 = vunpack.c.l.s4 1983009808
      %v496 = vunpack.c.0.s8 %v495
      %v497 = vlaneseq
      %v498 = vshrl.u32 %v497, 7
      %v499 = vsub.s32 %v496, %v498
      %v500 = vrot.slane %v486, %v499
      %v501 = vcombine.high %v493, %v493
      %v502 = vcombine.high %v500, %v500
      %v503 = vcombine.high %v399, %v399
      %v505 = vunpack.c.l.s4 1983009808
      %v506 = vunpack.c.0.s8 %v505
      %v507 = vlaneseq
      %v508 = vshrl.u32 %v507, 7
      %v509 = vsub.s32 %v506, %v508
      %v510 = vrot.slane %v399, %v509
      %v512 = vunpack.c.l.s4 1983009808
      %v513 = vunpack.c.0.s8 %v512
      %v514 = vlaneseq
      %v515 = vshrl.u32 %v514, 7
      %v516 = vsub.s32 %v513, %v515
      %v517 = vrot.slane %v503, %v516
      %v518 = vcombine.high %v510, %v510
      %v519 = vcombine.high %v517, %v517
      %v520 = vcombine.high %v402, %v402
      %v522 = vunpack.c.l.s4 1983009808
      %v523 = vunpack.c.0.s8 %v522
      %v524 = vlaneseq
      %v525 = vshrl.u32 %v524, 7
      %v526 = vsub.s32 %v523, %v525
      %v527 = vrot.slane %v402, %v526
      %v529 = vunpack.c.l.s4 1983009808
      %v530 = vunpack.c.0.s8 %v529
      %v531 = vlaneseq
      %v532 = vshrl.u32 %v531, 7
      %v533 = vsub.s32 %v530, %v532
      %v534 = vrot.slane %v520, %v533
      %v535 = vcombine.high %v527, %v527
      %v536 = vcombine.high %v534, %v534
      %v537 = vcombine.high %v405, %v405
      %v539 = vunpack.c.l.s4 1983009808
      %v540 = vunpack.c.0.s8 %v539
      %v541 = vlaneseq
      %v542 = vshrl.u32 %v541, 7
      %v543 = vsub.s32 %v540, %v542
      %v544 = vrot.slane %v405, %v543
      %v546 = vunpack.c.l.s4 1983009808
      %v547 = vunpack.c.0.s8 %v546
      %v548 = vlaneseq
      %v549 = vshrl.u32 %v548, 7
      %v550 = vsub.s32 %v547, %v549
      %v551 = vrot.slane %v537, %v550
      %v552 = vcombine.high %v544, %v544
      %v553 = vcombine.high %v551, %v551
      %v554 = vcombine.high %v408, %v408
      %v556 = vunpack.c.l.s4 1983009808
      %v557 = vunpack.c.0.s8 %v556
      %v558 = vlaneseq
      %v559 = vshrl.u32 %v558, 7
      %v560 = vsub.s32 %v557, %v559
      %v561 = vrot.slane %v408, %v560
      %v563 = vunpack.c.l.s4 1983009808
      %v564 = vunpack.c.0.s8 %v563
      %v565 = vlaneseq
      %v566 = vshrl.u32 %v565, 7
      %v567 = vsub.s32 %v564, %v566
      %v568 = vrot.slane %v554, %v567
      %v569 = vcombine.high %v561, %v561
      %v570 = vcombine.high %v568, %v568
      %v571 = vcombine.high %v411, %v411
      %v573 = vunpack.c.l.s4 1983009808
      %v574 = vunpack.c.0.s8 %v573
      %v575 = vlaneseq
      %v576 = vshrl.u32 %v575, 7
      %v577 = vsub.s32 %v574, %v576
      %v578 = vrot.slane %v411, %v577
      %v580 = vunpack.c.l.s4 1983009808
      %v581 = vunpack.c.0.s8 %v580
      %v582 = vlaneseq
      %v583 = vshrl.u32 %v582, 7
      %v584 = vsub.s32 %v581, %v583
      %v585 = vrot.slane %v571, %v584
      %v586 = vcombine.high %v578, %v578
      %v587 = vcombine.high %v585, %v585
      %v588 = vcombine.high %v414, %v414
      %v590 = vunpack.c.l.s4 1983009808
      %v591 = vunpack.c.0.s8 %v590
      %v592 = vlaneseq
      %v593 = vshrl.u32 %v592, 7
      %v594 = vsub.s32 %v591, %v593
      %v595 = vrot.slane %v414, %v594
      %v597 = vunpack.c.l.s4 1983009808
      %v598 = vunpack.c.0.s8 %v597
      %v599 = vlaneseq
      %v600 = vshrl.u32 %v599, 7
      %v601 = vsub.s32 %v598, %v600
      %v602 = vrot.slane %v588, %v601
      %v603 = vcombine.high %v595, %v595
      %v604 = vcombine.high %v602, %v602
      %v605 = vcombine.high %v417, %v417
      %v607 = vunpack.c.l.s4 1983009808
      %v608 = vunpack.c.0.s8 %v607
      %v609 = vlaneseq
      %v610 = vshrl.u32 %v609, 7
      %v611 = vsub.s32 %v608, %v610
      %v612 = vrot.slane %v417, %v611
      %v614 = vunpack.c.l.s4 1983009808
      %v615 = vunpack.c.0.s8 %v614
      %v616 = vlaneseq
      %v617 = vshrl.u32 %v616, 7
      %v618 = vsub.s32 %v615, %v617
      %v619 = vrot.slane %v605, %v618
      %v620 = vcombine.high %v612, %v612
      %v621 = vcombine.high %v619, %v619
      %v622 = vcombine.high %v420, %v420
      %v624 = vunpack.c.l.s4 1983009808
      %v625 = vunpack.c.0.s8 %v624
      %v626 = vlaneseq
      %v627 = vshrl.u32 %v626, 7
      %v628 = vsub.s32 %v625, %v627
      %v629 = vrot.slane %v420, %v628
      %v631 = vunpack.c.l.s4 1983009808
      %v632 = vunpack.c.0.s8 %v631
      %v633 = vlaneseq
      %v634 = vshrl.u32 %v633, 7
      %v635 = vsub.s32 %v632, %v634
      %v636 = vrot.slane %v622, %v635
      %v637 = vcombine.high %v629, %v629
      %v638 = vcombine.high %v636, %v636
      %v639 = vcombine.high %v423, %v423
      %v641 = vunpack.c.l.s4 1983009808
      %v642 = vunpack.c.0.s8 %v641
      %v643 = vlaneseq
      %v644 = vshrl.u32 %v643, 7
      %v645 = vsub.s32 %v642, %v644
      %v646 = vrot.slane %v423, %v645
      %v648 = vunpack.c.l.s4 1983009808
      %v649 = vunpack.c.0.s8 %v648
      %v650 = vlaneseq
      %v651 = vshrl.u32 %v650, 7
      %v652 = vsub.s32 %v649, %v651
      %v653 = vrot.slane %v639, %v652
      %v654 = vcombine.high %v646, %v646
      %v655 = vcombine.high %v653, %v653
      %v656 = vcombine.high %v426, %v426
      %v658 = vunpack.c.l.s4 1983009808
      %v659 = vunpack.c.0.s8 %v658
      %v660 = vlaneseq
      %v661 = vshrl.u32 %v660, 7
      %v662 = vsub.s32 %v659, %v661
      %v663 = vrot.slane %v426, %v662
      %v665 = vunpack.c.l.s4 1983009808
      %v666 = vunpack.c.0.s8 %v665
      %v667 = vlaneseq
      %v668 = vshrl.u32 %v667, 7
      %v669 = vsub.s32 %v666, %v668
      %v670 = vrot.slane %v656, %v669
      %v671 = vcombine.high %v663, %v663
      %v672 = vcombine.high %v670, %v670
      %v673 = vcombine.high %v429, %v429
      %v675 = vunpack.c.l.s4 1983009808
      %v676 = vunpack.c.0.s8 %v675
      %v677 = vlaneseq
      %v678 = vshrl.u32 %v677, 7
      %v679 = vsub.s32 %v676, %v678
      %v680 = vrot.slane %v429, %v679
      %v682 = vunpack.c.l.s4 1983009808
      %v683 = vunpack.c.0.s8 %v682
      %v684 = vlaneseq
      %v685 = vshrl.u32 %v684, 7
      %v686 = vsub.s32 %v683, %v685
      %v687 = vrot.slane %v673, %v686
      %v688 = vcombine.high %v680, %v680
      %v689 = vcombine.high %v687, %v687
      %v690 = vcombine.high %v432, %v432
      %v692 = vunpack.c.l.s4 1983009808
      %v693 = vunpack.c.0.s8 %v692
      %v694 = vlaneseq
      %v695 = vshrl.u32 %v694, 7
      %v696 = vsub.s32 %v693, %v695
      %v697 = vrot.slane %v432, %v696
      %v699 = vunpack.c.l.s4 1983009808
      %v700 = vunpack.c.0.s8 %v699
      %v701 = vlaneseq
      %v702 = vshrl.u32 %v701, 7
      %v703 = vsub.s32 %v700, %v702
      %v704 = vrot.slane %v690, %v703
      %v705 = vcombine.high %v697, %v697
      %v706 = vcombine.high %v704, %v704
      %v707 = vcombine.high %v435, %v435
      %v709 = vunpack.c.l.s4 1983009808
      %v710 = vunpack.c.0.s8 %v709
      %v711 = vlaneseq
      %v712 = vshrl.u32 %v711, 7
      %v713 = vsub.s32 %v710, %v712
      %v714 = vrot.slane %v435, %v713
      %v716 = vunpack.c.l.s4 1983009808
      %v717 = vunpack.c.0.s8 %v716
      %v718 = vlaneseq
      %v719 = vshrl.u32 %v718, 7
      %v720 = vsub.s32 %v717, %v719
      %v721 = vrot.slane %v707, %v720
      %v722 = vcombine.high %v714, %v714
      %v723 = vcombine.high %v721, %v721
      %vm788 = vcmask 58368
      %v789 = vsel %vm788, %v459, -inf
      %v790 = vrot.slane %v789, 4
      %v791 = vmax.f32 %v789, %v790
      %v792 = vrot.slane %v791, 2
      %v793 = vmax.f32 %v791, %v792
      %v794 = vrot.slane %v793, 1
      %v795 = vmax.f32 %v793, %v794
      %v796 = vsel %vm788, %v467, -inf
      %v797 = vrot.slane %v796, 4
      %v798 = vmax.f32 %v796, %v797
      %v799 = vrot.slane %v798, 2
      %v800 = vmax.f32 %v798, %v799
      %v801 = vrot.slane %v800, 1
      %v802 = vmax.f32 %v800, %v801
      %v803 = vsel %vm788, %v466, -inf
      %v804 = vrot.slane %v803, 4
      %v805 = vmax.f32 %v803, %v804
      %v806 = vrot.slane %v805, 2
      %v807 = vmax.f32 %v805, %v806
      %v808 = vrot.slane %v807, 1
      %v809 = vmax.f32 %v807, %v808
      %v810 = vsel %vm788, %v468, -inf
      %v811 = vrot.slane %v810, 4
      %v812 = vmax.f32 %v810, %v811
      %v813 = vrot.slane %v812, 2
      %v814 = vmax.f32 %v812, %v813
      %v815 = vrot.slane %v814, 1
      %v816 = vmax.f32 %v814, %v815
      %v817 = vsel %vm788, %v476, -inf
      %v818 = vrot.slane %v817, 4
      %v819 = vmax.f32 %v817, %v818
      %v820 = vrot.slane %v819, 2
      %v821 = vmax.f32 %v819, %v820
      %v822 = vrot.slane %v821, 1
      %v823 = vmax.f32 %v821, %v822
      %v824 = vsel %vm788, %v484, -inf
      %v825 = vrot.slane %v824, 4
      %v826 = vmax.f32 %v824, %v825
      %v827 = vrot.slane %v826, 2
      %v828 = vmax.f32 %v826, %v827
      %v829 = vrot.slane %v828, 1
      %v830 = vmax.f32 %v828, %v829
      %v831 = vsel %vm788, %v483, -inf
      %v832 = vrot.slane %v831, 4
      %v833 = vmax.f32 %v831, %v832
      %v834 = vrot.slane %v833, 2
      %v835 = vmax.f32 %v833, %v834
      %v836 = vrot.slane %v835, 1
      %v837 = vmax.f32 %v835, %v836
      %v838 = vsel %vm788, %v485, -inf
      %v839 = vrot.slane %v838, 4
      %v840 = vmax.f32 %v838, %v839
      %v841 = vrot.slane %v840, 2
      %v842 = vmax.f32 %v840, %v841
      %v843 = vrot.slane %v842, 1
      %v844 = vmax.f32 %v842, %v843
      %v845 = vsel %vm788, %v493, -inf
      %v846 = vrot.slane %v845, 4
      %v847 = vmax.f32 %v845, %v846
      %v848 = vrot.slane %v847, 2
      %v849 = vmax.f32 %v847, %v848
      %v850 = vrot.slane %v849, 1
      %v851 = vmax.f32 %v849, %v850
      %v852 = vsel %vm788, %v501, -inf
      %v853 = vrot.slane %v852, 4
      %v854 = vmax.f32 %v852, %v853
      %v855 = vrot.slane %v854, 2
      %v856 = vmax.f32 %v854, %v855
      %v857 = vrot.slane %v856, 1
      %v858 = vmax.f32 %v856, %v857
      %v859 = vsel %vm788, %v500, -inf
      %v860 = vrot.slane %v859, 4
      %v861 = vmax.f32 %v859, %v860
      %v862 = vrot.slane %v861, 2
      %v863 = vmax.f32 %v861, %v862
      %v864 = vrot.slane %v863, 1
      %v865 = vmax.f32 %v863, %v864
      %v866 = vsel %vm788, %v502, -inf
      %v867 = vrot.slane %v866, 4
      %v868 = vmax.f32 %v866, %v867
      %v869 = vrot.slane %v868, 2
      %v870 = vmax.f32 %v868, %v869
      %v871 = vrot.slane %v870, 1
      %v872 = vmax.f32 %v870, %v871
      %v873 = vsel %vm788, %v510, -inf
      %v874 = vrot.slane %v873, 4
      %v875 = vmax.f32 %v873, %v874
      %v876 = vrot.slane %v875, 2
      %v877 = vmax.f32 %v875, %v876
      %v878 = vrot.slane %v877, 1
      %v879 = vmax.f32 %v877, %v878
      %v880 = vsel %vm788, %v518, -inf
      %v881 = vrot.slane %v880, 4
      %v882 = vmax.f32 %v880, %v881
      %v883 = vrot.slane %v882, 2
      %v884 = vmax.f32 %v882, %v883
      %v885 = vrot.slane %v884, 1
      %v886 = vmax.f32 %v884, %v885
      %v887 = vsel %vm788, %v517, -inf
      %v888 = vrot.slane %v887, 4
      %v889 = vmax.f32 %v887, %v888
      %v890 = vrot.slane %v889, 2
      %v891 = vmax.f32 %v889, %v890
      %v892 = vrot.slane %v891, 1
      %v893 = vmax.f32 %v891, %v892
      %v894 = vsel %vm788, %v519, -inf
      %v895 = vrot.slane %v894, 4
      %v896 = vmax.f32 %v894, %v895
      %v897 = vrot.slane %v896, 2
      %v898 = vmax.f32 %v896, %v897
      %v899 = vrot.slane %v898, 1
      %v900 = vmax.f32 %v898, %v899
      %v901 = vsel %vm788, %v527, -inf
      %v902 = vrot.slane %v901, 4
      %v903 = vmax.f32 %v901, %v902
      %v904 = vrot.slane %v903, 2
      %v905 = vmax.f32 %v903, %v904
      %v906 = vrot.slane %v905, 1
      %v907 = vmax.f32 %v905, %v906
      %v908 = vsel %vm788, %v535, -inf
      %v909 = vrot.slane %v908, 4
      %v910 = vmax.f32 %v908, %v909
      %v911 = vrot.slane %v910, 2
      %v912 = vmax.f32 %v910, %v911
      %v913 = vrot.slane %v912, 1
      %v914 = vmax.f32 %v912, %v913
      %v915 = vsel %vm788, %v534, -inf
      %v916 = vrot.slane %v915, 4
      %v917 = vmax.f32 %v915, %v916
      %v918 = vrot.slane %v917, 2
      %v919 = vmax.f32 %v917, %v918
      %v920 = vrot.slane %v919, 1
      %v921 = vmax.f32 %v919, %v920
      %v922 = vsel %vm788, %v536, -inf
      %v923 = vrot.slane %v922, 4
      %v924 = vmax.f32 %v922, %v923
      %v925 = vrot.slane %v924, 2
      %v926 = vmax.f32 %v924, %v925
      %v927 = vrot.slane %v926, 1
      %v928 = vmax.f32 %v926, %v927
      %v929 = vsel %vm788, %v544, -inf
      %v930 = vrot.slane %v929, 4
      %v931 = vmax.f32 %v929, %v930
      %v932 = vrot.slane %v931, 2
      %v933 = vmax.f32 %v931, %v932
      %v934 = vrot.slane %v933, 1
      %v935 = vmax.f32 %v933, %v934
      %v936 = vsel %vm788, %v552, -inf
      %v937 = vrot.slane %v936, 4
      %v938 = vmax.f32 %v936, %v937
      %v939 = vrot.slane %v938, 2
      %v940 = vmax.f32 %v938, %v939
      %v941 = vrot.slane %v940, 1
      %v942 = vmax.f32 %v940, %v941
      %v943 = vsel %vm788, %v551, -inf
      %v944 = vrot.slane %v943, 4
      %v945 = vmax.f32 %v943, %v944
      %v946 = vrot.slane %v945, 2
      %v947 = vmax.f32 %v945, %v946
      %v948 = vrot.slane %v947, 1
      %v949 = vmax.f32 %v947, %v948
      %v950 = vsel %vm788, %v553, -inf
      %v951 = vrot.slane %v950, 4
      %v952 = vmax.f32 %v950, %v951
      %v953 = vrot.slane %v952, 2
      %v954 = vmax.f32 %v952, %v953
      %v955 = vrot.slane %v954, 1
      %v956 = vmax.f32 %v954, %v955
      %v957 = vsel %vm788, %v561, -inf
      %v958 = vrot.slane %v957, 4
      %v959 = vmax.f32 %v957, %v958
      %v960 = vrot.slane %v959, 2
      %v961 = vmax.f32 %v959, %v960
      %v962 = vrot.slane %v961, 1
      %v963 = vmax.f32 %v961, %v962
      %v964 = vsel %vm788, %v569, -inf
      %v965 = vrot.slane %v964, 4
      %v966 = vmax.f32 %v964, %v965
      %v967 = vrot.slane %v966, 2
      %v968 = vmax.f32 %v966, %v967
      %v969 = vrot.slane %v968, 1
      %v970 = vmax.f32 %v968, %v969
      %v971 = vsel %vm788, %v568, -inf
      %v972 = vrot.slane %v971, 4
      %v973 = vmax.f32 %v971, %v972
      %v974 = vrot.slane %v973, 2
      %v975 = vmax.f32 %v973, %v974
      %v976 = vrot.slane %v975, 1
      %v977 = vmax.f32 %v975, %v976
      %v978 = vsel %vm788, %v570, -inf
      %v979 = vrot.slane %v978, 4
      %v980 = vmax.f32 %v978, %v979
      %v981 = vrot.slane %v980, 2
      %v982 = vmax.f32 %v980, %v981
      %v983 = vrot.slane %v982, 1
      %v984 = vmax.f32 %v982, %v983
      %v985 = vsel %vm788, %v578, -inf
      %v986 = vrot.slane %v985, 4
      %v987 = vmax.f32 %v985, %v986
      %v988 = vrot.slane %v987, 2
      %v989 = vmax.f32 %v987, %v988
      %v990 = vrot.slane %v989, 1
      %v991 = vmax.f32 %v989, %v990
      %v992 = vsel %vm788, %v586, -inf
      %v993 = vrot.slane %v992, 4
      %v994 = vmax.f32 %v992, %v993
      %v995 = vrot.slane %v994, 2
      %v996 = vmax.f32 %v994, %v995
      %v997 = vrot.slane %v996, 1
      %v998 = vmax.f32 %v996, %v997
      %v999 = vsel %vm788, %v585, -inf
      %v1000 = vrot.slane %v999, 4
      %v1001 = vmax.f32 %v999, %v1000
      %v1002 = vrot.slane %v1001, 2
      %v1003 = vmax.f32 %v1001, %v1002
      %v1004 = vrot.slane %v1003, 1
      %v1005 = vmax.f32 %v1003, %v1004
      %v1006 = vsel %vm788, %v587, -inf
      %v1007 = vrot.slane %v1006, 4
      %v1008 = vmax.f32 %v1006, %v1007
      %v1009 = vrot.slane %v1008, 2
      %v1010 = vmax.f32 %v1008, %v1009
      %v1011 = vrot.slane %v1010, 1
      %v1012 = vmax.f32 %v1010, %v1011
      %v1013 = vsel %vm788, %v595, -inf
      %v1014 = vrot.slane %v1013, 4
      %v1015 = vmax.f32 %v1013, %v1014
      %v1016 = vrot.slane %v1015, 2
      %v1017 = vmax.f32 %v1015, %v1016
      %v1018 = vrot.slane %v1017, 1
      %v1019 = vmax.f32 %v1017, %v1018
      %v1020 = vsel %vm788, %v603, -inf
      %v1021 = vrot.slane %v1020, 4
      %v1022 = vmax.f32 %v1020, %v1021
      %v1023 = vrot.slane %v1022, 2
      %v1024 = vmax.f32 %v1022, %v1023
      %v1025 = vrot.slane %v1024, 1
      %v1026 = vmax.f32 %v1024, %v1025
      %v1027 = vsel %vm788, %v602, -inf
      %v1028 = vrot.slane %v1027, 4
      %v1029 = vmax.f32 %v1027, %v1028
      %v1030 = vrot.slane %v1029, 2
      %v1031 = vmax.f32 %v1029, %v1030
      %v1032 = vrot.slane %v1031, 1
      %v1033 = vmax.f32 %v1031, %v1032
      %v1034 = vsel %vm788, %v604, -inf
      %v1035 = vrot.slane %v1034, 4
      %v1036 = vmax.f32 %v1034, %v1035
      %v1037 = vrot.slane %v1036, 2
      %v1038 = vmax.f32 %v1036, %v1037
      %v1039 = vrot.slane %v1038, 1
      %v1040 = vmax.f32 %v1038, %v1039
      %v1041 = vsel %vm788, %v612, -inf
      %v1042 = vrot.slane %v1041, 4
      %v1043 = vmax.f32 %v1041, %v1042
      %v1044 = vrot.slane %v1043, 2
      %v1045 = vmax.f32 %v1043, %v1044
      %v1046 = vrot.slane %v1045, 1
      %v1047 = vmax.f32 %v1045, %v1046
      %v1048 = vsel %vm788, %v620, -inf
      %v1049 = vrot.slane %v1048, 4
      %v1050 = vmax.f32 %v1048, %v1049
      %v1051 = vrot.slane %v1050, 2
      %v1052 = vmax.f32 %v1050, %v1051
      %v1053 = vrot.slane %v1052, 1
      %v1054 = vmax.f32 %v1052, %v1053
      %v1055 = vsel %vm788, %v619, -inf
      %v1056 = vrot.slane %v1055, 4
      %v1057 = vmax.f32 %v1055, %v1056
      %v1058 = vrot.slane %v1057, 2
      %v1059 = vmax.f32 %v1057, %v1058
      %v1060 = vrot.slane %v1059, 1
      %v1061 = vmax.f32 %v1059, %v1060
      %v1062 = vsel %vm788, %v621, -inf
      %v1063 = vrot.slane %v1062, 4
      %v1064 = vmax.f32 %v1062, %v1063
      %v1065 = vrot.slane %v1064, 2
      %v1066 = vmax.f32 %v1064, %v1065
      %v1067 = vrot.slane %v1066, 1
      %v1068 = vmax.f32 %v1066, %v1067
      %v1069 = vsel %vm788, %v629, -inf
      %v1070 = vrot.slane %v1069, 4
      %v1071 = vmax.f32 %v1069, %v1070
      %v1072 = vrot.slane %v1071, 2
      %v1073 = vmax.f32 %v1071, %v1072
      %v1074 = vrot.slane %v1073, 1
      %v1075 = vmax.f32 %v1073, %v1074
      %v1076 = vsel %vm788, %v637, -inf
      %v1077 = vrot.slane %v1076, 4
      %v1078 = vmax.f32 %v1076, %v1077
      %v1079 = vrot.slane %v1078, 2
      %v1080 = vmax.f32 %v1078, %v1079
      %v1081 = vrot.slane %v1080, 1
      %v1082 = vmax.f32 %v1080, %v1081
      %v1083 = vsel %vm788, %v636, -inf
      %v1084 = vrot.slane %v1083, 4
      %v1085 = vmax.f32 %v1083, %v1084
      %v1086 = vrot.slane %v1085, 2
      %v1087 = vmax.f32 %v1085, %v1086
      %v1088 = vrot.slane %v1087, 1
      %v1089 = vmax.f32 %v1087, %v1088
      %v1090 = vsel %vm788, %v638, -inf
      %v1091 = vrot.slane %v1090, 4
      %v1092 = vmax.f32 %v1090, %v1091
      %v1093 = vrot.slane %v1092, 2
      %v1094 = vmax.f32 %v1092, %v1093
      %v1095 = vrot.slane %v1094, 1
      %v1096 = vmax.f32 %v1094, %v1095
      %v1097 = vsel %vm788, %v646, -inf
      %v1098 = vrot.slane %v1097, 4
      %v1099 = vmax.f32 %v1097, %v1098
      %v1100 = vrot.slane %v1099, 2
      %v1101 = vmax.f32 %v1099, %v1100
      %v1102 = vrot.slane %v1101, 1
      %v1103 = vmax.f32 %v1101, %v1102
      %v1104 = vsel %vm788, %v654, -inf
      %v1105 = vrot.slane %v1104, 4
      %v1106 = vmax.f32 %v1104, %v1105
      %v1107 = vrot.slane %v1106, 2
      %v1108 = vmax.f32 %v1106, %v1107
      %v1109 = vrot.slane %v1108, 1
      %v1110 = vmax.f32 %v1108, %v1109
      %v1111 = vsel %vm788, %v653, -inf
      %v1112 = vrot.slane %v1111, 4
      %v1113 = vmax.f32 %v1111, %v1112
      %v1114 = vrot.slane %v1113, 2
      %v1115 = vmax.f32 %v1113, %v1114
      %v1116 = vrot.slane %v1115, 1
      %v1117 = vmax.f32 %v1115, %v1116
      %v1118 = vsel %vm788, %v655, -inf
      %v1119 = vrot.slane %v1118, 4
      %v1120 = vmax.f32 %v1118, %v1119
      %v1121 = vrot.slane %v1120, 2
      %v1122 = vmax.f32 %v1120, %v1121
      %v1123 = vrot.slane %v1122, 1
      %v1124 = vmax.f32 %v1122, %v1123
      %v1125 = vsel %vm788, %v663, -inf
      %v1126 = vrot.slane %v1125, 4
      %v1127 = vmax.f32 %v1125, %v1126
      %v1128 = vrot.slane %v1127, 2
      %v1129 = vmax.f32 %v1127, %v1128
      %v1130 = vrot.slane %v1129, 1
      %v1131 = vmax.f32 %v1129, %v1130
      %v1132 = vsel %vm788, %v671, -inf
      %v1133 = vrot.slane %v1132, 4
      %v1134 = vmax.f32 %v1132, %v1133
      %v1135 = vrot.slane %v1134, 2
      %v1136 = vmax.f32 %v1134, %v1135
      %v1137 = vrot.slane %v1136, 1
      %v1138 = vmax.f32 %v1136, %v1137
      %v1139 = vsel %vm788, %v670, -inf
      %v1140 = vrot.slane %v1139, 4
      %v1141 = vmax.f32 %v1139, %v1140
      %v1142 = vrot.slane %v1141, 2
      %v1143 = vmax.f32 %v1141, %v1142
      %v1144 = vrot.slane %v1143, 1
      %v1145 = vmax.f32 %v1143, %v1144
      %v1146 = vsel %vm788, %v672, -inf
      %v1147 = vrot.slane %v1146, 4
      %v1148 = vmax.f32 %v1146, %v1147
      %v1149 = vrot.slane %v1148, 2
      %v1150 = vmax.f32 %v1148, %v1149
      %v1151 = vrot.slane %v1150, 1
      %v1152 = vmax.f32 %v1150, %v1151
      %v1153 = vsel %vm788, %v680, -inf
      %v1154 = vrot.slane %v1153, 4
      %v1155 = vmax.f32 %v1153, %v1154
      %v1156 = vrot.slane %v1155, 2
      %v1157 = vmax.f32 %v1155, %v1156
      %v1158 = vrot.slane %v1157, 1
      %v1159 = vmax.f32 %v1157, %v1158
      %v1160 = vsel %vm788, %v688, -inf
      %v1161 = vrot.slane %v1160, 4
      %v1162 = vmax.f32 %v1160, %v1161
      %v1163 = vrot.slane %v1162, 2
      %v1164 = vmax.f32 %v1162, %v1163
      %v1165 = vrot.slane %v1164, 1
      %v1166 = vmax.f32 %v1164, %v1165
      %v1167 = vsel %vm788, %v687, -inf
      %v1168 = vrot.slane %v1167, 4
      %v1169 = vmax.f32 %v1167, %v1168
      %v1170 = vrot.slane %v1169, 2
      %v1171 = vmax.f32 %v1169, %v1170
      %v1172 = vrot.slane %v1171, 1
      %v1173 = vmax.f32 %v1171, %v1172
      %v1174 = vsel %vm788, %v689, -inf
      %v1175 = vrot.slane %v1174, 4
      %v1176 = vmax.f32 %v1174, %v1175
      %v1177 = vrot.slane %v1176, 2
      %v1178 = vmax.f32 %v1176, %v1177
      %v1179 = vrot.slane %v1178, 1
      %v1180 = vmax.f32 %v1178, %v1179
      %v1181 = vsel %vm788, %v697, -inf
      %v1182 = vrot.slane %v1181, 4
      %v1183 = vmax.f32 %v1181, %v1182
      %v1184 = vrot.slane %v1183, 2
      %v1185 = vmax.f32 %v1183, %v1184
      %v1186 = vrot.slane %v1185, 1
      %v1187 = vmax.f32 %v1185, %v1186
      %v1188 = vsel %vm788, %v705, -inf
      %v1189 = vrot.slane %v1188, 4
      %v1190 = vmax.f32 %v1188, %v1189
      %v1191 = vrot.slane %v1190, 2
      %v1192 = vmax.f32 %v1190, %v1191
      %v1193 = vrot.slane %v1192, 1
      %v1194 = vmax.f32 %v1192, %v1193
      %v1195 = vsel %vm788, %v704, -inf
      %v1196 = vrot.slane %v1195, 4
      %v1197 = vmax.f32 %v1195, %v1196
      %v1198 = vrot.slane %v1197, 2
      %v1199 = vmax.f32 %v1197, %v1198
      %v1200 = vrot.slane %v1199, 1
      %v1201 = vmax.f32 %v1199, %v1200
      %v1202 = vsel %vm788, %v706, -inf
      %v1203 = vrot.slane %v1202, 4
      %v1204 = vmax.f32 %v1202, %v1203
      %v1205 = vrot.slane %v1204, 2
      %v1206 = vmax.f32 %v1204, %v1205
      %v1207 = vrot.slane %v1206, 1
      %v1208 = vmax.f32 %v1206, %v1207
      %v1209 = vsel %vm788, %v714, -inf
      %v1210 = vrot.slane %v1209, 4
      %v1211 = vmax.f32 %v1209, %v1210
      %v1212 = vrot.slane %v1211, 2
      %v1213 = vmax.f32 %v1211, %v1212
      %v1214 = vrot.slane %v1213, 1
      %v1215 = vmax.f32 %v1213, %v1214
      %v1216 = vsel %vm788, %v722, -inf
      %v1217 = vrot.slane %v1216, 4
      %v1218 = vmax.f32 %v1216, %v1217
      %v1219 = vrot.slane %v1218, 2
      %v1220 = vmax.f32 %v1218, %v1219
      %v1221 = vrot.slane %v1220, 1
      %v1222 = vmax.f32 %v1220, %v1221
      %v1223 = vsel %vm788, %v721, -inf
      %v1224 = vrot.slane %v1223, 4
      %v1225 = vmax.f32 %v1223, %v1224
      %v1226 = vrot.slane %v1225, 2
      %v1227 = vmax.f32 %v1225, %v1226
      %v1228 = vrot.slane %v1227, 1
      %v1229 = vmax.f32 %v1227, %v1228
      %v1230 = vsel %vm788, %v723, -inf
      %v1231 = vrot.slane %v1230, 4
      %v1232 = vmax.f32 %v1230, %v1231
      %v1233 = vrot.slane %v1232, 2
      %v1234 = vmax.f32 %v1232, %v1233
      %v1235 = vrot.slane %v1234, 1
      %v1236 = vmax.f32 %v1234, %v1235
      %vm1301 = vcmask 1041409
      %v1302 = vsel %vm1301, %v802, %v795
      %vm1303 = vcmask 1042434
      %v1304 = vsel %vm1303, %v809, %v1302
      %vm1305 = vcmask 1043459
      %v1306 = vsel %vm1305, %v816, %v1304
      %vm1307 = vcmask 1044484
      %v1308 = vsel %vm1307, %v823, %v1306
      %vm1309 = vcmask 1045509
      %v1310 = vsel %vm1309, %v830, %v1308
      %vm1311 = vcmask 1046534
      %v1312 = vsel %vm1311, %v837, %v1310
      %vm1313 = vcmask 1047559
      %v1314 = vsel %vm1313, %v844, %v1312
      %v1315 = vsel %vm1301, %v858, %v851
      %v1316 = vsel %vm1303, %v865, %v1315
      %v1317 = vsel %vm1305, %v872, %v1316
      %v1318 = vsel %vm1307, %v879, %v1317
      %v1319 = vsel %vm1309, %v886, %v1318
      %v1320 = vsel %vm1311, %v893, %v1319
      %v1321 = vsel %vm1313, %v900, %v1320
      %v1322 = vsel %vm1301, %v914, %v907
      %v1323 = vsel %vm1303, %v921, %v1322
      %v1324 = vsel %vm1305, %v928, %v1323
      %v1325 = vsel %vm1307, %v935, %v1324
      %v1326 = vsel %vm1309, %v942, %v1325
      %v1327 = vsel %vm1311, %v949, %v1326
      %v1328 = vsel %vm1313, %v956, %v1327
      %v1329 = vsel %vm1301, %v970, %v963
      %v1330 = vsel %vm1303, %v977, %v1329
      %v1331 = vsel %vm1305, %v984, %v1330
      %v1332 = vsel %vm1307, %v991, %v1331
      %v1333 = vsel %vm1309, %v998, %v1332
      %v1334 = vsel %vm1311, %v1005, %v1333
      %v1335 = vsel %vm1313, %v1012, %v1334
      %v1336 = vsel %vm1301, %v1026, %v1019
      %v1337 = vsel %vm1303, %v1033, %v1336
      %v1338 = vsel %vm1305, %v1040, %v1337
      %v1339 = vsel %vm1307, %v1047, %v1338
      %v1340 = vsel %vm1309, %v1054, %v1339
      %v1341 = vsel %vm1311, %v1061, %v1340
      %v1342 = vsel %vm1313, %v1068, %v1341
      %v1343 = vsel %vm1301, %v1082, %v1075
      %v1344 = vsel %vm1303, %v1089, %v1343
      %v1345 = vsel %vm1305, %v1096, %v1344
      %v1346 = vsel %vm1307, %v1103, %v1345
      %v1347 = vsel %vm1309, %v1110, %v1346
      %v1348 = vsel %vm1311, %v1117, %v1347
      %v1349 = vsel %vm1313, %v1124, %v1348
      %v1350 = vsel %vm1301, %v1138, %v1131
      %v1351 = vsel %vm1303, %v1145, %v1350
      %v1352 = vsel %vm1305, %v1152, %v1351
      %v1353 = vsel %vm1307, %v1159, %v1352
      %v1354 = vsel %vm1309, %v1166, %v1353
      %v1355 = vsel %vm1311, %v1173, %v1354
      %v1356 = vsel %vm1313, %v1180, %v1355
      %v1357 = vsel %vm1301, %v1194, %v1187
      %v1358 = vsel %vm1303, %v1201, %v1357
      %v1359 = vsel %vm1305, %v1208, %v1358
      %v1360 = vsel %vm1307, %v1215, %v1359
      %v1361 = vsel %vm1309, %v1222, %v1360
      %v1362 = vsel %vm1311, %v1229, %v1361
      %v1363 = vsel %vm1313, %v1236, %v1362
      %1372 = vst.msk [vmem:[%s211] sm:$0xff] %vm387, %v1314
      %1373 = vst.msk [vmem:[%s211 + $0x8] sm:$0xff] %vm387, %v1321
      %1374 = vst.msk [vmem:[%s211 + $0x10] sm:$0xff] %vm387, %v1328
      %1375 = vst.msk [vmem:[%s211 + $0x18] sm:$0xff] %vm387, %v1335
      %1376 = vst.msk [vmem:[%s211 + $0x20] sm:$0xff] %vm387, %v1342
      %1377 = vst.msk [vmem:[%s211 + $0x28] sm:$0xff] %vm387, %v1349
      %1378 = vst.msk [vmem:[%s211 + $0x30] sm:$0xff] %vm387, %v1356
      %1379 = vst.msk [vmem:[%s211 + $0x38] sm:$0xff] %vm387, %v1363
      %s1380 = smul.u32 8, %s19
      %p1381 = scmp.lt.s32.totalorder %s18, 1
      %s1382 = scalar_select %p1381, %s18, 1
      %p1383 = scmp.lt.s32.totalorder %s1380, 7
      %s1384 = scalar_select %p1383, %s1380, 7
      %s1385 = smul.addr %s1382, 8
      %s1386 = sadd.s32 %s1384, %s1385
      %s1387 = smul.addr %s1386, 8
      %s1388 = scalar_lea.vmem %s3, %s1387
      // Predicated region
      $region33: #{conv_block_2d.3} parent=31 // pred_check
        %p1389 = pneg %p116
      $region34: #{conv_block_2d.3} parent=31 // pred_check_branch
        %1391 = sbr.rel (%p1389) target = $region36
      $region35: #{conv_block_2d.3} parent=31 // pred_region
        %s1392 = smul.u32 8, %s19
      $region36: #{conv_block_2d.3} parent=31 // pred_fallthru
        _
    $region32: #{conv_block_2d.3} parent=5 // pred_fallthru
      _
    %p1393 = scmp.le.s32.totalorder 2, %s9
    // Predicated region
    $region37: #{conv_block_2d.3} parent=5 // pred_check
      %p1394 = pneg %p1393
    $region38: #{conv_block_2d.3} parent=5 // pred_check_branch
      %1396 = sbr.rel (%p1394) target = $region40
    $region39: #{conv_block_2d.3} parent=5 // pred_region
      %s1397 = ssub.s32 %s9, 2
      // Predicated region
      $region41: #{conv_block_2d.3} parent=39 // pred_check
        %p1398 = pneg %p122
      $region42: #{conv_block_2d.3} parent=39 // pred_check_branch
        %1400 = sbr.rel (%p1398) target = $region44
      $region43: #{conv_block_2d.3} parent=39 // pred_region
        %s1401 = smul.u32 8, %s21
        %p1402 = scmp.lt.s32.totalorder %s20, 1
        %s1403 = scalar_select %p1402, %s20, 1
        %p1404 = scmp.lt.s32.totalorder %s1401, 7
        %s1405 = scalar_select %p1404, %s1401, 7
        %s1406 = smul.addr %s1403, 8
        %s1407 = sadd.s32 %s1405, %s1406
        %s1408 = smul.addr %s1407, 8
        %s1409 = scalar_lea.vmem %s3, %s1408
      $region44: #{conv_block_2d.3} parent=39 // pred_fallthru
        _
    $region40: #{conv_block_2d.3} parent=5 // pred_fallthru
      _
  $region6: #{conv_block_2d.3} parent=0 // loop_footer
    %s13 = sadd.s32 1, %s9
  $region7: #{conv_block_2d.3} parent=0 // loop_footer_branch
    %8 = sbr.rel target = $region3
  $region8: #{conv_block_2d.3} parent=0 // loop_exit
    _

// kernel: conv_block_2d.2
$region0: #{conv_block_2d.2}
  #allocation0 [shape = 'u32[]', space=smem, size = 0x4, offset = 0x4, fixed_abs, tag = 'smem constant byte address 0x4 - core index']
  #allocation1 [shape = 'u32[144,128]{1,0:T(1,128)}', space=vmem, size = 0x12000, scoped, tag = 'internal scratch']
  #allocation2 [shape = 'bf16[16,16,36]{2,1,0:T(8,128)(2,1)}', space=vmem, size = 0x10000, scoped, tag = 'scratch operand']
  %s0 = inlined_call_operand.vmem [shape: bf16[2,18,18,4], index: 0, kind: input, shape index: {}]
  %s1 = inlined_call_operand.vmem [shape: bf16[36,128], index: 1, kind: input, shape index: {}]
  %s2 = inlined_call_operand.vmem [shape: bf16[2,16,16,8], index: 2, kind: output, shape index: {0}]
  %s3 = inlined_call_operand.vmem [shape: f32[2,1,2,8], index: 3, kind: output, shape index: {1}]
  %4 = xla_tuple %s2, %s3
  %s5 = sld [smem:[#allocation0]]
  $region49: #{conv_block_2d.2} parent=0
    _
  %s7 = ssub.s32 1, %s5
  %s8 = scalar_select 0, %s7, %s5
  loop: start=0, step=1, limit=4
  $region2: #{conv_block_2d.2} parent=0 // loop_pre_header
    _
  $region3: #{conv_block_2d.2} parent=0 // loop_header
    %s10 = sphi 0, %s14
    %p11 = scmp.ge.s32.totalorder %s10, 4
    %s17 = sphi 0, %s29
    %s18 = sphi 0, %s25
    %s19 = sphi 0, %s17
    %s20 = sphi 0, %s18
    %s21 = sphi 0, %s19
    %s22 = sphi 0, %s20
    %s32 = sphi 0, %s34
    %s35 = sphi 0, %s32
    %s36 = sphi 0, %s35
    %s52 = sphi 0, %s36
    %s56 = sphi 0, %s56
    %s58 = sphi 0, %s56
    %s59 = sphi 0, %s58
    %s73 = sphi 0, %s59
    %s81 = sphi 0, %s83
    %s84 = sphi 0, %s81
    %s85 = sphi 0, %s84
    %s101 = sphi 0, %s85
    %s109 = sphi 0, %s111
    %s112 = sphi 0, %s109
    %s113 = sphi 0, %s112
    %s129 = sphi 0, %s113
  $region4: #{conv_block_2d.2} parent=0 // loop_header_branch
    %13 = sbr.rel (%p11) target = $region8
  $region5: #{conv_block_2d.2} parent=0 // loop_body
    %s15 = ssub.s32 %s10, 1
    %s16 = ssub.s32 %s10, 2
    %s23 = sadd.s32 1, %s18
    %p24 = scmp.ge.s32.totalorder %s23, 1
    %s25 = scalar_select %p24, 0, %s23
    %s26 = sadd.s32 1, %s17
    %s27 = scalar_select %p24, %s26, %s17
    %p28 = scmp.ge.s32.totalorder %s27, 2
    %s29 = scalar_select %p28, 0, %s27
    %s30 = ssub.s32 %s17, %s29
    %p31 = scmp.eq.s32.totalorder %s30, 0
    %s33 = sadd.s32 %s32, 1
    %s34 = scalar_select %p31, %s32, %s33
    %p37 = pneg %p31
    %p38 = scmp.eq.s32.totalorder %s10, 1
    %p39 = por %p37, %p38
    %p40 = scmp.ne.s32.totalorder %s32, %s35
    %p41 = scmp.eq.s32.totalorder %s10, 0
    %p42 = por %p40, %p41
    %p43 = scmp.ne.s32.totalorder %s32, %s35
    %p44 = scmp.eq.s32.totalorder %s15, 1
    %p45 = por %p43, %p44
    %p46 = scmp.ne.s32.totalorder %s35, %s36
    %p47 = scmp.eq.s32.totalorder %s15, 0
    %p48 = por %p46, %p47
    %p49 = scmp.ne.s32.totalorder %s35, %s36
    %p50 = scmp.eq.s32.totalorder %s16, 1
    %p51 = por %p49, %p50
    %p53 = scmp.ne.s32.totalorder %s36, %s52
    %p54 = scmp.eq.s32.totalorder %s16, 0
    %p55 = por %p53, %p54
    %s57 = sadd.s32 %s56, 1
    %p60 = scmp.eq.s32.totalorder %s10, 1
    %p61 = scmp.ne.s32.totalorder %s56, %s58
    %p62 = scmp.eq.s32.totalorder %s10, 0
    %p63 = por %p61, %p62
    %p64 = scmp.ne.s32.totalorder %s56, %s58
    %p65 = scmp.eq.s32.totalorder %s15, 1
    %p66 = por %p64, %p65
    %p67 = scmp.ne.s32.totalorder %s58, %s59
    %p68 = scmp.eq.s32.totalorder %s15, 0
    %p69 = por %p67, %p68
    %p70 = scmp.ne.s32.totalorder %s58, %s59
    %p71 = scmp.eq.s32.totalorder %s16, 1
    %p72 = por %p70, %p71
    %p74 = scmp.ne.s32.totalorder %s59, %s73
    %p75 = scmp.eq.s32.totalorder %s16, 0
    %p76 = por %p74, %p75
    %s77 = ssub.s32 %s17, %s29
    %s78 = ssub.s32 %s18, %s25
    %s79 = sor.u32 %s77, %s78
    %p80 = scmp.eq.s32.totalorder %s79, 0
    %s82 = sadd.s32 %s81, 1
    %s83 = scalar_select %p80, %s81, %s82
    %p86 = pneg %p80
    %p87 = scmp.eq.s32.totalorder %s10, 1
    %p88 = por %p86, %p87
    %p89 = scmp.ne.s32.totalorder %s81, %s84
    %p90 = scmp.eq.s32.totalorder %s10, 0
    %p91 = por %p89, %p90
    %p92 = scmp.ne.s32.totalorder %s81, %s84
    %p93 = scmp.eq.s32.totalorder %s15, 1
    %p94 = por %p92, %p93
    %p95 = scmp.ne.s32.totalorder %s84, %s85
    %p96 = scmp.eq.s32.totalorder %s15, 0
    %p97 = por %p95, %p96
    %p98 = scmp.ne.s32.totalorder %s84, %s85
    %p99 = scmp.eq.s32.totalorder %s16, 1
    %p100 = por %p98, %p99
    %p102 = scmp.ne.s32.totalorder %s85, %s101
    %p103 = scmp.eq.s32.totalorder %s16, 0
    %p104 = por %p102, %p103
    %s105 = ssub.s32 %s17, %s29
    %s106 = ssub.s32 %s18, %s25
    %s107 = sor.u32 %s105, %s106
    %p108 = scmp.eq.s32.totalorder %s107, 0
    %s110 = sadd.s32 %s109, 1
    %s111 = scalar_select %p108, %s109, %s110
    %p114 = pneg %p108
    %p115 = scmp.eq.s32.totalorder %s10, 1
    %p116 = por %p114, %p115
    %p117 = scmp.ne.s32.totalorder %s109, %s112
    %p118 = scmp.eq.s32.totalorder %s10, 0
    %p119 = por %p117, %p118
    %p120 = scmp.ne.s32.totalorder %s109, %s112
    %p121 = scmp.eq.s32.totalorder %s15, 1
    %p122 = por %p120, %p121
    %p123 = scmp.ne.s32.totalorder %s112, %s113
    %p124 = scmp.eq.s32.totalorder %s15, 0
    %p125 = por %p123, %p124
    %p126 = scmp.ne.s32.totalorder %s112, %s113
    %p127 = scmp.eq.s32.totalorder %s16, 1
    %p128 = por %p126, %p127
    %p130 = scmp.ne.s32.totalorder %s113, %s129
    %p131 = scmp.eq.s32.totalorder %s16, 0
    %p132 = por %p130, %p131
    %p133 = scmp.le.s32.totalorder 1, %s10
    %p134 = scmp.lt.s32.totalorder %s10, 3
    %p135 = pnand %p133, %p134
    %p136 = pneg %p135
    // Predicated region
    $region9: #{conv_block_2d.2} parent=5 // pred_check
      _
    $region10: #{conv_block_2d.2} parent=5 // pred_check_branch
      %138 = sbr.rel (%p135) target = $region12
    $region11: #{conv_block_2d.2} parent=5 // pred_region
      %s139 = ssub.s32 %s10, 1
      // Predicated region
      $region13: #{conv_block_2d.2} parent=11 // pred_check
        %p140 = pneg %p69
      $region14: #{conv_block_2d.2} parent=11 // pred_check_branch
        %142 = sbr.rel (%p140) target = $region16
      $region15: #{conv_block_2d.2} parent=11 // pred_region
        _
      $region16: #{conv_block_2d.2} parent=11 // pred_fallthru
        _
    $region12: #{conv_block_2d.2} parent=5 // pred_fallthru
      _
    %p143 = scmp.lt.s32.totalorder %s10, 2
    // Predicated region
    $region17: #{conv_block_2d.2} parent=5 // pred_check
      %p144 = pneg %p143
    $region18: #{conv_block_2d.2} parent=5 // pred_check_branch
      %146 = sbr.rel (%p144) target = $region20
    $region19: #{conv_block_2d.2} parent=5 // pred_region
      // Predicated region
      $region21: #{conv_block_2d.2} parent=19 // pred_check
        %p147 = pneg %p42
      $region22: #{conv_block_2d.2} parent=19 // pred_check_branch
        %149 = sbr.rel (%p147) target = $region24
      $region23: #{conv_block_2d.2} parent=19 // pred_region
        %p150 = scmp.lt.s32.totalorder %s17, 1
        %s151 = scalar_select %p150, %s17, 1
        %s152 = smul.addr %s151, 54
        %s153 = smul.addr %s152, 4
        %s154 = scalar_lea.vmem %s0, %s153
      $region24: #{conv_block_2d.2} parent=19 // pred_fallthru
        _
    $region20: #{conv_block_2d.2} parent=5 // pred_fallthru
      _
    %p155 = scmp.le.s32.totalorder 1, %s10
    %p156 = scmp.lt.s32.totalorder %s10, 3
    %p157 = pnand %p155, %p156
    %p158 = pneg %p157
    // Predicated region
    $region25: #{conv_block_2d.2} parent=5 // pred_check
      _
    $region26: #{conv_block_2d.2} parent=5 // pred_check_branch
      %160 = sbr.rel (%p157) target = $region28
    $region27: #{conv_block_2d.2} parent=5 // pred_region
      %s161 = ssub.s32 %s10, 1
      %p162 = scmp.lt.s32.totalorder %s19, 1
      %s163 = scalar_select %p162, %s19, 1
      %s164 = smul.addr %s163, 54
      %s165 = smul.addr %s164, 4
      %s166 = scalar_lea.vmem %s0, %s165
      %p167 = pneg %p48
      %p168 = pneg %p45
      %p169 = pneg %p69
      %p170 = pneg %p66
      %p171 = pneg %p97
      %p172 = pneg %p94
      %s173 = smul.u32 16, %s20
      %p174 = scmp.lt.s32.totalorder %s19, 1
      %s175 = scalar_select %p174, %s19, 1
      %p176 = scmp.lt.s32.totalorder %s173, 15
      %s177 = scalar_select %p176, %s173, 15
      %s178 = smul.addr %s177, 2
      %s179 = smul.addr %s175, 32
      %s180 = sadd.s32 %s178, %s179
      %s181 = smul.addr %s180, 4
      %s182 = scalar_lea.vmem %s2, %s181
      %p183 = pneg %p125
      %p184 = pneg %p122
      %p185 = scmp.lt.s32.totalorder %s19, 1
      %s186 = scalar_select %p185, %s19, 1
      %p187 = scmp.lt.s32.totalorder %s20, 0
      %s188 = scalar_select %p187, %s20, 0
      %s189 = sadd.s32 %s188, %s186
      %s190 = smul.addr %s189, 2
      %s191 = scalar_lea.vmem %s3, %s190
      %p192 = scmp.lt.s32.totalorder %s19, 1
      %s193 = scalar_select %p192, %s19, 1
      %s194 = smul.addr %s193, 54
      %s195 = smul.addr %s194, 4
      %s196 = scalar_lea.vmem %s0, %s195
      %s197 = smul.u32 16, %s20
      %p198 = scmp.lt.s32.totalorder %s19, 1
      %s199 = scalar_select %p198, %s19, 1
      %p200 = scmp.lt.s32.totalorder %s197, 15
      %s201 = scalar_select %p200, %s197, 15
      %s202 = smul.addr %s201, 2
      %s203 = smul.addr %s199, 32
      %s204 = sadd.s32 %s202, %s203
      %s205 = smul.addr %s204, 4
      %s206 = scalar_lea.vmem %s2, %s205
      %s207 = smul.u32 16, %s20
      %p208 = scmp.lt.s32.totalorder %s19, 1
      %s209 = scalar_select %p208, %s19, 1
      %p210 = scmp.lt.s32.totalorder %s20, 0
      %s211 = scalar_select %p210, %s20, 0
      %s212 = sadd.s32 %s211, %s209
      %s213 = smul.addr %s212, 2
      %s214 = scalar_lea.vmem %s3, %s213
      %s216 = smul.u32 %s20, 16
      %s217 = smul.u32 %s216, 3
      %s218 = smul.addr %s217, 4
      %s219 = scalar_lea.vmem %s196, %s218
      %v220 = vld [vmem:[%s219] sm:$0xf]
      %v221 = vld [vmem:[%s219 + $0x4] sm:$0xf]
      %v222 = vld [vmem:[%s219 + $0xc] sm:$0xf]
      %v223 = vld [vmem:[%s219 + $0x10] sm:$0xf]
      %v224 = vld [vmem:[%s219 + $0x18] sm:$0xf]
      %v225 = vld [vmem:[%s219 + $0x1c] sm:$0xf]
      %v226 = vld [vmem:[%s219 + $0x24] sm:$0xf]
      %v227 = vld [vmem:[%s219 + $0x28] sm:$0xf]
      %v228 = vld [vmem:[%s219 + $0x30] sm:$0xf]
      %v229 = vld [vmem:[%s219 + $0x34] sm:$0xf]
      %v230 = vld [vmem:[%s219 + $0x3c] sm:$0xf]
      %v231 = vld [vmem:[%s219 + $0x40] sm:$0xf]
      %v232 = vld [vmem:[%s219 + $0x48] sm:$0xf]
      %v233 = vld [vmem:[%s219 + $0x4c] sm:$0xf]
      %v234 = vld [vmem:[%s219 + $0x54] sm:$0xf]
      %v235 = vld [vmem:[%s219 + $0x58] sm:$0xf]
      %v236 = vld [vmem:[%s219 + $0x60] sm:$0xf]
      %v237 = vld [vmem:[%s219 + $0x64] sm:$0xf]
      %v238 = vld [vmem:[%s219 + $0x6c] sm:$0xf]
      %v239 = vld [vmem:[%s219 + $0x70] sm:$0xf]
      %v240 = vld [vmem:[%s219 + $0x78] sm:$0xf]
      %v241 = vld [vmem:[%s219 + $0x7c] sm:$0xf]
      %v242 = vld [vmem:[%s219 + $0x84] sm:$0xf]
      %v243 = vld [vmem:[%s219 + $0x88] sm:$0xf]
      %v244 = vld [vmem:[%s219 + $0x90] sm:$0xf]
      %v245 = vld [vmem:[%s219 + $0x94] sm:$0xf]
      %v246 = vld [vmem:[%s219 + $0x9c] sm:$0xf]
      %v247 = vld [vmem:[%s219 + $0xa0] sm:$0xf]
      %v248 = vld [vmem:[%s219 + $0xa8] sm:$0xf]
      %v249 = vld [vmem:[%s219 + $0xac] sm:$0xf]
      %v250 = vld [vmem:[%s219 + $0xb4] sm:$0xf]
      %v251 = vld [vmem:[%s219 + $0xb8] sm:$0xf]
      %vm252 = vcmask 27648
      %253 = vst.msk [vmem:[#allocation2] sm:$0xf] %vm252, %v220
      %254 = vst.msk [vmem:[#allocation2 + $0x4] sm:$0xf] %vm252, %v221
      %255 = vst.msk [vmem:[#allocation2 + $0x8] sm:$0xf] %vm252, %v222
      %256 = vst.msk [vmem:[#allocation2 + $0xc] sm:$0xf] %vm252, %v223
      %257 = vst.msk [vmem:[#allocation2 + $0x10] sm:$0xf] %vm252, %v224
      %258 = vst.msk [vmem:[#allocation2 + $0x14] sm:$0xf] %vm252, %v225
      %259 = vst.msk [vmem:[#allocation2 + $0x18] sm:$0xf] %vm252, %v226
      %260 = vst.msk [vmem:[#allocation2 + $0x1c] sm:$0xf] %vm252, %v227
      %261 = vst.msk [vmem:[#allocation2 + $0x20] sm:$0xf] %vm252, %v228
      %262 = vst.msk [vmem:[#allocation2 + $0x24] sm:$0xf] %vm252, %v229
      %263 = vst.msk [vmem:[#allocation2 + $0x28] sm:$0xf] %vm252, %v230
      %264 = vst.msk [vmem:[#allocation2 + $0x2c] sm:$0xf] %vm252, %v231
      %265 = vst.msk [vmem:[#allocation2 + $0x30] sm:$0xf] %vm252, %v232
      %266 = vst.msk [vmem:[#allocation2 + $0x34] sm:$0xf] %vm252, %v233
      %267 = vst.msk [vmem:[#allocation2 + $0x38] sm:$0xf] %vm252, %v234
      %268 = vst.msk [vmem:[#allocation2 + $0x3c] sm:$0xf] %vm252, %v235
      %269 = vst.msk [vmem:[#allocation2 + $0x40] sm:$0xf] %vm252, %v236
      %270 = vst.msk [vmem:[#allocation2 + $0x44] sm:$0xf] %vm252, %v237
      %271 = vst.msk [vmem:[#allocation2 + $0x48] sm:$0xf] %vm252, %v238
      %272 = vst.msk [vmem:[#allocation2 + $0x4c] sm:$0xf] %vm252, %v239
      %273 = vst.msk [vmem:[#allocation2 + $0x50] sm:$0xf] %vm252, %v240
      %274 = vst.msk [vmem:[#allocation2 + $0x54] sm:$0xf] %vm252, %v241
      %275 = vst.msk [vmem:[#allocation2 + $0x58] sm:$0xf] %vm252, %v242
      %276 = vst.msk [vmem:[#allocation2 + $0x5c] sm:$0xf] %vm252, %v243
      %277 = vst.msk [vmem:[#allocation2 + $0x60] sm:$0xf] %vm252, %v244
      %278 = vst.msk [vmem:[#allocation2 + $0x64] sm:$0xf] %vm252, %v245
      %279 = vst.msk [vmem:[#allocation2 + $0x68] sm:$0xf] %vm252, %v246
      %280 = vst.msk [vmem:[#allocation2 + $0x6c] sm:$0xf] %vm252, %v247
      %281 = vst.msk [vmem:[#allocation2 + $0x70] sm:$0xf] %vm252, %v248
      %282 = vst.msk [vmem:[#allocation2 + $0x74] sm:$0xf] %vm252, %v249
      %283 = vst.msk [vmem:[#allocation2 + $0x78] sm:$0xf] %vm252, %v250
      %284 = vst.msk [vmem:[#allocation2 + $0x7c] sm:$0xf] %vm252, %v251
      %v285 = vld [vmem:[%s219] sm:$0xf]
      %v286 = vld [vmem:[%s219 + $0x4] sm:$0xf]
      %v287 = vld [vmem:[%s219 + $0x8] sm:$0x1]
      %v288 = vld [vmem:[%s219 + $0xc] sm:$0xf]
      %v289 = vld [vmem:[%s219 + $0x10] sm:$0xf]
      %v290 = vld [vmem:[%s219 + $0x14] sm:$0x1]
      %v291 = vld [vmem:[%s219 + $0x18] sm:$0xf]
      %v292 = vld [vmem:[%s219 + $0x1c] sm:$0xf]
      %v293 = vld [vmem:[%s219 + $0x20] sm:$0x1]
      %v294 = vld [vmem:[%s219 + $0x24] sm:$0xf]
      %v295 = vld [vmem:[%s219 + $0x28] sm:$0xf]
      %v296 = vld [vmem:[%s219 + $0x2c] sm:$0x1]
      %v297 = vld [vmem:[%s219 + $0x30] sm:$0xf]
      %v298 = vld [vmem:[%s219 + $0x34] sm:$0xf]
      %v299 = vld [vmem:[%s219 + $0x38] sm:$0x1]
      %v300 = vld [vmem:[%s219 + $0x3c] sm:$0xf]
      %v301 = vld [vmem:[%s219 + $0x40] sm:$0xf]
      %v302 = vld [vmem:[%s219 + $0x44] sm:$0x1]
      %v303 = vld [vmem:[%s219 + $0x48] sm:$0xf]
      %v304 = vld [vmem:[%s219 + $0x4c] sm:$0xf]
      %v305 = vld [vmem:[%s219 + $0x50] sm:$0x1]
      %v306 = vld [vmem:[%s219 + $0x54] sm:$0xf]
      %v307 = vld [vmem:[%s219 + $0x58] sm:$0xf]
      %v308 = vld [vmem:[%s219 + $0x5c] sm:$0x1]
      %v309 = vld [vmem:[%s219 + $0x60] sm:$0xf]
      %v310 = vld [vmem:[%s219 + $0x64] sm:$0xf]
      %v311 = vld [vmem:[%s219 + $0x68] sm:$0x1]
      %v312 = vld [vmem:[%s219 + $0x6c] sm:$0xf]
      %v313 = vld [vmem:[%s219 + $0x70] sm:$0xf]
      %v314 = vld [vmem:[%s219 + $0x74] sm:$0x1]
      %v315 = vld [vmem:[%s219 + $0x78] sm:$0xf]
      %v316 = vld [vmem:[%s219 + $0x7c] sm:$0xf]
      %v317 = vld [vmem:[%s219 + $0x80] sm:$0x1]
      %v318 = vld [vmem:[%s219 + $0x84] sm:$0xf]
      %v319 = vld [vmem:[%s219 + $0x88] sm:$0xf]
      %v320 = vld [vmem:[%s219 + $0x8c] sm:$0x1]
      %v321 = vld [vmem:[%s219 + $0x90] sm:$0xf]
      %v322 = vld [vmem:[%s219 + $0x94] sm:$0xf]
      %v323 = vld [vmem:[%s219 + $0x98] sm:$0x1]
      %v324 = vld [vmem:[%s219 + $0x9c] sm:$0xf]
      %v325 = vld [vmem:[%s219 + $0xa0] sm:$0xf]
      %v326 = vld [vmem:[%s219 + $0xa4] sm:$0x1]
      %v327 = vld [vmem:[%s219 + $0xa8] sm:$0xf]
      %v328 = vld [vmem:[%s219 + $0xac] sm:$0xf]
      %v329 = vld [vmem:[%s219 + $0xb0] sm:$0x1]
      %v330 = vld [vmem:[%s219 + $0xb4] sm:$0xf]
      %v331 = vld [vmem:[%s219 + $0xb8] sm:$0xf]
      %v332 = vld [vmem:[%s219 + $0xbc] sm:$0x1]
      %vm333 = vsmask.f32 3328
      %vm334 = vsmask.f32 7440
      %vm335 = vmor %vm333, %vm334
      %v337 = vshrl.u32 %v285, 16
      %v339 = vrot.slane %v337, 4
      %v340 = vshll.u32 %v285, 16
      %v342 = vrot.slane %v340, 5
      %v343 = vor.u32 %v339, %v342
      %v344 = vrot.slane %v343, 4
      %v346 = vshll.u32 %v286, 16
      %v348 = vrot.slane %v346, 5
      %v349 = vsel %vm335, %v344, %v348
      %v350 = vshrl.u32 %v286, 16
      %v352 = vrot.slane %v350, 4
      %v353 = vor.u32 %v352, %v348
      %v354 = vrot.slane %v353, 4
      %v356 = vshll.u32 %v287, 16
      %v358 = vrot.slane %v356, 5
      %v359 = vsel %vm335, %v354, %v358
      %v361 = vshrl.u32 %v288, 16
      %v363 = vrot.slane %v361, 4
      %v364 = vshll.u32 %v288, 16
      %v366 = vrot.slane %v364, 5
      %v367 = vor.u32 %v363, %v366
      %v368 = vrot.slane %v367, 4
      %v370 = vshll.u32 %v289, 16
      %v372 = vrot.slane %v370, 5
      %v373 = vsel %vm335, %v368, %v372
      %v374 = vshrl.u32 %v289, 16
      %v376 = vrot.slane %v374, 4
      %v377 = vor.u32 %v376, %v372
      %v378 = vrot.slane %v377, 4
      %v380 = vshll.u32 %v290, 16
      %v382 = vrot.slane %v380, 5
      %v383 = vsel %vm335, %v378, %v382
      %v385 = vshrl.u32 %v291, 16
      %v387 = vrot.slane %v385, 4
      %v388 = vshll.u32 %v291, 16
      %v390 = vrot.slane %v388, 5
      %v391 = vor.u32 %v387, %v390
      %v392 = vrot.slane %v391, 4
      %v394 = vshll.u32 %v292, 16
      %v396 = vrot.slane %v394, 5
      %v397 = vsel %vm335, %v392, %v396
      %v398 = vshrl.u32 %v292, 16
      %v400 = vrot.slane %v398, 4
      %v401 = vor.u32 %v400, %v396
      %v402 = vrot.slane %v401, 4
      %v404 = vshll.u32 %v293, 16
      %v406 = vrot.slane %v404, 5
      %v407 = vsel %vm335, %v402, %v406
      %v409 = vshrl.u32 %v294, 16
      %v411 = vrot.slane %v409, 4
      %v412 = vshll.u32 %v294, 16
      %v414 = vrot.slane %v412, 5
      %v415 = vor.u32 %v411, %v414
      %v416 = vrot.slane %v415, 4
      %v418 = vshll.u32 %v295, 16
      %v420 = vrot.slane %v418, 5
      %v421 = vsel %vm335, %v416, %v420
      %v422 = vshrl.u32 %v295, 16
      %v424 = vrot.slane %v422, 4
      %v425 = vor.u32 %v424, %v420
      %v426 = vrot.slane %v425, 4
      %v428 = vshll.u32 %v296, 16
      %v430 = vrot.slane %v428, 5
      %v431 = vsel %vm335, %v426, %v430
      %v433 = vshrl.u32 %v297, 16
      %v435 = vrot.slane %v433, 4
      %v436 = vshll.u32 %v297, 16
      %v438 = vrot.slane %v436, 5
      %v439 = vor.u32 %v435, %v438
      %v440 = vrot.slane %v439, 4
      %v442 = vshll.u32 %v298, 16
      %v444 = vrot.slane %v442, 5
      %v445 = vsel %vm335, %v440, %v444
      %v446 = vshrl.u32 %v298, 16
      %v448 = vrot.slane %v446, 4
      %v449 = vor.u32 %v448, %v444
      %v450 = vrot.slane %v449, 4
      %v452 = vshll.u32 %v299, 16
      %v454 = vrot.slane %v452, 5
      %v455 = vsel %vm335, %v450, %v454
      %v457 = vshrl.u32 %v300, 16
      %v459 = vrot.slane %v457, 4
      %v460 = vshll.u32 %v300, 16
      %v462 = vrot.slane %v460, 5
      %v463 = vor.u32 %v459, %v462
      %v464 = vrot.slane %v463, 4
      %v466 = vshll.u32 %v301, 16
      %v468 = vrot.slane %v466, 5
      %v469 = vsel %vm335, %v464, %v468
      %v470 = vshrl.u32 %v301, 16
      %v472 = vrot.slane %v470, 4
      %v473 = vor.u32 %v472, %v468
      %v474 = vrot.slane %v473, 4
      %v476 = vshll.u32 %v302, 16
      %v478 = vrot.slane %v476, 5
      %v479 = vsel %vm335, %v474, %v478
      %v481 = vshrl.u32 %v303, 16
      %v483 = vrot.slane %v481, 4
      %v484 = vshll.u32 %v303, 16
      %v486 = vrot.slane %v484, 5
      %v487 = vor.u32 %v483, %v486
      %v488 = vrot.slane %v487, 4
      %v490 = vshll.u32 %v304, 16
      %v492 = vrot.slane %v490, 5
      %v493 = vsel %vm335, %v488, %v492
      %v494 = vshrl.u32 %v304, 16
      %v496 = vrot.slane %v494, 4
      %v497 = vor.u32 %v496, %v492
      %v498 = vrot.slane %v497, 4
      %v500 = vshll.u32 %v305, 16
      %v502 = vrot.slane %v500, 5
      %v503 = vsel %vm335, %v498, %v502
      %v505 = vshrl.u32 %v306, 16
      %v507 = vrot.slane %v505, 4
      %v508 = vshll.u32 %v306, 16
      %v510 = vrot.slane %v508, 5
      %v511 = vor.u32 %v507, %v510
      %v512 = vrot.slane %v511, 4
      %v514 = vshll.u32 %v307, 16
      %v516 = vrot.slane %v514, 5
      %v517 = vsel %vm335, %v512, %v516
      %v518 = vshrl.u32 %v307, 16
      %v520 = vrot.slane %v518, 4
      %v521 = vor.u32 %v520, %v516
      %v522 = vrot.slane %v521, 4
      %v524 = vshll.u32 %v308, 16
      %v526 = vrot.slane %v524, 5
      %v527 = vsel %vm335, %v522, %v526
      %v529 = vshrl.u32 %v309, 16
      %v531 = vrot.slane %v529, 4
      %v532 = vshll.u32 %v309, 16
      %v534 = vrot.slane %v532, 5
      %v535 = vor.u32 %v531, %v534
      %v536 = vrot.slane %v535, 4
      %v538 = vshll.u32 %v310, 16
      %v540 = vrot.slane %v538, 5
      %v541 = vsel %vm335, %v536, %v540
      %v542 = vshrl.u32 %v310, 16
      %v544 = vrot.slane %v542, 4
      %v545 = vor.u32 %v544, %v540
      %v546 = vrot.slane %v545, 4
      %v548 = vshll.u32 %v311, 16
      %v550 = vrot.slane %v548, 5
      %v551 = vsel %vm335, %v546, %v550
      %v553 = vshrl.u32 %v312, 16
      %v555 = vrot.slane %v553, 4
      %v556 = vshll.u32 %v312, 16
      %v558 = vrot.slane %v556, 5
      %v559 = vor.u32 %v555, %v558
      %v560 = vrot.slane %v559, 4
      %v562 = vshll.u32 %v313, 16
      %v564 = vrot.slane %v562, 5
      %v565 = vsel %vm335, %v560, %v564
      %v566 = vshrl.u32 %v313, 16
      %v568 = vrot.slane %v566, 4
      %v569 = vor.u32 %v568, %v564
      %v570 = vrot.slane %v569, 4
      %v572 = vshll.u32 %v314, 16
      %v574 = vrot.slane %v572, 5
      %v575 = vsel %vm335, %v570, %v574
      %v577 = vshrl.u32 %v315, 16
      %v579 = vrot.slane %v577, 4
      %v580 = vshll.u32 %v315, 16
      %v582 = vrot.slane %v580, 5
      %v583 = vor.u32 %v579, %v582
      %v584 = vrot.slane %v583, 4
      %v586 = vshll.u32 %v316, 16
      %v588 = vrot.slane %v586, 5
      %v589 = vsel %vm335, %v584, %v588
      %v590 = vshrl.u32 %v316, 16
      %v592 = vrot.slane %v590, 4
      %v593 = vor.u32 %v592, %v588
      %v594 = vrot.slane %v593, 4
      %v596 = vshll.u32 %v317, 16
      %v598 = vrot.slane %v596, 5
      %v599 = vsel %vm335, %v594, %v598
      %v601 = vshrl.u32 %v318, 16
      %v603 = vrot.slane %v601, 4
      %v604 = vshll.u32 %v318, 16
      %v606 = vrot.slane %v604, 5
      %v607 = vor.u32 %v603, %v606
      %v608 = vrot.slane %v607, 4
      %v610 = vshll.u32 %v319, 16
      %v612 = vrot.slane %v610, 5
      %v613 = vsel %vm335, %v608, %v612
      %v614 = vshrl.u32 %v319, 16
      %v616 = vrot.slane %v614, 4
      %v617 = vor.u32 %v616, %v612
      %v618 = vrot.slane %v617, 4
      %v620 = vshll.u32 %v320, 16
      %v622 = vrot.slane %v620, 5
      %v623 = vsel %vm335, %v618, %v622
      %v625 = vshrl.u32 %v321, 16
      %v627 = vrot.slane %v625, 4
      %v628 = vshll.u32 %v321, 16
      %v630 = vrot.slane %v628, 5
      %v631 = vor.u32 %v627, %v630
      %v632 = vrot.slane %v631, 4
      %v634 = vshll.u32 %v322, 16
      %v636 = vrot.slane %v634, 5
      %v637 = vsel %vm335, %v632, %v636
      %v638 = vshrl.u32 %v322, 16
      %v640 = vrot.slane %v638, 4
      %v641 = vor.u32 %v640, %v636
      %v642 = vrot.slane %v641, 4
      %v644 = vshll.u32 %v323, 16
      %v646 = vrot.slane %v644, 5
      %v647 = vsel %vm335, %v642, %v646
      %v649 = vshrl.u32 %v324, 16
      %v651 = vrot.slane %v649, 4
      %v652 = vshll.u32 %v324, 16
      %v654 = vrot.slane %v652, 5
      %v655 = vor.u32 %v651, %v654
      %v656 = vrot.slane %v655, 4
      %v658 = vshll.u32 %v325, 16
      %v660 = vrot.slane %v658, 5
      %v661 = vsel %vm335, %v656, %v660
      %v662 = vshrl.u32 %v325, 16
      %v664 = vrot.slane %v662, 4
      %v665 = vor.u32 %v664, %v660
      %v666 = vrot.slane %v665, 4
      %v668 = vshll.u32 %v326, 16
      %v670 = vrot.slane %v668, 5
      %v671 = vsel %vm335, %v666, %v670
      %v673 = vshrl.u32 %v327, 16
      %v675 = vrot.slane %v673, 4
      %v676 = vshll.u32 %v327, 16
      %v678 = vrot.slane %v676, 5
      %v679 = vor.u32 %v675, %v678
      %v680 = vrot.slane %v679, 4
      %v682 = vshll.u32 %v328, 16
      %v684 = vrot.slane %v682, 5
      %v685 = vsel %vm335, %v680, %v684
      %v686 = vshrl.u32 %v328, 16
      %v688 = vrot.slane %v686, 4
      %v689 = vor.u32 %v688, %v684
      %v690 = vrot.slane %v689, 4
      %v692 = vshll.u32 %v329, 16
      %v694 = vrot.slane %v692, 5
      %v695 = vsel %vm335, %v690, %v694
      %v697 = vshrl.u32 %v330, 16
      %v699 = vrot.slane %v697, 4
      %v700 = vshll.u32 %v330, 16
      %v702 = vrot.slane %v700, 5
      %v703 = vor.u32 %v699, %v702
      %v704 = vrot.slane %v703, 4
      %v706 = vshll.u32 %v331, 16
      %v708 = vrot.slane %v706, 5
      %v709 = vsel %vm335, %v704, %v708
      %v710 = vshrl.u32 %v331, 16
      %v712 = vrot.slane %v710, 4
      %v713 = vor.u32 %v712, %v708
      %v714 = vrot.slane %v713, 4
      %v716 = vshll.u32 %v332, 16
      %v718 = vrot.slane %v716, 5
      %v719 = vsel %vm335, %v714, %v718
      %720 = vrot.lane.b32.xlu0 %v349, 4
      %v721 = vpop.permute.xlu0 %720
      %722 = vrot.lane.b32.xlu0 %v359, 4
      %v723 = vpop.permute.xlu0 %722
      %724 = vrot.lane.b32.xlu0 %v373, 4
      %v725 = vpop.permute.xlu0 %724
      %726 = vrot.lane.b32.xlu0 %v383, 4
      %v727 = vpop.permute.xlu0 %726
      %728 = vrot.lane.b32.xlu0 %v397, 4
      %v729 = vpop.permute.xlu0 %728
      %730 = vrot.lane.b32.xlu0 %v407, 4
      %v731 = vpop.permute.xlu0 %730
      %732 = vrot.lane.b32.xlu0 %v421, 4
      %v733 = vpop.permute.xlu0 %732
      %734 = vrot.lane.b32.xlu0 %v431, 4
      %v735 = vpop.permute.xlu0 %734
      %736 = vrot.lane.b32.xlu0 %v445, 4
      %v737 = vpop.permute.xlu0 %736
      %738 = vrot.lane.b32.xlu0 %v455, 4
      %v739 = vpop.permute.xlu0 %738
      %740 = vrot.lane.b32.xlu0 %v469, 4
      %v741 = vpop.permute.xlu0 %740
      %742 = vrot.lane.b32.xlu0 %v479, 4
      %v743 = vpop.permute.xlu0 %742
      %744 = vrot.lane.b32.xlu0 %v493, 4
      %v745 = vpop.permute.xlu0 %744
      %746 = vrot.lane.b32.xlu0 %v503, 4
      %v747 = vpop.permute.xlu0 %746
      %748 = vrot.lane.b32.xlu0 %v517, 4
      %v749 = vpop.permute.xlu0 %748
      %750 = vrot.lane.b32.xlu0 %v527, 4
      %v751 = vpop.permute.xlu0 %750
      %752 = vrot.lane.b32.xlu0 %v541, 4
      %v753 = vpop.permute.xlu0 %752
      %754 = vrot.lane.b32.xlu0 %v551, 4
      %v755 = vpop.permute.xlu0 %754
      %756 = vrot.lane.b32.xlu0 %v565, 4
      %v757 = vpop.permute.xlu0 %756
      %758 = vrot.lane.b32.xlu0 %v575, 4
      %v759 = vpop.permute.xlu0 %758
      %760 = vrot.lane.b32.xlu0 %v589, 4
      %v761 = vpop.permute.xlu0 %760
      %762 = vrot.lane.b32.xlu0 %v599, 4
      %v763 = vpop.permute.xlu0 %762
      %764 = vrot.lane.b32.xlu0 %v613, 4
      %v765 = vpop.permute.xlu0 %764
      %766 = vrot.lane.b32.xlu0 %v623, 4
      %v767 = vpop.permute.xlu0 %766
      %768 = vrot.lane.b32.xlu0 %v637, 4
      %v769 = vpop.permute.xlu0 %768
      %770 = vrot.lane.b32.xlu0 %v647, 4
      %v771 = vpop.permute.xlu0 %770
      %772 = vrot.lane.b32.xlu0 %v661, 4
      %v773 = vpop.permute.xlu0 %772
      %774 = vrot.lane.b32.xlu0 %v671, 4
      %v775 = vpop.permute.xlu0 %774
      %776 = vrot.lane.b32.xlu0 %v685, 4
      %v777 = vpop.permute.xlu0 %776
      %778 = vrot.lane.b32.xlu0 %v695, 4
      %v779 = vpop.permute.xlu0 %778
      %780 = vrot.lane.b32.xlu0 %v709, 4
      %v781 = vpop.permute.xlu0 %780
      %782 = vrot.lane.b32.xlu0 %v719, 4
      %v783 = vpop.permute.xlu0 %782
      %vm816 = vcmask 60448
      %817 = vst.msk [vmem:[#allocation2] sm:$0xf] %vm816, %v721
      %818 = vst.msk [vmem:[#allocation2 + $0x4] sm:$0xf] %vm816, %v723
      %819 = vst.msk [vmem:[#allocation2 + $0x8] sm:$0xf] %vm816, %v725
      %820 = vst.msk [vmem:[#allocation2 + $0xc] sm:$0xf] %vm816, %v727
      %821 = vst.msk [vmem:[#allocation2 + $0x10] sm:$0xf] %vm816, %v729
      %822 = vst.msk [vmem:[#allocation2 + $0x14] sm:$0xf] %vm816, %v731
      %823 = vst.msk [vmem:[#allocation2 + $0x18] sm:$0xf] %vm816, %v733
      %824 = vst.msk [vmem:[#allocation2 + $0x1c] sm:$0xf] %vm816, %v735
      %825 = vst.msk [vmem:[#allocation2 + $0x20] sm:$0xf] %vm816, %v737
      %826 = vst.msk [vmem:[#allocation2 + $0x24] sm:$0xf] %vm816, %v739
      %827 = vst.msk [vmem:[#allocation2 + $0x28] sm:$0xf] %vm816, %v741
      %828 = vst.msk [vmem:[#allocation2 + $0x2c] sm:$0xf] %vm816, %v743
      %829 = vst.msk [vmem:[#allocation2 + $0x30] sm:$0xf] %vm816, %v745
      %830 = vst.msk [vmem:[#allocation2 + $0x34] sm:$0xf] %vm816, %v747
      %831 = vst.msk [vmem:[#allocation2 + $0x38] sm:$0xf] %vm816, %v749
      %832 = vst.msk [vmem:[#allocation2 + $0x3c] sm:$0xf] %vm816, %v751
      %833 = vst.msk [vmem:[#allocation2 + $0x40] sm:$0xf] %vm816, %v753
      %834 = vst.msk [vmem:[#allocation2 + $0x44] sm:$0xf] %vm816, %v755
      %835 = vst.msk [vmem:[#allocation2 + $0x48] sm:$0xf] %vm816, %v757
      %836 = vst.msk [vmem:[#allocation2 + $0x4c] sm:$0xf] %vm816, %v759
      %837 = vst.msk [vmem:[#allocation2 + $0x50] sm:$0xf] %vm816, %v761
      %838 = vst.msk [vmem:[#allocation2 + $0x54] sm:$0xf] %vm816, %v763
      %839 = vst.msk [vmem:[#allocation2 + $0x58] sm:$0xf] %vm816, %v765
      %840 = vst.msk [vmem:[#allocation2 + $0x5c] sm:$0xf] %vm816, %v767
      %841 = vst.msk [vmem:[#allocation2 + $0x60] sm:$0xf] %vm816, %v769
      %842 = vst.msk [vmem:[#allocation2 + $0x64] sm:$0xf] %vm816, %v771
      %843 = vst.msk [vmem:[#allocation2 + $0x68] sm:$0xf] %vm816, %v773
      %844 = vst.msk [vmem:[#allocation2 + $0x6c] sm:$0xf] %vm816, %v775
      %845 = vst.msk [vmem:[#allocation2 + $0x70] sm:$0xf] %vm816, %v777
      %846 = vst.msk [vmem:[#allocation2 + $0x74] sm:$0xf] %vm816, %v779
      %847 = vst.msk [vmem:[#allocation2 + $0x78] sm:$0xf] %vm816, %v781
      %848 = vst.msk [vmem:[#allocation2 + $0x7c] sm:$0xf] %vm816, %v783
      %v849 = vld [vmem:[%s219] sm:$0xe]
      %v850 = vld [vmem:[%s219 + $0x4] sm:$0xf]
      %v851 = vld [vmem:[%s219 + $0x8] sm:$0x1]
      %v852 = vld [vmem:[%s219 + $0xc] sm:$0xe]
      %v853 = vld [vmem:[%s219 + $0x10] sm:$0xf]
      %v854 = vld [vmem:[%s219 + $0x14] sm:$0x1]
      %v855 = vld [vmem:[%s219 + $0x18] sm:$0xe]
      %v856 = vld [vmem:[%s219 + $0x1c] sm:$0xf]
      %v857 = vld [vmem:[%s219 + $0x20] sm:$0x1]
      %v858 = vld [vmem:[%s219 + $0x24] sm:$0xe]
      %v859 = vld [vmem:[%s219 + $0x28] sm:$0xf]
      %v860 = vld [vmem:[%s219 + $0x2c] sm:$0x1]
      %v861 = vld [vmem:[%s219 + $0x30] sm:$0xe]
      %v862 = vld [vmem:[%s219 + $0x34] sm:$0xf]
      %v863 = vld [vmem:[%s219 + $0x38] sm:$0x1]
      %v864 = vld [vmem:[%s219 + $0x3c] sm:$0xe]
      %v865 = vld [vmem:[%s219 + $0x40] sm:$0xf]
      %v866 = vld [vmem:[%s219 + $0x44] sm:$0x1]
      %v867 = vld [vmem:[%s219 + $0x48] sm:$0xe]
      %v868 = vld [vmem:[%s219 + $0x4c] sm:$0xf]
      %v869 = vld [vmem:[%s219 + $0x50] sm:$0x1]
      %v870 = vld [vmem:[%s219 + $0x54] sm:$0xe]
      %v871 = vld [vmem:[%s219 + $0x58] sm:$0xf]
      %v872 = vld [vmem:[%s219 + $0x5c] sm:$0x1]
      %v873 = vld [vmem:[%s219 + $0x60] sm:$0xe]
      %v874 = vld [vmem:[%s219 + $0x64] sm:$0xf]
      %v875 = vld [vmem:[%s219 + $0x68] sm:$0x1]
      %v876 = vld [vmem:[%s219 + $0x6c] sm:$0xe]
      %v877 = vld [vmem:[%s219 + $0x70] sm:$0xf]
      %v878 = vld [vmem:[%s219 + $0x74] sm:$0x1]
      %v879 = vld [vmem:[%s219 + $0x78] sm:$0xe]
      %v880 = vld [vmem:[%s219 + $0x7c] sm:$0xf]
      %v881 = vld [vmem:[%s219 + $0x80] sm:$0x1]
      %v882 = vld [vmem:[%s219 + $0x84] sm:$0xe]
      %v883 = vld [vmem:[%s219 + $0x88] sm:$0xf]
      %v884 = vld [vmem:[%s219 + $0x8c] sm:$0x1]
      %v885 = vld [vmem:[%s219 + $0x90] sm:$0xe]
      %v886 = vld [vmem:[%s219 + $0x94] sm:$0xf]
      %v887 = vld [vmem:[%s219 + $0x98] sm:$0x1]
      %v888 = vld [vmem:[%s219 + $0x9c] sm:$0xe]
      %v889 = vld [vmem:[%s219 + $0xa0] sm:$0xf]
      %v890 = vld [vmem:[%s219 + $0xa4] sm:$0x1]
      %v891 = vld [vmem:[%s219 + $0xa8] sm:$0xe]
      %v892 = vld [vmem:[%s219 + $0xac] sm:$0xf]
      %v893 = vld [vmem:[%s219 + $0xb0] sm:$0x1]
      %v894 = vld [vmem:[%s219 + $0xb4] sm:$0xe]
      %v895 = vld [vmem:[%s219 + $0xb8] sm:$0xf]
      %v896 = vld [vmem:[%s219 + $0xbc] sm:$0x1]
      %vm945 = vcmask 1042432
      %vm946 = vcmask 1046532
      %vm947 = vmor %vm945, %vm946
      %v948 = vrot.slane %v849, 5
      %v949 = vrot.slane %v948, 4
      %v950 = vrot.slane %v850, 5
      %v951 = vsel %vm947, %v949, %v950
      %v952 = vrot.slane %v950, 4
      %v953 = vrot.slane %v851, 5
      %v954 = vsel %vm947, %v952, %v953
      %v955 = vrot.slane %v852, 5
      %v956 = vrot.slane %v955, 4
      %v957 = vrot.slane %v853, 5
      %v958 = vsel %vm947, %v956, %v957
      %v959 = vrot.slane %v957, 4
      %v960 = vrot.slane %v854, 5
      %v961 = vsel %vm947, %v959, %v960
      %v962 = vrot.slane %v855, 5
      %v963 = vrot.slane %v962, 4
      %v964 = vrot.slane %v856, 5
      %v965 = vsel %vm947, %v963, %v964
      %v966 = vrot.slane %v964, 4
      %v967 = vrot.slane %v857, 5
      %v968 = vsel %vm947, %v966, %v967
      %v969 = vrot.slane %v858, 5
      %v970 = vrot.slane %v969, 4
      %v971 = vrot.slane %v859, 5
      %v972 = vsel %vm947, %v970, %v971
      %v973 = vrot.slane %v971, 4
      %v974 = vrot.slane %v860, 5
      %v975 = vsel %vm947, %v973, %v974
      %v976 = vrot.slane %v861, 5
      %v977 = vrot.slane %v976, 4
      %v978 = vrot.slane %v862, 5
      %v979 = vsel %vm947, %v977, %v978
      %v980 = vrot.slane %v978, 4
      %v981 = vrot.slane %v863, 5
      %v982 = vsel %vm947, %v980, %v981
      %v983 = vrot.slane %v864, 5
      %v984 = vrot.slane %v983, 4
      %v985 = vrot.slane %v865, 5
      %v986 = vsel %vm947, %v984, %v985
      %v987 = vrot.slane %v985, 4
      %v988 = vrot.slane %v866, 5
      %v989 = vsel %vm947, %v987, %v988
      %v990 = vrot.slane %v867, 5
      %v991 = vrot.slane %v990, 4
      %v992 = vrot.slane %v868, 5
      %v993 = vsel %vm947, %v991, %v992
      %v994 = vrot.slane %v992, 4
      %v995 = vrot.slane %v869, 5
      %v996 = vsel %vm947, %v994, %v995
      %v997 = vrot.slane %v870, 5
      %v998 = vrot.slane %v997, 4
      %v999 = vrot.slane %v871, 5
      %v1000 = vsel %vm947, %v998, %v999
      %v1001 = vrot.slane %v999, 4
      %v1002 = vrot.slane %v872, 5
      %v1003 = vsel %vm947, %v1001, %v1002
      %v1004 = vrot.slane %v873, 5
      %v1005 = vrot.slane %v1004, 4
      %v1006 = vrot.slane %v874, 5
      %v1007 = vsel %vm947, %v1005, %v1006
      %v1008 = vrot.slane %v1006, 4
      %v1009 = vrot.slane %v875, 5
      %v1010 = vsel %vm947, %v1008, %v1009
      %v1011 = vrot.slane %v876, 5
      %v1012 = vrot.slane %v1011, 4
      %v1013 = vrot.slane %v877, 5
      %v1014 = vsel %vm947, %v1012, %v1013
      %v1015 = vrot.slane %v1013, 4
      %v1016 = vrot.slane %v878, 5
      %v1017 = vsel %vm947, %v1015, %v1016
      %v1018 = vrot.slane %v879, 5
      %v1019 = vrot.slane %v1018, 4
      %v1020 = vrot.slane %v880, 5
      %v1021 = vsel %vm947, %v1019, %v1020
      %v1022 = vrot.slane %v1020, 4
      %v1023 = vrot.slane %v881, 5
      %v1024 = vsel %vm947, %v1022, %v1023
      %v1025 = vrot.slane %v882, 5
      %v1026 = vrot.slane %v1025, 4
      %v1027 = vrot.slane %v883, 5
      %v1028 = vsel %vm947, %v1026, %v1027
      %v1029 = vrot.slane %v1027, 4
      %v1030 = vrot.slane %v884, 5
      %v1031 = vsel %vm947, %v1029, %v1030
      %v1032 = vrot.slane %v885, 5
      %v1033 = vrot.slane %v1032, 4
      %v1034 = vrot.slane %v886, 5
      %v1035 = vsel %vm947, %v1033, %v1034
      %v1036 = vrot.slane %v1034, 4
      %v1037 = vrot.slane %v887, 5
      %v1038 = vsel %vm947, %v1036, %v1037
      %v1039 = vrot.slane %v888, 5
      %v1040 = vrot.slane %v1039, 4
      %v1041 = vrot.slane %v889, 5
      %v1042 = vsel %vm947, %v1040, %v1041
      %v1043 = vrot.slane %v1041, 4
      %v1044 = vrot.slane %v890, 5
      %v1045 = vsel %vm947, %v1043, %v1044
      %v1046 = vrot.slane %v891, 5
      %v1047 = vrot.slane %v1046, 4
      %v1048 = vrot.slane %v892, 5
      %v1049 = vsel %vm947, %v1047, %v1048
      %v1050 = vrot.slane %v1048, 4
      %v1051 = vrot.slane %v893, 5
      %v1052 = vsel %vm947, %v1050, %v1051
      %v1053 = vrot.slane %v894, 5
      %v1054 = vrot.slane %v1053, 4
      %v1055 = vrot.slane %v895, 5
      %v1056 = vsel %vm947, %v1054, %v1055
      %v1057 = vrot.slane %v1055, 4
      %v1058 = vrot.slane %v896, 5
      %v1059 = vsel %vm947, %v1057, %v1058
      %1060 = vrot.lane.b32.xlu0 %v951, 8
      %v1061 = vpop.permute.xlu0 %1060
      %1062 = vrot.lane.b32.xlu0 %v954, 8
      %v1063 = vpop.permute.xlu0 %1062
      %1064 = vrot.lane.b32.xlu0 %v958, 8
      %v1065 = vpop.permute.xlu0 %1064
      %1066 = vrot.lane.b32.xlu0 %v961, 8
      %v1067 = vpop.permute.xlu0 %1066
      %1068 = vrot.lane.b32.xlu0 %v965, 8
      %v1069 = vpop.permute.xlu0 %1068
      %1070 = vrot.lane.b32.xlu0 %v968, 8
      %v1071 = vpop.permute.xlu0 %1070
      %1072 = vrot.lane.b32.xlu0 %v972, 8
      %v1073 = vpop.permute.xlu0 %1072
      %1074 = vrot.lane.b32.xlu0 %v975, 8
      %v1075 = vpop.permute.xlu0 %1074
      %1076 = vrot.lane.b32.xlu0 %v979, 8
      %v1077 = vpop.permute.xlu0 %1076
      %1078 = vrot.lane.b32.xlu0 %v982, 8
      %v1079 = vpop.permute.xlu0 %1078
      %1080 = vrot.lane.b32.xlu0 %v986, 8
      %v1081 = vpop.permute.xlu0 %1080
      %1082 = vrot.lane.b32.xlu0 %v989, 8
      %v1083 = vpop.permute.xlu0 %1082
      %1084 = vrot.lane.b32.xlu0 %v993, 8
      %v1085 = vpop.permute.xlu0 %1084
      %1086 = vrot.lane.b32.xlu0 %v996, 8
      %v1087 = vpop.permute.xlu0 %1086
      %1088 = vrot.lane.b32.xlu0 %v1000, 8
      %v1089 = vpop.permute.xlu0 %1088
      %1090 = vrot.lane.b32.xlu0 %v1003, 8
      %v1091 = vpop.permute.xlu0 %1090
      %1092 = vrot.lane.b32.xlu0 %v1007, 8
      %v1093 = vpop.permute.xlu0 %1092
      %1094 = vrot.lane.b32.xlu0 %v1010, 8
      %v1095 = vpop.permute.xlu0 %1094
      %1096 = vrot.lane.b32.xlu0 %v1014, 8
      %v1097 = vpop.permute.xlu0 %1096
      %1098 = vrot.lane.b32.xlu0 %v1017, 8
      %v1099 = vpop.permute.xlu0 %1098
      %1100 = vrot.lane.b32.xlu0 %v1021, 8
      %v1101 = vpop.permute.xlu0 %1100
      %1102 = vrot.lane.b32.xlu0 %v1024, 8
      %v1103 = vpop.permute.xlu0 %1102
      %1104 = vrot.lane.b32.xlu0 %v1028, 8
      %v1105 = vpop.permute.xlu0 %1104
      %1106 = vrot.lane.b32.xlu0 %v1031, 8
      %v1107 = vpop.permute.xlu0 %1106
      %1108 = vrot.lane.b32.xlu0 %v1035, 8
      %v1109 = vpop.permute.xlu0 %1108
      %1110 = vrot.lane.b32.xlu0 %v1038, 8
      %v1111 = vpop.permute.xlu0 %1110
      %1112 = vrot.lane.b32.xlu0 %v1042, 8
      %v1113 = vpop.permute.xlu0 %1112
      %1114 = vrot.lane.b32.xlu0 %v1045, 8
      %v1115 = vpop.permute.xlu0 %1114
      %1116 = vrot.lane.b32.xlu0 %v1049, 8
      %v1117 = vpop.permute.xlu0 %1116
      %1118 = vrot.lane.b32.xlu0 %v1052, 8
      %v1119 = vpop.permute.xlu0 %1118
      %1120 = vrot.lane.b32.xlu0 %v1056, 8
      %v1121 = vpop.permute.xlu0 %1120
      %1122 = vrot.lane.b32.xlu0 %v1059, 8
      %v1123 = vpop.permute.xlu0 %1122
      %vm1156 = vcmask 93248
      %1157 = vst.msk [vmem:[#allocation2] sm:$0xf] %vm1156, %v1061
      %1158 = vst.msk [vmem:[#allocation2 + $0x4] sm:$0xf] %vm1156, %v1063
      %1159 = vst.msk [vmem:[#allocation2 + $0x8] sm:$0xf] %vm1156, %v1065
      %1160 = vst.msk [vmem:[#allocation2 + $0xc] sm:$0xf] %vm1156, %v1067
      %1161 = vst.msk [vmem:[#allocation2 + $0x10] sm:$0xf] %vm1156, %v1069
      %1162 = vst.msk [vmem:[#allocation2 + $0x14] sm:$0xf] %vm1156, %v1071
      %1163 = vst.msk [vmem:[#allocation2 + $0x18] sm:$0xf] %vm1156, %v1073
      %1164 = vst.msk [vmem:[#allocation2 + $0x1c] sm:$0xf] %vm1156, %v1075
      %1165 = vst.msk [vmem:[#allocation2 + $0x20] sm:$0xf] %vm1156, %v1077
      %1166 = vst.msk [vmem:[#allocation2 + $0x24] sm:$0xf] %vm1156, %v1079
      %1167 = vst.msk [vmem:[#allocation2 + $0x28] sm:$0xf] %vm1156, %v1081
      %1168 = vst.msk [vmem:[#allocation2 + $0x2c] sm:$0xf] %vm1156, %v1083
      %1169 = vst.msk [vmem:[#allocation2 + $0x30] sm:$0xf] %vm1156, %v1085
      %1170 = vst.msk [vmem:[#allocation2 + $0x34] sm:$0xf] %vm1156, %v1087
      %1171 = vst.msk [vmem:[#allocation2 + $0x38] sm:$0xf] %vm1156, %v1089
      %1172 = vst.msk [vmem:[#allocation2 + $0x3c] sm:$0xf] %vm1156, %v1091
      %1173 = vst.msk [vmem:[#allocation2 + $0x40] sm:$0xf] %vm1156, %v1093
      %1174 = vst.msk [vmem:[#allocation2 + $0x44] sm:$0xf] %vm1156, %v1095
      %1175 = vst.msk [vmem:[#allocation2 + $0x48] sm:$0xf] %vm1156, %v1097
      %1176 = vst.msk [vmem:[#allocation2 + $0x4c] sm:$0xf] %vm1156, %v1099
      %1177 = vst.msk [vmem:[#allocation2 + $0x50] sm:$0xf] %vm1156, %v1101
      %1178 = vst.msk [vmem:[#allocation2 + $0x54] sm:$0xf] %vm1156, %v1103
      %1179 = vst.msk [vmem:[#allocation2 + $0x58] sm:$0xf] %vm1156, %v1105
      %1180 = vst.msk [vmem:[#allocation2 + $0x5c] sm:$0xf] %vm1156, %v1107
      %1181 = vst.msk [vmem:[#allocation2 + $0x60] sm:$0xf] %vm1156, %v1109
      %1182 = vst.msk [vmem:[#allocation2 + $0x64] sm:$0xf] %vm1156, %v1111
      %1183 = vst.msk [vmem:[#allocation2 + $0x68] sm:$0xf] %vm1156, %v1113
      %1184 = vst.msk [vmem:[#allocation2 + $0x6c] sm:$0xf] %vm1156, %v1115
      %1185 = vst.msk [vmem:[#allocation2 + $0x70] sm:$0xf] %vm1156, %v1117
      %1186 = vst.msk [vmem:[#allocation2 + $0x74] sm:$0xf] %vm1156, %v1119
      %1187 = vst.msk [vmem:[#allocation2 + $0x78] sm:$0xf] %vm1156, %v1121
      %1188 = vst.msk [vmem:[#allocation2 + $0x7c] sm:$0xf] %vm1156, %v1123
      %s1189 = sadd.s32 %s216, 1
      %s1190 = smul.u32 %s1189, 3
      %s1191 = smul.addr %s1190, 4
      %s1192 = scalar_lea.vmem %s196, %s1191
      %v1193 = vld [vmem:[%s1192] sm:$0xf]
      %v1194 = vld [vmem:[%s1192 + $0x4] sm:$0xf]
      %v1195 = vld [vmem:[%s1192 + $0xc] sm:$0xf]
      %v1196 = vld [vmem:[%s1192 + $0x10] sm:$0xf]
      %v1197 = vld [vmem:[%s1192 + $0x18] sm:$0xf]
      %v1198 = vld [vmem:[%s1192 + $0x1c] sm:$0xf]
      %v1199 = vld [vmem:[%s1192 + $0x24] sm:$0xf]
      %v1200 = vld [vmem:[%s1192 + $0x28] sm:$0xf]
      %v1201 = vld [vmem:[%s1192 + $0x30] sm:$0xf]
      %v1202 = vld [vmem:[%s1192 + $0x34] sm:$0xf]
      %v1203 = vld [vmem:[%s1192 + $0x3c] sm:$0xf]
      %v1204 = vld [vmem:[%s1192 + $0x40] sm:$0xf]
      %v1205 = vld [vmem:[%s1192 + $0x48] sm:$0xf]
      %v1206 = vld [vmem:[%s1192 + $0x4c] sm:$0xf]
      %v1207 = vld [vmem:[%s1192 + $0x54] sm:$0xf]
      %v1208 = vld [vmem:[%s1192 + $0x58] sm:$0xf]
      %v1209 = vld [vmem:[%s1192 + $0x60] sm:$0xf]
      %v1210 = vld [vmem:[%s1192 + $0x64] sm:$0xf]
      %v1211 = vld [vmem:[%s1192 + $0x6c] sm:$0xf]
      %v1212 = vld [vmem:[%s1192 + $0x70] sm:$0xf]
      %v1213 = vld [vmem:[%s1192 + $0x78] sm:$0xf]
      %v1214 = vld [vmem:[%s1192 + $0x7c] sm:$0xf]
      %v1215 = vld [vmem:[%s1192 + $0x84] sm:$0xf]
      %v1216 = vld [vmem:[%s1192 + $0x88] sm:$0xf]
      %v1217 = vld [vmem:[%s1192 + $0x90] sm:$0xf]
      %v1218 = vld [vmem:[%s1192 + $0x94] sm:$0xf]
      %v1219 = vld [vmem:[%s1192 + $0x9c] sm:$0xf]
      %v1220 = vld [vmem:[%s1192 + $0xa0] sm:$0xf]
      %v1221 = vld [vmem:[%s1192 + $0xa8] sm:$0xf]
      %v1222 = vld [vmem:[%s1192 + $0xac] sm:$0xf]
      %v1223 = vld [vmem:[%s1192 + $0xb4] sm:$0xf]
      %v1224 = vld [vmem:[%s1192 + $0xb8] sm:$0xf]
      %1257 = vrot.lane.b32.xlu0 %v1193, 12
      %v1258 = vpop.permute.xlu0 %1257
      %1259 = vrot.lane.b32.xlu0 %v1194, 12
      %v1260 = vpop.permute.xlu0 %1259
      %1261 = vrot.lane.b32.xlu0 %v1195, 12
      %v1262 = vpop.permute.xlu0 %1261
      %1263 = vrot.lane.b32.xlu0 %v1196, 12
      %v1264 = vpop.permute.xlu0 %1263
      %1265 = vrot.lane.b32.xlu0 %v1197, 12
      %v1266 = vpop.permute.xlu0 %1265
      %1267 = vrot.lane.b32.xlu0 %v1198, 12
      %v1268 = vpop.permute.xlu0 %1267
      %1269 = vrot.lane.b32.xlu0 %v1199, 12
      %v1270 = vpop.permute.xlu0 %1269
      %1271 = vrot.lane.b32.xlu0 %v1200, 12
      %v1272 = vpop.permute.xlu0 %1271
      %1273 = vrot.lane.b32.xlu0 %v1201, 12
      %v1274 = vpop.permute.xlu0 %1273
      %1275 = vrot.lane.b32.xlu0 %v1202, 12
      %v1276 = vpop.permute.xlu0 %1275
      %1277 = vrot.lane.b32.xlu0 %v1203, 12
      %v1278 = vpop.permute.xlu0 %1277
      %1279 = vrot.lane.b32.xlu0 %v1204, 12
      %v1280 = vpop.permute.xlu0 %1279
      %1281 = vrot.lane.b32.xlu0 %v1205, 12
      %v1282 = vpop.permute.xlu0 %1281
      %1283 = vrot.lane.b32.xlu0 %v1206, 12
      %v1284 = vpop.permute.xlu0 %1283
      %1285 = vrot.lane.b32.xlu0 %v1207, 12
      %v1286 = vpop.permute.xlu0 %1285
      %1287 = vrot.lane.b32.xlu0 %v1208, 12
      %v1288 = vpop.permute.xlu0 %1287
      %1289 = vrot.lane.b32.xlu0 %v1209, 12
      %v1290 = vpop.permute.xlu0 %1289
      %1291 = vrot.lane.b32.xlu0 %v1210, 12
      %v1292 = vpop.permute.xlu0 %1291
      %1293 = vrot.lane.b32.xlu0 %v1211, 12
      %v1294 = vpop.permute.xlu0 %1293
      %1295 = vrot.lane.b32.xlu0 %v1212, 12
      %v1296 = vpop.permute.xlu0 %1295
      %1297 = vrot.lane.b32.xlu0 %v1213, 12
      %v1298 = vpop.permute.xlu0 %1297
      %1299 = vrot.lane.b32.xlu0 %v1214, 12
      %v1300 = vpop.permute.xlu0 %1299
      %1301 = vrot.lane.b32.xlu0 %v1215, 12
      %v1302 = vpop.permute.xlu0 %1301
      %1303 = vrot.lane.b32.xlu0 %v1216, 12
      %v1304 = vpop.permute.xlu0 %1303
      %1305 = vrot.lane.b32.xlu0 %v1217, 12
      %v1306 = vpop.permute.xlu0 %1305
      %1307 = vrot.lane.b32.xlu0 %v1218, 12
      %v1308 = vpop.permute.xlu0 %1307
      %1309 = vrot.lane.b32.xlu0 %v1219, 12
      %v1310 = vpop.permute.xlu0 %1309
      %1311 = vrot.lane.b32.xlu0 %v1220, 12
      %v1312 = vpop.permute.xlu0 %1311
      %1313 = vrot.lane.b32.xlu0 %v1221, 12
      %v1314 = vpop.permute.xlu0 %1313
      %1315 = vrot.lane.b32.xlu0 %v1222, 12
      %v1316 = vpop.permute.xlu0 %1315
      %1317 = vrot.lane.b32.xlu0 %v1223, 12
      %v1318 = vpop.permute.xlu0 %1317
      %1319 = vrot.lane.b32.xlu0 %v1224, 12
      %v1320 = vpop.permute.xlu0 %1319
      %vm1353 = vcmask 126048
      %1354 = vst.msk [vmem:[#allocation2] sm:$0xf] %vm1353, %v1258
      %1355 = vst.msk [vmem:[#allocation2 + $0x4] sm:$0xf] %vm1353, %v1260
      %1356 = vst.msk [vmem:[#allocation2 + $0x8] sm:$0xf] %vm1353, %v1262
      %1357 = vst.msk [vmem:[#allocation2 + $0xc] sm:$0xf] %vm1353, %v1264
      %1358 = vst.msk [vmem:[#allocation2 + $0x10] sm:$0xf] %vm1353, %v1266
      %1359 = vst.msk [vmem:[#allocation2 + $0x14] sm:$0xf] %vm1353, %v1268
      %1360 = vst.msk [vmem:[#allocation2 + $0x18] sm:$0xf] %vm1353, %v1270
      %1361 = vst.msk [vmem:[#allocation2 + $0x1c] sm:$0xf] %vm1353, %v1272
      %1362 = vst.msk [vmem:[#allocation2 + $0x20] sm:$0xf] %vm1353, %v1274
      %1363 = vst.msk [vmem:[#allocation2 + $0x24] sm:$0xf] %vm1353, %v1276
      %1364 = vst.msk [vmem:[#allocation2 + $0x28] sm:$0xf] %vm1353, %v1278
      %1365 = vst.msk [vmem:[#allocation2 + $0x2c] sm:$0xf] %vm1353, %v1280
      %1366 = vst.msk [vmem:[#allocation2 + $0x30] sm:$0xf] %vm1353, %v1282
      %1367 = vst.msk [vmem:[#allocation2 + $0x34] sm:$0xf] %vm1353, %v1284
      %1368 = vst.msk [vmem:[#allocation2 + $0x38] sm:$0xf] %vm1353, %v1286
      %1369 = vst.msk [vmem:[#allocation2 + $0x3c] sm:$0xf] %vm1353, %v1288
      %1370 = vst.msk [vmem:[#allocation2 + $0x40] sm:$0xf] %vm1353, %v1290
      %1371 = vst.msk [vmem:[#allocation2 + $0x44] sm:$0xf] %vm1353, %v1292
      %1372 = vst.msk [vmem:[#allocation2 + $0x48] sm:$0xf] %vm1353, %v1294
      %1373 = vst.msk [vmem:[#allocation2 + $0x4c] sm:$0xf] %vm1353, %v1296
      %1374 = vst.msk [vmem:[#allocation2 + $0x50] sm:$0xf] %vm1353, %v1298
      %1375 = vst.msk [vmem:[#allocation2 + $0x54] sm:$0xf] %vm1353, %v1300
      %1376 = vst.msk [vmem:[#allocation2 + $0x58] sm:$0xf] %vm1353, %v1302
      %1377 = vst.msk [vmem:[#allocation2 + $0x5c] sm:$0xf] %vm1353, %v1304
      %1378 = vst.msk [vmem:[#allocation2 + $0x60] sm:$0xf] %vm1353, %v1306
      %1379 = vst.msk [vmem:[#allocation2 + $0x64] sm:$0xf] %vm1353, %v1308
      %1380 = vst.msk [vmem:[#allocation2 + $0x68] sm:$0xf] %vm1353, %v1310
      %1381 = vst.msk [vmem:[#allocation2 + $0x6c] sm:$0xf] %vm1353, %v1312
      %1382 = vst.msk [vmem:[#allocation2 + $0x70] sm:$0xf] %vm1353, %v1314
      %1383 = vst.msk [vmem:[#allocation2 + $0x74] sm:$0xf] %vm1353, %v1316
      %1384 = vst.msk [vmem:[#allocation2 + $0x78] sm:$0xf] %vm1353, %v1318
      %1385 = vst.msk [vmem:[#allocation2 + $0x7c] sm:$0xf] %vm1353, %v1320
      %v1386 = vld [vmem:[%s1192] sm:$0xf]
      %v1387 = vld [vmem:[%s1192 + $0x4] sm:$0xf]
      %v1388 = vld [vmem:[%s1192 + $0x8] sm:$0x1]
      %v1389 = vld [vmem:[%s1192 + $0xc] sm:$0xf]
      %v1390 = vld [vmem:[%s1192 + $0x10] sm:$0xf]
      %v1391 = vld [vmem:[%s1192 + $0x14] sm:$0x1]
      %v1392 = vld [vmem:[%s1192 + $0x18] sm:$0xf]
      %v1393 = vld [vmem:[%s1192 + $0x1c] sm:$0xf]
      %v1394 = vld [vmem:[%s1192 + $0x20] sm:$0x1]
      %v1395 = vld [vmem:[%s1192 + $0x24] sm:$0xf]
      %v1396 = vld [vmem:[%s1192 + $0x28] sm:$0xf]
      %v1397 = vld [vmem:[%s1192 + $0x2c] sm:$0x1]
      %v1398 = vld [vmem:[%s1192 + $0x30] sm:$0xf]
      %v1399 = vld [vmem:[%s1192 + $0x34] sm:$0xf]
      %v1400 = vld [vmem:[%s1192 + $0x38] sm:$0x1]
      %v1401 = vld [vmem:[%s1192 + $0x3c] sm:$0xf]
      %v1402 = vld [vmem:[%s1192 + $0x40] sm:$0xf]
      %v1403 = vld [vmem:[%s1192 + $0x44] sm:$0x1]
      %v1404 = vld [vmem:[%s1192 + $0x48] sm:$0xf]
      %v1405 = vld [vmem:[%s1192 + $0x4c] sm:$0xf]
      %v1406 = vld [vmem:[%s1192 + $0x50] sm:$0x1]
      %v1407 = vld [vmem:[%s1192 + $0x54] sm:$0xf]
      %v1408 = vld [vmem:[%s1192 + $0x58] sm:$0xf]
      %v1409 = vld [vmem:[%s1192 + $0x5c] sm:$0x1]
      %v1410 = vld [vmem:[%s1192 + $0x60] sm:$0xf]
      %v1411 = vld [vmem:[%s1192 + $0x64] sm:$0xf]
      %v1412 = vld [vmem:[%s1192 + $0x68] sm:$0x1]
      %v1413 = vld [vmem:[%s1192 + $0x6c] sm:$0xf]
      %v1414 = vld [vmem:[%s1192 + $0x70] sm:$0xf]
      %v1415 = vld [vmem:[%s1192 + $0x74] sm:$0x1]
      %v1416 = vld [vmem:[%s1192 + $0x78] sm:$0xf]
      %v1417 = vld [vmem:[%s1192 + $0x7c] sm:$0xf]
      %v1418 = vld [vmem:[%s1192 + $0x80] sm:$0x1]
      %v1419 = vld [vmem:[%s1192 + $0x84] sm:$0xf]
      %v1420 = vld [vmem:[%s1192 + $0x88] sm:$0xf]
      %v1421 = vld [vmem:[%s1192 + $0x8c] sm:$0x1]
      %v1422 = vld [vmem:[%s1192 + $0x90] sm:$0xf]
      %v1423 = vld [vmem:[%s1192 + $0x94] sm:$0xf]
      %v1424 = vld [vmem:[%s1192 + $0x98] sm:$0x1]
      %v1425 = vld [vmem:[%s1192 + $0x9c] sm:$0xf]
      %v1426 = vld [vmem:[%s1192 + $0xa0] sm:$0xf]
      %v1427 = vld [vmem:[%s1192 + $0xa4] sm:$0x1]
      %v1428 = vld [vmem:[%s1192 + $0xa8] sm:$0xf]
      %v1429 = vld [vmem:[%s1192 + $0xac] sm:$0xf]
      %v1430 = vld [vmem:[%s1192 + $0xb0] sm:$0x1]
      %v1431 = vld [vmem:[%s1192 + $0xb4] sm:$0xf]
      %v1432 = vld [vmem:[%s1192 + $0xb8] sm:$0xf]
      %v1433 = vld [vmem:[%s1192 + $0xbc] sm:$0x1]
      %v1435 = vshrl.u32 %v1386, 16
      %v1437 = vrot.slane %v1435, 4
      %v1438 = vshll.u32 %v1386, 16
      %v1440 = vrot.slane %v1438, 5
      %v1441 = vor.u32 %v1437, %v1440
      %v1442 = vrot.slane %v1441, 4
      %v1444 = vshll.u32 %v1387, 16
      %v1446 = vrot.slane %v1444, 5
      %v1447 = vsel %vm335, %v1442, %v1446
      %v1448 = vshrl.u32 %v1387, 16
      %v1450 = vrot.slane %v1448, 4
      %v1451 = vor.u32 %v1450, %v1446
      %v1452 = vrot.slane %v1451, 4
      %v1454 = vshll.u32 %v1388, 16
      %v1456 = vrot.slane %v1454, 5
      %v1457 = vsel %vm335, %v1452, %v1456
      %v1459 = vshrl.u32 %v1389, 16
      %v1461 = vrot.slane %v1459, 4
      %v1462 = vshll.u32 %v1389, 16
      %v1464 = vrot.slane %v1462, 5
      %v1465 = vor.u32 %v1461, %v1464
      %v1466 = vrot.slane %v1465, 4
      %v1468 = vshll.u32 %v1390, 16
      %v1470 = vrot.slane %v1468, 5
      %v1471 = vsel %vm335, %v1466, %v1470
      %v1472 = vshrl.u32 %v1390, 16
      %v1474 = vrot.slane %v1472, 4
      %v1475 = vor.u32 %v1474, %v1470
      %v1476 = vrot.slane %v1475, 4
      %v1478 = vshll.u32 %v1391, 16
      %v1480 = vrot.slane %v1478, 5
      %v1481 = vsel %vm335, %v1476, %v1480
      %v1483 = vshrl.u32 %v1392, 16
      %v1485 = vrot.slane %v1483, 4
      %v1486 = vshll.u32 %v1392, 16
      %v1488 = vrot.slane %v1486, 5
      %v1489 = vor.u32 %v1485, %v1488
      %v1490 = vrot.slane %v1489, 4
      %v1492 = vshll.u32 %v1393, 16
      %v1494 = vrot.slane %v1492, 5
      %v1495 = vsel %vm335, %v1490, %v1494
      %v1496 = vshrl.u32 %v1393, 16
      %v1498 = vrot.slane %v1496, 4
      %v1499 = vor.u32 %v1498, %v1494
      %v1500 = vrot.slane %v1499, 4
      %v1502 = vshll.u32 %v1394, 16
      %v1504 = vrot.slane %v1502, 5
      %v1505 = vsel %vm335, %v1500, %v1504
      %v1507 = vshrl.u32 %v1395, 16
      %v1509 = vrot.slane %v1507, 4
      %v1510 = vshll.u32 %v1395, 16
      %v1512 = vrot.slane %v1510, 5
      %v1513 = vor.u32 %v1509, %v1512
      %v1514 = vrot.slane %v1513, 4
      %v1516 = vshll.u32 %v1396, 16
      %v1518 = vrot.slane %v1516, 5
      %v1519 = vsel %vm335, %v1514, %v1518
      %v1520 = vshrl.u32 %v1396, 16
      %v1522 = vrot.slane %v1520, 4
      %v1523 = vor.u32 %v1522, %v1518
      %v1524 = vrot.slane %v1523, 4
      %v1526 = vshll.u32 %v1397, 16
      %v1528 = vrot.slane %v1526, 5
      %v1529 = vsel %vm335, %v1524, %v1528
      %v1531 = vshrl.u32 %v1398, 16
      %v1533 = vrot.slane %v1531, 4
      %v1534 = vshll.u32 %v1398, 16
      %v1536 = vrot.slane %v1534, 5
      %v1537 = vor.u32 %v1533, %v1536
      %v1538 = vrot.slane %v1537, 4
      %v1540 = vshll.u32 %v1399, 16
      %v1542 = vrot.slane %v1540, 5
      %v1543 = vsel %vm335, %v1538, %v1542
      %v1544 = vshrl.u32 %v1399, 16
      %v1546 = vrot.slane %v1544, 4
      %v1547 = vor.u32 %v1546, %v1542
      %v1548 = vrot.slane %v1547, 4
      %v1550 = vshll.u32 %v1400, 16
      %v1552 = vrot.slane %v1550, 5
      %v1553 = vsel %vm335, %v1548, %v1552
      %v1555 = vshrl.u32 %v1401, 16
      %v1557 = vrot.slane %v1555, 4
      %v1558 = vshll.u32 %v1401, 16
      %v1560 = vrot.slane %v1558, 5
      %v1561 = vor.u32 %v1557, %v1560
      %v1562 = vrot.slane %v1561, 4
      %v1564 = vshll.u32 %v1402, 16
      %v1566 = vrot.slane %v1564, 5
      %v1567 = vsel %vm335, %v1562, %v1566
      %v1568 = vshrl.u32 %v1402, 16
      %v1570 = vrot.slane %v1568, 4
      %v1571 = vor.u32 %v1570, %v1566
      %v1572 = vrot.slane %v1571, 4
      %v1574 = vshll.u32 %v1403, 16
      %v1576 = vrot.slane %v1574, 5
      %v1577 = vsel %vm335, %v1572, %v1576
      %v1579 = vshrl.u32 %v1404, 16
      %v1581 = vrot.slane %v1579, 4
      %v1582 = vshll.u32 %v1404, 16
      %v1584 = vrot.slane %v1582, 5
      %v1585 = vor.u32 %v1581, %v1584
      %v1586 = vrot.slane %v1585, 4
      %v1588 = vshll.u32 %v1405, 16
      %v1590 = vrot.slane %v1588, 5
      %v1591 = vsel %vm335, %v1586, %v1590
      %v1592 = vshrl.u32 %v1405, 16
      %v1594 = vrot.slane %v1592, 4
      %v1595 = vor.u32 %v1594, %v1590
      %v1596 = vrot.slane %v1595, 4
      %v1598 = vshll.u32 %v1406, 16
      %v1600 = vrot.slane %v1598, 5
      %v1601 = vsel %vm335, %v1596, %v1600
      %v1603 = vshrl.u32 %v1407, 16
      %v1605 = vrot.slane %v1603, 4
      %v1606 = vshll.u32 %v1407, 16
      %v1608 = vrot.slane %v1606, 5
      %v1609 = vor.u32 %v1605, %v1608
      %v1610 = vrot.slane %v1609, 4
      %v1612 = vshll.u32 %v1408, 16
      %v1614 = vrot.slane %v1612, 5
      %v1615 = vsel %vm335, %v1610, %v1614
      %v1616 = vshrl.u32 %v1408, 16
      %v1618 = vrot.slane %v1616, 4
      %v1619 = vor.u32 %v1618, %v1614
      %v1620 = vrot.slane %v1619, 4
      %v1622 = vshll.u32 %v1409, 16
      %v1624 = vrot.slane %v1622, 5
      %v1625 = vsel %vm335, %v1620, %v1624
      %v1627 = vshrl.u32 %v1410, 16
      %v1629 = vrot.slane %v1627, 4
      %v1630 = vshll.u32 %v1410, 16
      %v1632 = vrot.slane %v1630, 5
      %v1633 = vor.u32 %v1629, %v1632
      %v1634 = vrot.slane %v1633, 4
      %v1636 = vshll.u32 %v1411, 16
      %v1638 = vrot.slane %v1636, 5
      %v1639 = vsel %vm335, %v1634, %v1638
      %v1640 = vshrl.u32 %v1411, 16
      %v1642 = vrot.slane %v1640, 4
      %v1643 = vor.u32 %v1642, %v1638
      %v1644 = vrot.slane %v1643, 4
      %v1646 = vshll.u32 %v1412, 16
      %v1648 = vrot.slane %v1646, 5
      %v1649 = vsel %vm335, %v1644, %v1648
      %v1651 = vshrl.u32 %v1413, 16
      %v1653 = vrot.slane %v1651, 4
      %v1654 = vshll.u32 %v1413, 16
      %v1656 = vrot.slane %v1654, 5
      %v1657 = vor.u32 %v1653, %v1656
      %v1658 = vrot.slane %v1657, 4
      %v1660 = vshll.u32 %v1414, 16
      %v1662 = vrot.slane %v1660, 5
      %v1663 = vsel %vm335, %v1658, %v1662
      %v1664 = vshrl.u32 %v1414, 16
      %v1666 = vrot.slane %v1664, 4
      %v1667 = vor.u32 %v1666, %v1662
      %v1668 = vrot.slane %v1667, 4
      %v1670 = vshll.u32 %v1415, 16
      %v1672 = vrot.slane %v1670, 5
      %v1673 = vsel %vm335, %v1668, %v1672
      %v1675 = vshrl.u32 %v1416, 16
      %v1677 = vrot.slane %v1675, 4
      %v1678 = vshll.u32 %v1416, 16
      %v1680 = vrot.slane %v1678, 5
      %v1681 = vor.u32 %v1677, %v1680
      %v1682 = vrot.slane %v1681, 4
      %v1684 = vshll.u32 %v1417, 16
      %v1686 = vrot.slane %v1684, 5
      %v1687 = vsel %vm335, %v1682, %v1686
      %v1688 = vshrl.u32 %v1417, 16
      %v1690 = vrot.slane %v1688, 4
      %v1691 = vor.u32 %v1690, %v1686
      %v1692 = vrot.slane %v1691, 4
      %v1694 = vshll.u32 %v1418, 16
      %v1696 = vrot.slane %v1694, 5
      %v1697 = vsel %vm335, %v1692, %v1696
      %v1699 = vshrl.u32 %v1419, 16
      %v1701 = vrot.slane %v1699, 4
      %v1702 = vshll.u32 %v1419, 16
      %v1704 = vrot.slane %v1702, 5
      %v1705 = vor.u32 %v1701, %v1704
      %v1706 = vrot.slane %v1705, 4
      %v1708 = vshll.u32 %v1420, 16
      %v1710 = vrot.slane %v1708, 5
      %v1711 = vsel %vm335, %v1706, %v1710
      %v1712 = vshrl.u32 %v1420, 16
      %v1714 = vrot.slane %v1712, 4
      %v1715 = vor.u32 %v1714, %v1710
      %v1716 = vrot.slane %v1715, 4
      %v1718 = vshll.u32 %v1421, 16
      %v1720 = vrot.slane %v1718, 5
      %v1721 = vsel %vm335, %v1716, %v1720
      %v1723 = vshrl.u32 %v1422, 16
      %v1725 = vrot.slane %v1723, 4
      %v1726 = vshll.u32 %v1422, 16
      %v1728 = vrot.slane %v1726, 5
      %v1729 = vor.u32 %v1725, %v1728
      %v1730 = vrot.slane %v1729, 4
      %v1732 = vshll.u32 %v1423, 16
      %v1734 = vrot.slane %v1732, 5
      %v1735 = vsel %vm335, %v1730, %v1734
      %v1736 = vshrl.u32 %v1423, 16
      %v1738 = vrot.slane %v1736, 4
      %v1739 = vor.u32 %v1738, %v1734
      %v1740 = vrot.slane %v1739, 4
      %v1742 = vshll.u32 %v1424, 16
      %v1744 = vrot.slane %v1742, 5
      %v1745 = vsel %vm335, %v1740, %v1744
      %v1747 = vshrl.u32 %v1425, 16
      %v1749 = vrot.slane %v1747, 4
      %v1750 = vshll.u32 %v1425, 16
      %v1752 = vrot.slane %v1750, 5
      %v1753 = vor.u32 %v1749, %v1752
      %v1754 = vrot.slane %v1753, 4
      %v1756 = vshll.u32 %v1426, 16
      %v1758 = vrot.slane %v1756, 5
      %v1759 = vsel %vm335, %v1754, %v1758
      %v1760 = vshrl.u32 %v1426, 16
      %v1762 = vrot.slane %v1760, 4
      %v1763 = vor.u32 %v1762, %v1758
      %v1764 = vrot.slane %v1763, 4
      %v1766 = vshll.u32 %v1427, 16
      %v1768 = vrot.slane %v1766, 5
      %v1769 = vsel %vm335, %v1764, %v1768
      %v1771 = vshrl.u32 %v1428, 16
      %v1773 = vrot.slane %v1771, 4
      %v1774 = vshll.u32 %v1428, 16
      %v1776 = vrot.slane %v1774, 5
      %v1777 = vor.u32 %v1773, %v1776
      %v1778 = vrot.slane %v1777, 4
      %v1780 = vshll.u32 %v1429, 16
      %v1782 = vrot.slane %v1780, 5
      %v1783 = vsel %vm335, %v1778, %v1782
      %v1784 = vshrl.u32 %v1429, 16
      %v1786 = vrot.slane %v1784, 4
      %v1787 = vor.u32 %v1786, %v1782
      %v1788 = vrot.slane %v1787, 4
      %v1790 = vshll.u32 %v1430, 16
      %v1792 = vrot.slane %v1790, 5
      %v1793 = vsel %vm335, %v1788, %v1792
      %v1795 = vshrl.u32 %v1431, 16
      %v1797 = vrot.slane %v1795, 4
      %v1798 = vshll.u32 %v1431, 16
      %v1800 = vrot.slane %v1798, 5
      %v1801 = vor.u32 %v1797, %v1800
      %v1802 = vrot.slane %v1801, 4
      %v1804 = vshll.u32 %v1432, 16
      %v1806 = vrot.slane %v1804, 5
      %v1807 = vsel %vm335, %v1802, %v1806
      %v1808 = vshrl.u32 %v1432, 16
      %v1810 = vrot.slane %v1808, 4
      %v1811 = vor.u32 %v1810, %v1806
      %v1812 = vrot.slane %v1811, 4
      %v1814 = vshll.u32 %v1433, 16
      %v1816 = vrot.slane %v1814, 5
      %v1817 = vsel %vm335, %v1812, %v1816
      %1818 = vrot.lane.b32.xlu0 %v1447, 16
      %v1819 = vpop.permute.xlu0 %1818
      %1820 = vrot.lane.b32.xlu0 %v1457, 16
      %v1821 = vpop.permute.xlu0 %1820
      %1822 = vrot.lane.b32.xlu0 %v1471, 16
      %v1823 = vpop.permute.xlu0 %1822
      %1824 = vrot.lane.b32.xlu0 %v1481, 16
      %v1825 = vpop.permute.xlu0 %1824
      %1826 = vrot.lane.b32.xlu0 %v1495, 16
      %v1827 = vpop.permute.xlu0 %1826
      %1828 = vrot.lane.b32.xlu0 %v1505, 16
      %v1829 = vpop.permute.xlu0 %1828
      %1830 = vrot.lane.b32.xlu0 %v1519, 16
      %v1831 = vpop.permute.xlu0 %1830
      %1832 = vrot.lane.b32.xlu0 %v1529, 16
      %v1833 = vpop.permute.xlu0 %1832
      %1834 = vrot.lane.b32.xlu0 %v1543, 16
      %v1835 = vpop.permute.xlu0 %1834
      %1836 = vrot.lane.b32.xlu0 %v1553, 16
      %v1837 = vpop.permute.xlu0 %1836
      %1838 = vrot.lane.b32.xlu0 %v1567, 16
      %v1839 = vpop.permute.xlu0 %1838
      %1840 = vrot.lane.b32.xlu0 %v1577, 16
      %v1841 = vpop.permute.xlu0 %1840
      %1842 = vrot.lane.b32.xlu0 %v1591, 16
      %v1843 = vpop.permute.xlu0 %1842
      %1844 = vrot.lane.b32.xlu0 %v1601, 16
      %v1845 = vpop.permute.xlu0 %1844
      %1846 = vrot.lane.b32.xlu0 %v1615, 16
      %v1847 = vpop.permute.xlu0 %1846
      %1848 = vrot.lane.b32.xlu0 %v1625, 16
      %v1849 = vpop.permute.xlu0 %1848
      %1850 = vrot.lane.b32.xlu0 %v1639, 16
      %v1851 = vpop.permute.xlu0 %1850
      %1852 = vrot.lane.b32.xlu0 %v1649, 16
      %v1853 = vpop.permute.xlu0 %1852
      %1854 = vrot.lane.b32.xlu0 %v1663, 16
      %v1855 = vpop.permute.xlu0 %1854
      %1856 = vrot.lane.b32.xlu0 %v1673, 16
      %v1857 = vpop.permute.xlu0 %1856
      %1858 = vrot.lane.b32.xlu0 %v1687, 16
      %v1859 = vpop.permute.xlu0 %1858
      %1860 = vrot.lane.b32.xlu0 %v1697, 16
      %v1861 = vpop.permute.xlu0 %1860
      %1862 = vrot.lane.b32.xlu0 %v1711, 16
      %v1863 = vpop.permute.xlu0 %1862
      %1864 = vrot.lane.b32.xlu0 %v1721, 16
      %v1865 = vpop.permute.xlu0 %1864
      %1866 = vrot.lane.b32.xlu0 %v1735, 16
      %v1867 = vpop.permute.xlu0 %1866
      %1868 = vrot.lane.b32.xlu0 %v1745, 16
      %v1869 = vpop.permute.xlu0 %1868
      %1870 = vrot.lane.b32.xlu0 %v1759, 16
      %v1871 = vpop.permute.xlu0 %1870
      %1872 = vrot.lane.b32.xlu0 %v1769, 16
      %v1873 = vpop.permute.xlu0 %1872
      %1874 = vrot.lane.b32.xlu0 %v1783, 16
      %v1875 = vpop.permute.xlu0 %1874
      %1876 = vrot.lane.b32.xlu0 %v1793, 16
      %v1877 = vpop.permute.xlu0 %1876
      %1878 = vrot.lane.b32.xlu0 %v1807, 16
      %v1879 = vpop.permute.xlu0 %1878
      %1880 = vrot.lane.b32.xlu0 %v1817, 16
      %v1881 = vpop.permute.xlu0 %1880
      %vm1914 = vcmask 158848
      %1915 = vst.msk [vmem:[#allocation2] sm:$0xf] %vm1914, %v1819
      %1916 = vst.msk [vmem:[#allocation2 + $0x4] sm:$0xf] %vm1914, %v1821
      %1917 = vst.msk [vmem:[#allocation2 + $0x8] sm:$0xf] %vm1914, %v1823
      %1918 = vst.msk [vmem:[#allocation2 + $0xc] sm:$0xf] %vm1914, %v1825
      %1919 = vst.msk [vmem:[#allocation2 + $0x10] sm:$0xf] %vm1914, %v1827
      %1920 = vst.msk [vmem:[#allocation2 + $0x14] sm:$0xf] %vm1914, %v1829
      %1921 = vst.msk [vmem:[#allocation2 + $0x18] sm:$0xf] %vm1914, %v1831
      %1922 = vst.msk [vmem:[#allocation2 + $0x1c] sm:$0xf] %vm1914, %v1833
      %1923 = vst.msk [vmem:[#allocation2 + $0x20] sm:$0xf] %vm1914, %v1835
      %1924 = vst.msk [vmem:[#allocation2 + $0x24] sm:$0xf] %vm1914, %v1837
      %1925 = vst.msk [vmem:[#allocation2 + $0x28] sm:$0xf] %vm1914, %v1839
      %1926 = vst.msk [vmem:[#allocation2 + $0x2c] sm:$0xf] %vm1914, %v1841
      %1927 = vst.msk [vmem:[#allocation2 + $0x30] sm:$0xf] %vm1914, %v1843
      %1928 = vst.msk [vmem:[#allocation2 + $0x34] sm:$0xf] %vm1914, %v1845
      %1929 = vst.msk [vmem:[#allocation2 + $0x38] sm:$0xf] %vm1914, %v1847
      %1930 = vst.msk [vmem:[#allocation2 + $0x3c] sm:$0xf] %vm1914, %v1849
      %1931 = vst.msk [vmem:[#allocation2 + $0x40] sm:$0xf] %vm1914, %v1851
      %1932 = vst.msk [vmem:[#allocation2 + $0x44] sm:$0xf] %vm1914, %v1853
      %1933 = vst.msk [vmem:[#allocation2 + $0x48] sm:$0xf] %vm1914, %v1855
      %1934 = vst.msk [vmem:[#allocation2 + $0x4c] sm:$0xf] %vm1914, %v1857
      %1935 = vst.msk [vmem:[#allocation2 + $0x50] sm:$0xf] %vm1914, %v1859
      %1936 = vst.msk [vmem:[#allocation2 + $0x54] sm:$0xf] %vm1914, %v1861
      %1937 = vst.msk [vmem:[#allocation2 + $0x58] sm:$0xf] %vm1914, %v1863
      %1938 = vst.msk [vmem:[#allocation2 + $0x5c] sm:$0xf] %vm1914, %v1865
      %1939 = vst.msk [vmem:[#allocation2 + $0x60] sm:$0xf] %vm1914, %v1867
      %1940 = vst.msk [vmem:[#allocation2 + $0x64] sm:$0xf] %vm1914, %v1869
      %1941 = vst.msk [vmem:[#allocation2 + $0x68] sm:$0xf] %vm1914, %v1871
      %1942 = vst.msk [vmem:[#allocation2 + $0x6c] sm:$0xf] %vm1914, %v1873
      %1943 = vst.msk [vmem:[#allocation2 + $0x70] sm:$0xf] %vm1914, %v1875
      %1944 = vst.msk [vmem:[#allocation2 + $0x74] sm:$0xf] %vm1914, %v1877
      %1945 = vst.msk [vmem:[#allocation2 + $0x78] sm:$0xf] %vm1914, %v1879
      %1946 = vst.msk [vmem:[#allocation2 + $0x7c] sm:$0xf] %vm1914, %v1881
      %v1947 = vld [vmem:[%s1192] sm:$0xe]
      %v1948 = vld [vmem:[%s1192 + $0x4] sm:$0xf]
      %v1949 = vld [vmem:[%s1192 + $0x8] sm:$0x1]
      %v1950 = vld [vmem:[%s1192 + $0xc] sm:$0xe]
      %v1951 = vld [vmem:[%s1192 + $0x10] sm:$0xf]
      %v1952 = vld [vmem:[%s1192 + $0x14] sm:$0x1]
      %v1953 = vld [vmem:[%s1192 + $0x18] sm:$0xe]
      %v1954 = vld [vmem:[%s1192 + $0x1c] sm:$0xf]
      %v1955 = vld [vmem:[%s1192 + $0x20] sm:$0x1]
      %v1956 = vld [vmem:[%s1192 + $0x24] sm:$0xe]
      %v1957 = vld [vmem:[%s1192 + $0x28] sm:$0xf]
      %v1958 = vld [vmem:[%s1192 + $0x2c] sm:$0x1]
      %v1959 = vld [vmem:[%s1192 + $0x30] sm:$0xe]
      %v1960 = vld [vmem:[%s1192 + $0x34] sm:$0xf]
      %v1961 = vld [vmem:[%s1192 + $0x38] sm:$0x1]
      %v1962 = vld [vmem:[%s1192 + $0x3c] sm:$0xe]
      %v1963 = vld [vmem:[%s1192 + $0x40] sm:$0xf]
      %v1964 = vld [vmem:[%s1192 + $0x44] sm:$0x1]
      %v1965 = vld [vmem:[%s1192 + $0x48] sm:$0xe]
      %v1966 = vld [vmem:[%s1192 + $0x4c] sm:$0xf]
      %v1967 = vld [vmem:[%s1192 + $0x50] sm:$0x1]
      %v1968 = vld [vmem:[%s1192 + $0x54] sm:$0xe]
      %v1969 = vld [vmem:[%s1192 + $0x58] sm:$0xf]
      %v1970 = vld [vmem:[%s1192 + $0x5c] sm:$0x1]
      %v1971 = vld [vmem:[%s1192 + $0x60] sm:$0xe]
      %v1972 = vld [vmem:[%s1192 + $0x64] sm:$0xf]
      %v1973 = vld [vmem:[%s1192 + $0x68] sm:$0x1]
      %v1974 = vld [vmem:[%s1192 + $0x6c] sm:$0xe]
      %v1975 = vld [vmem:[%s1192 + $0x70] sm:$0xf]
      %v1976 = vld [vmem:[%s1192 + $0x74] sm:$0x1]
      %v1977 = vld [vmem:[%s1192 + $0x78] sm:$0xe]
      %v1978 = vld [vmem:[%s1192 + $0x7c] sm:$0xf]
      %v1979 = vld [vmem:[%s1192 + $0x80] sm:$0x1]
      %v1980 = vld [vmem:[%s1192 + $0x84] sm:$0xe]
      %v1981 = vld [vmem:[%s1192 + $0x88] sm:$0xf]
      %v1982 = vld [vmem:[%s1192 + $0x8c] sm:$0x1]
      %v1983 = vld [vmem:[%s1192 + $0x90] sm:$0xe]
      %v1984 = vld [vmem:[%s1192 + $0x94] sm:$0xf]
      %v1985 = vld [vmem:[%s1192 + $0x98] sm:$0x1]
      %v1986 = vld [vmem:[%s1192 + $0x9c] sm:$0xe]
      %v1987 = vld [vmem:[%s1192 + $0xa0] sm:$0xf]
      %v1988 = vld [vmem:[%s1192 + $0xa4] sm:$0x1]
      %v1989 = vld [vmem:[%s1192 + $0xa8] sm:$0xe]
      %v1990 = vld [vmem:[%s1192 + $0xac] sm:$0xf]
      %v1991 = vld [vmem:[%s1192 + $0xb0] sm:$0x1]
      %v1992 = vld [vmem:[%s1192 + $0xb4] sm:$0xe]
      %v1993 = vld [vmem:[%s1192 + $0xb8] sm:$0xf]
      %v1994 = vld [vmem:[%s1192 + $0xbc] sm:$0x1]
      %v2043 = vrot.slane %v1947, 5
      %v2044 = vrot.slane %v2043, 4
      %v2045 = vrot.slane %v1948, 5
      %v2046 = vsel %vm947, %v2044, %v2045
      %v2047 = vrot.slane %v2045, 4
      %v2048 = vrot.slane %v1949, 5
      %v2049 = vsel %vm947, %v2047, %v2048
      %v2050 = vrot.slane %v1950, 5
      %v2051 = vrot.slane %v2050, 4
      %v2052 = vrot.slane %v1951, 5
      %v2053 = vsel %vm947, %v2051, %v2052
      %v2054 = vrot.slane %v2052, 4
      %v2055 = vrot.slane %v1952, 5
      %v2056 = vsel %vm947, %v2054, %v2055
      %v2057 = vrot.slane %v1953, 5
      %v2058 = vrot.slane %v2057, 4
      %v2059 = vrot.slane %v1954, 5
      %v2060 = vsel %vm947, %v2058, %v2059
      %v2061 = vrot.slane %v2059, 4
      %v2062 = vrot.slane %v1955, 5
      %v2063 = vsel %vm947, %v2061, %v2062
      %v2064 = vrot.slane %v1956, 5
      %v2065 = vrot.slane %v2064, 4
      %v2066 = vrot.slane %v1957, 5
      %v2067 = vsel %vm947, %v2065, %v2066
      %v2068 = vrot.slane %v2066, 4
      %v2069 = vrot.slane %v1958, 5
      %v2070 = vsel %vm947, %v2068, %v2069
      %v2071 = vrot.slane %v1959, 5
      %v2072 = vrot.slane %v2071, 4
      %v2073 = vrot.slane %v1960, 5
      %v2074 = vsel %vm947, %v2072, %v2073
      %v2075 = vrot.slane %v2073, 4
      %v2076 = vrot.slane %v1961, 5
      %v2077 = vsel %vm947, %v2075, %v2076
      %v2078 = vrot.slane %v1962, 5
      %v2079 = vrot.slane %v2078, 4
      %v2080 = vrot.slane %v1963, 5
      %v2081 = vsel %vm947, %v2079, %v2080
      %v2082 = vrot.slane %v2080, 4
      %v2083 = vrot.slane %v1964, 5
      %v2084 = vsel %vm947, %v2082, %v2083
      %v2085 = vrot.slane %v1965, 5
      %v2086 = vrot.slane %v2085, 4
      %v2087 = vrot.slane %v1966, 5
      %v2088 = vsel %vm947, %v2086, %v2087
      %v2089 = vrot.slane %v2087, 4
      %v2090 = vrot.slane %v1967, 5
      %v2091 = vsel %vm947, %v2089, %v2090
      %v2092 = vrot.slane %v1968, 5
      %v2093 = vrot.slane %v2092, 4
      %v2094 = vrot.slane %v1969, 5
      %v2095 = vsel %vm947, %v2093, %v2094
      %v2096 = vrot.slane %v2094, 4
      %v2097 = vrot.slane %v1970, 5
      %v2098 = vsel %vm947, %v2096, %v2097
      %v2099 = vrot.slane %v1971, 5
      %v2100 = vrot.slane %v2099, 4
      %v2101 = vrot.slane %v1972, 5
      %v2102 = vsel %vm947, %v2100, %v2101
      %v2103 = vrot.slane %v2101, 4
      %v2104 = vrot.slane %v1973, 5
      %v2105 = vsel %vm947, %v2103, %v2104
      %v2106 = vrot.slane %v1974, 5
      %v2107 = vrot.slane %v2106, 4
      %v2108 = vrot.slane %v1975, 5
      %v2109 = vsel %vm947, %v2107, %v2108
      %v2110 = vrot.slane %v2108, 4
      %v2111 = vrot.slane %v1976, 5
      %v2112 = vsel %vm947, %v2110, %v2111
      %v2113 = vrot.slane %v1977, 5
      %v2114 = vrot.slane %v2113, 4
      %v2115 = vrot.slane %v1978, 5
      %v2116 = vsel %vm947, %v2114, %v2115
      %v2117 = vrot.slane %v2115, 4
      %v2118 = vrot.slane %v1979, 5
      %v2119 = vsel %vm947, %v2117, %v2118
      %v2120 = vrot.slane %v1980, 5
      %v2121 = vrot.slane %v2120, 4
      %v2122 = vrot.slane %v1981, 5
      %v2123 = vsel %vm947, %v2121, %v2122
      %v2124 = vrot.slane %v2122, 4
      %v2125 = vrot.slane %v1982, 5
      %v2126 = vsel %vm947, %v2124, %v2125
      %v2127 = vrot.slane %v1983, 5
      %v2128 = vrot.slane %v2127, 4
      %v2129 = vrot.slane %v1984, 5
      %v2130 = vsel %vm947, %v2128, %v2129
      %v2131 = vrot.slane %v2129, 4
      %v2132 = vrot.slane %v1985, 5
      %v2133 = vsel %vm947, %v2131, %v2132
      %v2134 = vrot.slane %v1986, 5
      %v2135 = vrot.slane %v2134, 4
      %v2136 = vrot.slane %v1987, 5
      %v2137 = vsel %vm947, %v2135, %v2136
      %v2138 = vrot.slane %v2136, 4
      %v2139 = vrot.slane %v1988, 5
      %v2140 = vsel %vm947, %v2138, %v2139
      %v2141 = vrot.slane %v1989, 5
      %v2142 = vrot.slane %v2141, 4
      %v2143 = vrot.slane %v1990, 5
      %v2144 = vsel %vm947, %v2142, %v2143
      %v2145 = vrot.slane %v2143, 4
      %v2146 = vrot.slane %v1991, 5
      %v2147 = vsel %vm947, %v2145, %v2146
      %v2148 = vrot.slane %v1992, 5
      %v2149 = vrot.slane %v2148, 4
      %v2150 = vrot.slane %v1993, 5
      %v2151 = vsel %vm947, %v2149, %v2150
      %v2152 = vrot.slane %v2150, 4
      %v2153 = vrot.slane %v1994, 5
      %v2154 = vsel %vm947, %v2152, %v2153
      %2155 = vrot.lane.b32.xlu0 %v2046, 20
      %v2156 = vpop.permute.xlu0 %2155
      %2157 = vrot.lane.b32.xlu0 %v2049, 20
      %v2158 = vpop.permute.xlu0 %2157
      %2159 = vrot.lane.b32.xlu0 %v2053, 20
      %v2160 = vpop.permute.xlu0 %2159
      %2161 = vrot.lane.b32.xlu0 %v2056, 20
      %v2162 = vpop.permute.xlu0 %2161
      %2163 = vrot.lane.b32.xlu0 %v2060, 20
      %v2164 = vpop.permute.xlu0 %2163
      %2165 = vrot.lane.b32.xlu0 %v2063, 20
      %v2166 = vpop.permute.xlu0 %2165
      %2167 = vrot.lane.b32.xlu0 %v2067, 20
      %v2168 = vpop.permute.xlu0 %2167
      %2169 = vrot.lane.b32.xlu0 %v2070, 20
      %v2170 = vpop.permute.xlu0 %2169
      %2171 = vrot.lane.b32.xlu0 %v2074, 20
      %v2172 = vpop.permute.xlu0 %2171
      %2173 = vrot.lane.b32.xlu0 %v2077, 20
      %v2174 = vpop.permute.xlu0 %2173
      %2175 = vrot.lane.b32.xlu0 %v2081, 20
      %v2176 = vpop.permute.xlu0 %2175
      %2177 = vrot.lane.b32.xlu0 %v2084, 20
      %v2178 = vpop.permute.xlu0 %2177
      %2179 = vrot.lane.b32.xlu0 %v2088, 20
      %v2180 = vpop.permute.xlu0 %2179
      %2181 = vrot.lane.b32.xlu0 %v2091, 20
      %v2182 = vpop.permute.xlu0 %2181
      %2183 = vrot.lane.b32.xlu0 %v2095, 20
      %v2184 = vpop.permute.xlu0 %2183
      %2185 = vrot.lane.b32.xlu0 %v2098, 20
      %v2186 = vpop.permute.xlu0 %2185
      %2187 = vrot.lane.b32.xlu0 %v2102, 20
      %v2188 = vpop.permute.xlu0 %2187
      %2189 = vrot.lane.b32.xlu0 %v2105, 20
      %v2190 = vpop.permute.xlu0 %2189
      %2191 = vrot.lane.b32.xlu0 %v2109, 20
      %v2192 = vpop.permute.xlu0 %2191
      %2193 = vrot.lane.b32.xlu0 %v2112, 20
      %v2194 = vpop.permute.xlu0 %2193
      %2195 = vrot.lane.b32.xlu0 %v2116, 20
      %v2196 = vpop.permute.xlu0 %2195
      %2197 = vrot.lane.b32.xlu0 %v2119, 20
      %v2198 = vpop.permute.xlu0 %2197
      %2199 = vrot.lane.b32.xlu0 %v2123, 20
      %v2200 = vpop.permute.xlu0 %2199
      %2201 = vrot.lane.b32.xlu0 %v2126, 20
      %v2202 = vpop.permute.xlu0 %2201
      %2203 = vrot.lane.b32.xlu0 %v2130, 20
      %v2204 = vpop.permute.xlu0 %2203
      %2205 = vrot.lane.b32.xlu0 %v2133, 20
      %v2206 = vpop.permute.xlu0 %2205
      %2207 = vrot.lane.b32.xlu0 %v2137, 20
      %v2208 = vpop.permute.xlu0 %2207
      %2209 = vrot.lane.b32.xlu0 %v2140, 20
      %v2210 = vpop.permute.xlu0 %2209
      %2211 = vrot.lane.b32.xlu0 %v2144, 20
      %v2212 = vpop.permute.xlu0 %2211
      %2213 = vrot.lane.b32.xlu0 %v2147, 20
      %v2214 = vpop.permute.xlu0 %2213
      %2215 = vrot.lane.b32.xlu0 %v2151, 20
      %v2216 = vpop.permute.xlu0 %2215
      %2217 = vrot.lane.b32.xlu0 %v2154, 20
      %v2218 = vpop.permute.xlu0 %2217
      %vm2251 = vcmask 191648
      %2252 = vst.msk [vmem:[#allocation2] sm:$0xf] %vm2251, %v2156
      %2253 = vst.msk [vmem:[#allocation2 + $0x4] sm:$0xf] %vm2251, %v2158
      %2254 = vst.msk [vmem:[#allocation2 + $0x8] sm:$0xf] %vm2251, %v2160
      %2255 = vst.msk [vmem:[#allocation2 + $0xc] sm:$0xf] %vm2251, %v2162
      %2256 = vst.msk [vmem:[#allocation2 + $0x10] sm:$0xf] %vm2251, %v2164
      %2257 = vst.msk [vmem:[#allocation2 + $0x14] sm:$0xf] %vm2251, %v2166
      %2258 = vst.msk [vmem:[#allocation2 + $0x18] sm:$0xf] %vm2251, %v2168
      %2259 = vst.msk [vmem:[#allocation2 + $0x1c] sm:$0xf] %vm2251, %v2170
      %2260 = vst.msk [vmem:[#allocation2 + $0x20] sm:$0xf] %vm2251, %v2172
      %2261 = vst.msk [vmem:[#allocation2 + $0x24] sm:$0xf] %vm2251, %v2174
      %2262 = vst.msk [vmem:[#allocation2 + $0x28] sm:$0xf] %vm2251, %v2176
      %2263 = vst.msk [vmem:[#allocation2 + $0x2c] sm:$0xf] %vm2251, %v2178
      %2264 = vst.msk [vmem:[#allocation2 + $0x30] sm:$0xf] %vm2251, %v2180
      %2265 = vst.msk [vmem:[#allocation2 + $0x34] sm:$0xf] %vm2251, %v2182
      %2266 = vst.msk [vmem:[#allocation2 + $0x38] sm:$0xf] %vm2251, %v2184
      %2267 = vst.msk [vmem:[#allocation2 + $0x3c] sm:$0xf] %vm2251, %v2186
      %2268 = vst.msk [vmem:[#allocation2 + $0x40] sm:$0xf] %vm2251, %v2188
      %2269 = vst.msk [vmem:[#allocation2 + $0x44] sm:$0xf] %vm2251, %v2190
      %2270 = vst.msk [vmem:[#allocation2 + $0x48] sm:$0xf] %vm2251, %v2192
      %2271 = vst.msk [vmem:[#allocation2 + $0x4c] sm:$0xf] %vm2251, %v2194
      %2272 = vst.msk [vmem:[#allocation2 + $0x50] sm:$0xf] %vm2251, %v2196
      %2273 = vst.msk [vmem:[#allocation2 + $0x54] sm:$0xf] %vm2251, %v2198
      %2274 = vst.msk [vmem:[#allocation2 + $0x58] sm:$0xf] %vm2251, %v2200
      %2275 = vst.msk [vmem:[#allocation2 + $0x5c] sm:$0xf] %vm2251, %v2202
      %2276 = vst.msk [vmem:[#allocation2 + $0x60] sm:$0xf] %vm2251, %v2204
      %2277 = vst.msk [vmem:[#allocation2 + $0x64] sm:$0xf] %vm2251, %v2206
      %2278 = vst.msk [vmem:[#allocation2 + $0x68] sm:$0xf] %vm2251, %v2208
      %2279 = vst.msk [vmem:[#allocation2 + $0x6c] sm:$0xf] %vm2251, %v2210
      %2280 = vst.msk [vmem:[#allocation2 + $0x70] sm:$0xf] %vm2251, %v2212
      %2281 = vst.msk [vmem:[#allocation2 + $0x74] sm:$0xf] %vm2251, %v2214
      %2282 = vst.msk [vmem:[#allocation2 + $0x78] sm:$0xf] %vm2251, %v2216
      %2283 = vst.msk [vmem:[#allocation2 + $0x7c] sm:$0xf] %vm2251, %v2218
      %s2284 = sadd.s32 %s216, 2
      %s2285 = smul.u32 %s2284, 3
      %s2286 = smul.addr %s2285, 4
      %s2287 = scalar_lea.vmem %s196, %s2286
      %v2288 = vld [vmem:[%s2287] sm:$0xf]
      %v2289 = vld [vmem:[%s2287 + $0x4] sm:$0xf]
      %v2290 = vld [vmem:[%s2287 + $0xc] sm:$0xf]
      %v2291 = vld [vmem:[%s2287 + $0x10] sm:$0xf]
      %v2292 = vld [vmem:[%s2287 + $0x18] sm:$0xf]
      %v2293 = vld [vmem:[%s2287 + $0x1c] sm:$0xf]
      %v2294 = vld [vmem:[%s2287 + $0x24] sm:$0xf]
      %v2295 = vld [vmem:[%s2287 + $0x28] sm:$0xf]
      %v2296 = vld [vmem:[%s2287 + $0x30] sm:$0xf]
      %v2297 = vld [vmem:[%s2287 + $0x34] sm:$0xf]
      %v2298 = vld [vmem:[%s2287 + $0x3c] sm:$0xf]
      %v2299 = vld [vmem:[%s2287 + $0x40] sm:$0xf]
      %v2300 = vld [vmem:[%s2287 + $0x48] sm:$0xf]
      %v2301 = vld [vmem:[%s2287 + $0x4c] sm:$0xf]
      %v2302 = vld [vmem:[%s2287 + $0x54] sm:$0xf]
      %v2303 = vld [vmem:[%s2287 + $0x58] sm:$0xf]
      %v2304 = vld [vmem:[%s2287 + $0x60] sm:$0xf]
      %v2305 = vld [vmem:[%s2287 + $0x64] sm:$0xf]
      %v2306 = vld [vmem:[%s2287 + $0x6c] sm:$0xf]
      %v2307 = vld [vmem:[%s2287 + $0x70] sm:$0xf]
      %v2308 = vld [vmem:[%s2287 + $0x78] sm:$0xf]
      %v2309 = vld [vmem:[%s2287 + $0x7c] sm:$0xf]
      %v2310 = vld [vmem:[%s2287 + $0x84] sm:$0xf]
      %v2311 = vld [vmem:[%s2287 + $0x88] sm:$0xf]
      %v2312 = vld [vmem:[%s2287 + $0x90] sm:$0xf]
      %v2313 = vld [vmem:[%s2287 + $0x94] sm:$0xf]
      %v2314 = vld [vmem:[%s2287 + $0x9c] sm:$0xf]
      %v2315 = vld [vmem:[%s2287 + $0xa0] sm:$0xf]
      %v2316 = vld [vmem:[%s2287 + $0xa8] sm:$0xf]
      %v2317 = vld [vmem:[%s2287 + $0xac] sm:$0xf]
      %v2318 = vld [vmem:[%s2287 + $0xb4] sm:$0xf]
      %v2319 = vld [vmem:[%s2287 + $0xb8] sm:$0xf]
      %2352 = vrot.lane.b32.xlu0 %v2288, 24
      %v2353 = vpop.permute.xlu0 %2352
      %2354 = vrot.lane.b32.xlu0 %v2289, 24
      %v2355 = vpop.permute.xlu0 %2354
      %2356 = vrot.lane.b32.xlu0 %v2290, 24
      %v2357 = vpop.permute.xlu0 %2356
      %2358 = vrot.lane.b32.xlu0 %v2291, 24
      %v2359 = vpop.permute.xlu0 %2358
      %2360 = vrot.lane.b32.xlu0 %v2292, 24
      %v2361 = vpop.permute.xlu0 %2360
      %2362 = vrot.lane.b32.xlu0 %v2293, 24
      %v2363 = vpop.permute.xlu0 %2362
      %2364 = vrot.lane.b32.xlu0 %v2294, 24
      %v2365 = vpop.permute.xlu0 %2364
      %2366 = vrot.lane.b32.xlu0 %v2295, 24
      %v2367 = vpop.permute.xlu0 %2366
      %2368 = vrot.lane.b32.xlu0 %v2296, 24
      %v2369 = vpop.permute.xlu0 %2368
      %2370 = vrot.lane.b32.xlu0 %v2297, 24
      %v2371 = vpop.permute.xlu0 %2370
      %2372 = vrot.lane.b32.xlu0 %v2298, 24
      %v2373 = vpop.permute.xlu0 %2372
      %2374 = vrot.lane.b32.xlu0 %v2299, 24
      %v2375 = vpop.permute.xlu0 %2374
      %2376 = vrot.lane.b32.xlu0 %v2300, 24
      %v2377 = vpop.permute.xlu0 %2376
      %2378 = vrot.lane.b32.xlu0 %v2301, 24
      %v2379 = vpop.permute.xlu0 %2378
      %2380 = vrot.lane.b32.xlu0 %v2302, 24
      %v2381 = vpop.permute.xlu0 %2380
      %2382 = vrot.lane.b32.xlu0 %v2303, 24
      %v2383 = vpop.permute.xlu0 %2382
      %2384 = vrot.lane.b32.xlu0 %v2304, 24
      %v2385 = vpop.permute.xlu0 %2384
      %2386 = vrot.lane.b32.xlu0 %v2305, 24
      %v2387 = vpop.permute.xlu0 %2386
      %2388 = vrot.lane.b32.xlu0 %v2306, 24
      %v2389 = vpop.permute.xlu0 %2388
      %2390 = vrot.lane.b32.xlu0 %v2307, 24
      %v2391 = vpop.permute.xlu0 %2390
      %2392 = vrot.lane.b32.xlu0 %v2308, 24
      %v2393 = vpop.permute.xlu0 %2392
      %2394 = vrot.lane.b32.xlu0 %v2309, 24
      %v2395 = vpop.permute.xlu0 %2394
      %2396 = vrot.lane.b32.xlu0 %v2310, 24
      %v2397 = vpop.permute.xlu0 %2396
      %2398 = vrot.lane.b32.xlu0 %v2311, 24
      %v2399 = vpop.permute.xlu0 %2398
      %2400 = vrot.lane.b32.xlu0 %v2312, 24
      %v2401 = vpop.permute.xlu0 %2400
      %2402 = vrot.lane.b32.xlu0 %v2313, 24
      %v2403 = vpop.permute.xlu0 %2402
      %2404 = vrot.lane.b32.xlu0 %v2314, 24
      %v2405 = vpop.permute.xlu0 %2404
      %2406 = vrot.lane.b32.xlu0 %v2315, 24
      %v2407 = vpop.permute.xlu0 %2406
      %2408 = vrot.lane.b32.xlu0 %v2316, 24
      %v2409 = vpop.permute.xlu0 %2408
      %2410 = vrot.lane.b32.xlu0 %v2317, 24
      %v2411 = vpop.permute.xlu0 %2410
      %2412 = vrot.lane.b32.xlu0 %v2318, 24
      %v2413 = vpop.permute.xlu0 %2412
      %2414 = vrot.lane.b32.xlu0 %v2319, 24
      %v2415 = vpop.permute.xlu0 %2414
      %vm2448 = vcmask 224448
      %2449 = vst.msk [vmem:[#allocation2] sm:$0xf] %vm2448, %v2353
      %2450 = vst.msk [vmem:[#allocation2 + $0x4] sm:$0xf] %vm2448, %v2355
      %2451 = vst.msk [vmem:[#allocation2 + $0x8] sm:$0xf] %vm2448, %v2357
      %2452 = vst.msk [vmem:[#allocation2 + $0xc] sm:$0xf] %vm2448, %v2359
      %2453 = vst.msk [vmem:[#allocation2 + $0x10] sm:$0xf] %vm2448, %v2361
      %2454 = vst.msk [vmem:[#allocation2 + $0x14] sm:$0xf] %vm2448, %v2363
      %2455 = vst.msk [vmem:[#allocation2 + $0x18] sm:$0xf] %vm2448, %v2365
      %2456 = vst.msk [vmem:[#allocation2 + $0x1c] sm:$0xf] %vm2448, %v2367
      %2457 = vst.msk [vmem:[#allocation2 + $0x20] sm:$0xf] %vm2448, %v2369
      %2458 = vst.msk [vmem:[#allocation2 + $0x24] sm:$0xf] %vm2448, %v2371
      %2459 = vst.msk [vmem:[#allocation2 + $0x28] sm:$0xf] %vm2448, %v2373
      %2460 = vst.msk [vmem:[#allocation2 + $0x2c] sm:$0xf] %vm2448, %v2375
      %2461 = vst.msk [vmem:[#allocation2 + $0x30] sm:$0xf] %vm2448, %v2377
      %2462 = vst.msk [vmem:[#allocation2 + $0x34] sm:$0xf] %vm2448, %v2379
      %2463 = vst.msk [vmem:[#allocation2 + $0x38] sm:$0xf] %vm2448, %v2381
      %2464 = vst.msk [vmem:[#allocation2 + $0x3c] sm:$0xf] %vm2448, %v2383
      %2465 = vst.msk [vmem:[#allocation2 + $0x40] sm:$0xf] %vm2448, %v2385
      %2466 = vst.msk [vmem:[#allocation2 + $0x44] sm:$0xf] %vm2448, %v2387
      %2467 = vst.msk [vmem:[#allocation2 + $0x48] sm:$0xf] %vm2448, %v2389
      %2468 = vst.msk [vmem:[#allocation2 + $0x4c] sm:$0xf] %vm2448, %v2391
      %2469 = vst.msk [vmem:[#allocation2 + $0x50] sm:$0xf] %vm2448, %v2393
      %2470 = vst.msk [vmem:[#allocation2 + $0x54] sm:$0xf] %vm2448, %v2395
      %2471 = vst.msk [vmem:[#allocation2 + $0x58] sm:$0xf] %vm2448, %v2397
      %2472 = vst.msk [vmem:[#allocation2 + $0x5c] sm:$0xf] %vm2448, %v2399
      %2473 = vst.msk [vmem:[#allocation2 + $0x60] sm:$0xf] %vm2448, %v2401
      %2474 = vst.msk [vmem:[#allocation2 + $0x64] sm:$0xf] %vm2448, %v2403
      %2475 = vst.msk [vmem:[#allocation2 + $0x68] sm:$0xf] %vm2448, %v2405
      %2476 = vst.msk [vmem:[#allocation2 + $0x6c] sm:$0xf] %vm2448, %v2407
      %2477 = vst.msk [vmem:[#allocation2 + $0x70] sm:$0xf] %vm2448, %v2409
      %2478 = vst.msk [vmem:[#allocation2 + $0x74] sm:$0xf] %vm2448, %v2411
      %2479 = vst.msk [vmem:[#allocation2 + $0x78] sm:$0xf] %vm2448, %v2413
      %2480 = vst.msk [vmem:[#allocation2 + $0x7c] sm:$0xf] %vm2448, %v2415
      %v2481 = vld [vmem:[%s2287] sm:$0xf]
      %v2482 = vld [vmem:[%s2287 + $0x4] sm:$0xf]
      %v2483 = vld [vmem:[%s2287 + $0x8] sm:$0x1]
      %v2484 = vld [vmem:[%s2287 + $0xc] sm:$0xf]
      %v2485 = vld [vmem:[%s2287 + $0x10] sm:$0xf]
      %v2486 = vld [vmem:[%s2287 + $0x14] sm:$0x1]
      %v2487 = vld [vmem:[%s2287 + $0x18] sm:$0xf]
      %v2488 = vld [vmem:[%s2287 + $0x1c] sm:$0xf]
      %v2489 = vld [vmem:[%s2287 + $0x20] sm:$0x1]
      %v2490 = vld [vmem:[%s2287 + $0x24] sm:$0xf]
      %v2491 = vld [vmem:[%s2287 + $0x28] sm:$0xf]
      %v2492 = vld [vmem:[%s2287 + $0x2c] sm:$0x1]
      %v2493 = vld [vmem:[%s2287 + $0x30] sm:$0xf]
      %v2494 = vld [vmem:[%s2287 + $0x34] sm:$0xf]
      %v2495 = vld [vmem:[%s2287 + $0x38] sm:$0x1]
      %v2496 = vld [vmem:[%s2287 + $0x3c] sm:$0xf]
      %v2497 = vld [vmem:[%s2287 + $0x40] sm:$0xf]
      %v2498 = vld [vmem:[%s2287 + $0x44] sm:$0x1]
      %v2499 = vld [vmem:[%s2287 + $0x48] sm:$0xf]
      %v2500 = vld [vmem:[%s2287 + $0x4c] sm:$0xf]
      %v2501 = vld [vmem:[%s2287 + $0x50] sm:$0x1]
      %v2502 = vld [vmem:[%s2287 + $0x54] sm:$0xf]
      %v2503 = vld [vmem:[%s2287 + $0x58] sm:$0xf]
      %v2504 = vld [vmem:[%s2287 + $0x5c] sm:$0x1]
      %v2505 = vld [vmem:[%s2287 + $0x60] sm:$0xf]
      %v2506 = vld [vmem:[%s2287 + $0x64] sm:$0xf]
      %v2507 = vld [vmem:[%s2287 + $0x68] sm:$0x1]
      %v2508 = vld [vmem:[%s2287 + $0x6c] sm:$0xf]
      %v2509 = vld [vmem:[%s2287 + $0x70] sm:$0xf]
      %v2510 = vld [vmem:[%s2287 + $0x74] sm:$0x1]
      %v2511 = vld [vmem:[%s2287 + $0x78] sm:$0xf]
      %v2512 = vld [vmem:[%s2287 + $0x7c] sm:$0xf]
      %v2513 = vld [vmem:[%s2287 + $0x80] sm:$0x1]
      %v2514 = vld [vmem:[%s2287 + $0x84] sm:$0xf]
      %v2515 = vld [vmem:[%s2287 + $0x88] sm:$0xf]
      %v2516 = vld [vmem:[%s2287 + $0x8c] sm:$0x1]
      %v2517 = vld [vmem:[%s2287 + $0x90] sm:$0xf]
      %v2518 = vld [vmem:[%s2287 + $0x94] sm:$0xf]
      %v2519 = vld [vmem:[%s2287 + $0x98] sm:$0x1]
      %v2520 = vld [vmem:[%s2287 + $0x9c] sm:$0xf]
      %v2521 = vld [vmem:[%s2287 + $0xa0] sm:$0xf]
      %v2522 = vld [vmem:[%s2287 + $0xa4] sm:$0x1]
      %v2523 = vld [vmem:[%s2287 + $0xa8] sm:$0xf]
      %v2524 = vld [vmem:[%s2287 + $0xac] sm:$0xf]
      %v2525 = vld [vmem:[%s2287 + $0xb0] sm:$0x1]
      %v2526 = vld [vmem:[%s2287 + $0xb4] sm:$0xf]
      %v2527 = vld [vmem:[%s2287 + $0xb8] sm:$0xf]
      %v2528 = vld [vmem:[%s2287 + $0xbc] sm:$0x1]
      %v2530 = vshrl.u32 %v2481, 16
      %v2532 = vrot.slane %v2530, 4
      %v2533 = vshll.u32 %v2481, 16
      %v2535 = vrot.slane %v2533, 5
      %v2536 = vor.u32 %v2532, %v2535
      %v2537 = vrot.slane %v2536, 4
      %v2539 = vshll.u32 %v2482, 16
      %v2541 = vrot.slane %v2539, 5
      %v2542 = vsel %vm335, %v2537, %v2541
      %v2543 = vshrl.u32 %v2482, 16
      %v2545 = vrot.slane %v2543, 4
      %v2546 = vor.u32 %v2545, %v2541
      %v2547 = vrot.slane %v2546, 4
      %v2549 = vshll.u32 %v2483, 16
      %v2551 = vrot.slane %v2549, 5
      %v2552 = vsel %vm335, %v2547, %v2551
      %v2554 = vshrl.u32 %v2484, 16
      %v2556 = vrot.slane %v2554, 4
      %v2557 = vshll.u32 %v2484, 16
      %v2559 = vrot.slane %v2557, 5
      %v2560 = vor.u32 %v2556, %v2559
      %v2561 = vrot.slane %v2560, 4
      %v2563 = vshll.u32 %v2485, 16
      %v2565 = vrot.slane %v2563, 5
      %v2566 = vsel %vm335, %v2561, %v2565
      %v2567 = vshrl.u32 %v2485, 16
      %v2569 = vrot.slane %v2567, 4
      %v2570 = vor.u32 %v2569, %v2565
      %v2571 = vrot.slane %v2570, 4
      %v2573 = vshll.u32 %v2486, 16
      %v2575 = vrot.slane %v2573, 5
      %v2576 = vsel %vm335, %v2571, %v2575
      %v2578 = vshrl.u32 %v2487, 16
      %v2580 = vrot.slane %v2578, 4
      %v2581 = vshll.u32 %v2487, 16
      %v2583 = vrot.slane %v2581, 5
      %v2584 = vor.u32 %v2580, %v2583
      %v2585 = vrot.slane %v2584, 4
      %v2587 = vshll.u32 %v2488, 16
      %v2589 = vrot.slane %v2587, 5
      %v2590 = vsel %vm335, %v2585, %v2589
      %v2591 = vshrl.u32 %v2488, 16
      %v2593 = vrot.slane %v2591, 4
      %v2594 = vor.u32 %v2593, %v2589
      %v2595 = vrot.slane %v2594, 4
      %v2597 = vshll.u32 %v2489, 16
      %v2599 = vrot.slane %v2597, 5
      %v2600 = vsel %vm335, %v2595, %v2599
      %v2602 = vshrl.u32 %v2490, 16
      %v2604 = vrot.slane %v2602, 4
      %v2605 = vshll.u32 %v2490, 16
      %v2607 = vrot.slane %v2605, 5
      %v2608 = vor.u32 %v2604, %v2607
      %v2609 = vrot.slane %v2608, 4
      %v2611 = vshll.u32 %v2491, 16
      %v2613 = vrot.slane %v2611, 5
      %v2614 = vsel %vm335, %v2609, %v2613
      %v2615 = vshrl.u32 %v2491, 16
      %v2617 = vrot.slane %v2615, 4
      %v2618 = vor.u32 %v2617, %v2613
      %v2619 = vrot.slane %v2618, 4
      %v2621 = vshll.u32 %v2492, 16
      %v2623 = vrot.slane %v2621, 5
      %v2624 = vsel %vm335, %v2619, %v2623
      %v2626 = vshrl.u32 %v2493, 16
      %v2628 = vrot.slane %v2626, 4
      %v2629 = vshll.u32 %v2493, 16
      %v2631 = vrot.slane %v2629, 5
      %v2632 = vor.u32 %v2628, %v2631
      %v2633 = vrot.slane %v2632, 4
      %v2635 = vshll.u32 %v2494, 16
      %v2637 = vrot.slane %v2635, 5
      %v2638 = vsel %vm335, %v2633, %v2637
      %v2639 = vshrl.u32 %v2494, 16
      %v2641 = vrot.slane %v2639, 4
      %v2642 = vor.u32 %v2641, %v2637
      %v2643 = vrot.slane %v2642, 4
      %v2645 = vshll.u32 %v2495, 16
      %v2647 = vrot.slane %v2645, 5
      %v2648 = vsel %vm335, %v2643, %v2647
      %v2650 = vshrl.u32 %v2496, 16
      %v2652 = vrot.slane %v2650, 4
      %v2653 = vshll.u32 %v2496, 16
      %v2655 = vrot.slane %v2653, 5
      %v2656 = vor.u32 %v2652, %v2655
      %v2657 = vrot.slane %v2656, 4
      %v2659 = vshll.u32 %v2497, 16
      %v2661 = vrot.slane %v2659, 5
      %v2662 = vsel %vm335, %v2657, %v2661
      %v2663 = vshrl.u32 %v2497, 16
      %v2665 = vrot.slane %v2663, 4
      %v2666 = vor.u32 %v2665, %v2661
      %v2667 = vrot.slane %v2666, 4
      %v2669 = vshll.u32 %v2498, 16
      %v2671 = vrot.slane %v2669, 5
      %v2672 = vsel %vm335, %v2667, %v2671
      %v2674 = vshrl.u32 %v2499, 16
      %v2676 = vrot.slane %v2674, 4
      %v2677 = vshll.u32 %v2499, 16
      %v2679 = vrot.slane %v2677, 5
      %v2680 = vor.u32 %v2676, %v2679
      %v2681 = vrot.slane %v2680, 4
      %v2683 = vshll.u32 %v2500, 16
      %v2685 = vrot.slane %v2683, 5
      %v2686 = vsel %vm335, %v2681, %v2685
      %v2687 = vshrl.u32 %v2500, 16
      %v2689 = vrot.slane %v2687, 4
      %v2690 = vor.u32 %v2689, %v2685
      %v2691 = vrot.slane %v2690, 4
      %v2693 = vshll.u32 %v2501, 16
      %v2695 = vrot.slane %v2693, 5
      %v2696 = vsel %vm335, %v2691, %v2695
      %v2698 = vshrl.u32 %v2502, 16
      %v2700 = vrot.slane %v2698, 4
      %v2701 = vshll.u32 %v2502, 16
      %v2703 = vrot.slane %v2701, 5
      %v2704 = vor.u32 %v2700, %v2703
      %v2705 = vrot.slane %v2704, 4
      %v2707 = vshll.u32 %v2503, 16
      %v2709 = vrot.slane %v2707, 5
      %v2710 = vsel %vm335, %v2705, %v2709
      %v2711 = vshrl.u32 %v2503, 16
      %v2713 = vrot.slane %v2711, 4
      %v2714 = vor.u32 %v2713, %v2709
      %v2715 = vrot.slane %v2714, 4
      %v2717 = vshll.u32 %v2504, 16
      %v2719 = vrot.slane %v2717, 5
      %v2720 = vsel %vm335, %v2715, %v2719
      %v2722 = vshrl.u32 %v2505, 16
      %v2724 = vrot.slane %v2722, 4
      %v2725 = vshll.u32 %v2505, 16
      %v2727 = vrot.slane %v2725, 5
      %v2728 = vor.u32 %v2724, %v2727
      %v2729 = vrot.slane %v2728, 4
      %v2731 = vshll.u32 %v2506, 16
      %v2733 = vrot.slane %v2731, 5
      %v2734 = vsel %vm335, %v2729, %v2733
      %v2735 = vshrl.u32 %v2506, 16
      %v2737 = vrot.slane %v2735, 4
      %v2738 = vor.u32 %v2737, %v2733
      %v2739 = vrot.slane %v2738, 4
      %v2741 = vshll.u32 %v2507, 16
      %v2743 = vrot.slane %v2741, 5
      %v2744 = vsel %vm335, %v2739, %v2743
      %v2746 = vshrl.u32 %v2508, 16
      %v2748 = vrot.slane %v2746, 4
      %v2749 = vshll.u32 %v2508, 16
      %v2751 = vrot.slane %v2749, 5
      %v2752 = vor.u32 %v2748, %v2751
      %v2753 = vrot.slane %v2752, 4
      %v2755 = vshll.u32 %v2509, 16
      %v2757 = vrot.slane %v2755, 5
      %v2758 = vsel %vm335, %v2753, %v2757
      %v2759 = vshrl.u32 %v2509, 16
      %v2761 = vrot.slane %v2759, 4
      %v2762 = vor.u32 %v2761, %v2757
      %v2763 = vrot.slane %v2762, 4
      %v2765 = vshll.u32 %v2510, 16
      %v2767 = vrot.slane %v2765, 5
      %v2768 = vsel %vm335, %v2763, %v2767
      %v2770 = vshrl.u32 %v2511, 16
      %v2772 = vrot.slane %v2770, 4
      %v2773 = vshll.u32 %v2511, 16
      %v2775 = vrot.slane %v2773, 5
      %v2776 = vor.u32 %v2772, %v2775
      %v2777 = vrot.slane %v2776, 4
      %v2779 = vshll.u32 %v2512, 16
      %v2781 = vrot.slane %v2779, 5
      %v2782 = vsel %vm335, %v2777, %v2781
      %v2783 = vshrl.u32 %v2512, 16
      %v2785 = vrot.slane %v2783, 4
      %v2786 = vor.u32 %v2785, %v2781
      %v2787 = vrot.slane %v2786, 4
      %v2789 = vshll.u32 %v2513, 16
      %v2791 = vrot.slane %v2789, 5
      %v2792 = vsel %vm335, %v2787, %v2791
      %v2794 = vshrl.u32 %v2514, 16
      %v2796 = vrot.slane %v2794, 4
      %v2797 = vshll.u32 %v2514, 16
      %v2799 = vrot.slane %v2797, 5
      %v2800 = vor.u32 %v2796, %v2799
      %v2801 = vrot.slane %v2800, 4
      %v2803 = vshll.u32 %v2515, 16
      %v2805 = vrot.slane %v2803, 5
      %v2806 = vsel %vm335, %v2801, %v2805
      %v2807 = vshrl.u32 %v2515, 16
      %v2809 = vrot.slane %v2807, 4
      %v2810 = vor.u32 %v2809, %v2805
      %v2811 = vrot.slane %v2810, 4
      %v2813 = vshll.u32 %v2516, 16
      %v2815 = vrot.slane %v2813, 5
      %v2816 = vsel %vm335, %v2811, %v2815
      %v2818 = vshrl.u32 %v2517, 16
      %v2820 = vrot.slane %v2818, 4
      %v2821 = vshll.u32 %v2517, 16
      %v2823 = vrot.slane %v2821, 5
      %v2824 = vor.u32 %v2820, %v2823
      %v2825 = vrot.slane %v2824, 4
      %v2827 = vshll.u32 %v2518, 16
      %v2829 = vrot.slane %v2827, 5
      %v2830 = vsel %vm335, %v2825, %v2829
      %v2831 = vshrl.u32 %v2518, 16
      %v2833 = vrot.slane %v2831, 4
      %v2834 = vor.u32 %v2833, %v2829
      %v2835 = vrot.slane %v2834, 4
      %v2837 = vshll.u32 %v2519, 16
      %v2839 = vrot.slane %v2837, 5
      %v2840 = vsel %vm335, %v2835, %v2839
      %v2842 = vshrl.u32 %v2520, 16
      %v2844 = vrot.slane %v2842, 4
      %v2845 = vshll.u32 %v2520, 16
      %v2847 = vrot.slane %v2845, 5
      %v2848 = vor.u32 %v2844, %v2847
      %v2849 = vrot.slane %v2848, 4
      %v2851 = vshll.u32 %v2521, 16
      %v2853 = vrot.slane %v2851, 5
      %v2854 = vsel %vm335, %v2849, %v2853
      %v2855 = vshrl.u32 %v2521, 16
      %v2857 = vrot.slane %v2855, 4
      %v2858 = vor.u32 %v2857, %v2853
      %v2859 = vrot.slane %v2858, 4
      %v2861 = vshll.u32 %v2522, 16
      %v2863 = vrot.slane %v2861, 5
      %v2864 = vsel %vm335, %v2859, %v2863
      %v2866 = vshrl.u32 %v2523, 16
      %v2868 = vrot.slane %v2866, 4
      %v2869 = vshll.u32 %v2523, 16
      %v2871 = vrot.slane %v2869, 5
      %v2872 = vor.u32 %v2868, %v2871
      %v2873 = vrot.slane %v2872, 4
      %v2875 = vshll.u32 %v2524, 16
      %v2877 = vrot.slane %v2875, 5
      %v2878 = vsel %vm335, %v2873, %v2877
      %v2879 = vshrl.u32 %v2524, 16
      %v2881 = vrot.slane %v2879, 4
      %v2882 = vor.u32 %v2881, %v2877
      %v2883 = vrot.slane %v2882, 4
      %v2885 = vshll.u32 %v2525, 16
      %v2887 = vrot.slane %v2885, 5
      %v2888 = vsel %vm335, %v2883, %v2887
      %v2890 = vshrl.u32 %v2526, 16
      %v2892 = vrot.slane %v2890, 4
      %v2893 = vshll.u32 %v2526, 16
      %v2895 = vrot.slane %v2893, 5
      %v2896 = vor.u32 %v2892, %v2895
      %v2897 = vrot.slane %v2896, 4
      %v2899 = vshll.u32 %v2527, 16
      %v2901 = vrot.slane %v2899, 5
      %v2902 = vsel %vm335, %v2897, %v2901
      %v2903 = vshrl.u32 %v2527, 16
      %v2905 = vrot.slane %v2903, 4
      %v2906 = vor.u32 %v2905, %v2901
      %v2907 = vrot.slane %v2906, 4
      %v2909 = vshll.u32 %v2528, 16
      %v2911 = vrot.slane %v2909, 5
      %v2912 = vsel %vm335, %v2907, %v2911
      %2913 = vrot.lane.b32.xlu0 %v2542, 28
      %v2914 = vpop.permute.xlu0 %2913
      %2915 = vrot.lane.b32.xlu0 %v2552, 28
      %v2916 = vpop.permute.xlu0 %2915
      %2917 = vrot.lane.b32.xlu0 %v2566, 28
      %v2918 = vpop.permute.xlu0 %2917
      %2919 = vrot.lane.b32.xlu0 %v2576, 28
      %v2920 = vpop.permute.xlu0 %2919
      %2921 = vrot.lane.b32.xlu0 %v2590, 28
      %v2922 = vpop.permute.xlu0 %2921
      %2923 = vrot.lane.b32.xlu0 %v2600, 28
      %v2924 = vpop.permute.xlu0 %2923
      %2925 = vrot.lane.b32.xlu0 %v2614, 28
      %v2926 = vpop.permute.xlu0 %2925
      %2927 = vrot.lane.b32.xlu0 %v2624, 28
      %v2928 = vpop.permute.xlu0 %2927
      %2929 = vrot.lane.b32.xlu0 %v2638, 28
      %v2930 = vpop.permute.xlu0 %2929
      %2931 = vrot.lane.b32.xlu0 %v2648, 28
      %v2932 = vpop.permute.xlu0 %2931
      %2933 = vrot.lane.b32.xlu0 %v2662, 28
      %v2934 = vpop.permute.xlu0 %2933
      %2935 = vrot.lane.b32.xlu0 %v2672, 28
      %v2936 = vpop.permute.xlu0 %2935
      %2937 = vrot.lane.b32.xlu0 %v2686, 28
      %v2938 = vpop.permute.xlu0 %2937
      %2939 = vrot.lane.b32.xlu0 %v2696, 28
      %v2940 = vpop.permute.xlu0 %2939
      %2941 = vrot.lane.b32.xlu0 %v2710, 28
      %v2942 = vpop.permute.xlu0 %2941
      %2943 = vrot.lane.b32.xlu0 %v2720, 28
      %v2944 = vpop.permute.xlu0 %2943
      %2945 = vrot.lane.b32.xlu0 %v2734, 28
      %v2946 = vpop.permute.xlu0 %2945
      %2947 = vrot.lane.b32.xlu0 %v2744, 28
      %v2948 = vpop.permute.xlu0 %2947
      %2949 = vrot.lane.b32.xlu0 %v2758, 28
      %v2950 = vpop.permute.xlu0 %2949
      %2951 = vrot.lane.b32.xlu0 %v2768, 28
      %v2952 = vpop.permute.xlu0 %2951
      %2953 = vrot.lane.b32.xlu0 %v2782, 28
      %v2954 = vpop.permute.xlu0 %2953
      %2955 = vrot.lane.b32.xlu0 %v2792, 28
      %v2956 = vpop.permute.xlu0 %2955
      %2957 = vrot.lane.b32.xlu0 %v2806, 28
      %v2958 = vpop.permute.xlu0 %2957
      %2959 = vrot.lane.b32.xlu0 %v2816, 28
      %v2960 = vpop.permute.xlu0 %2959
      %2961 = vrot.lane.b32.xlu0 %v2830, 28
      %v2962 = vpop.permute.xlu0 %2961
      %2963 = vrot.lane.b32.xlu0 %v2840, 28
      %v2964 = vpop.permute.xlu0 %2963
      %2965 = vrot.lane.b32.xlu0 %v2854, 28
      %v2966 = vpop.permute.xlu0 %2965
      %2967 = vrot.lane.b32.xlu0 %v2864, 28
      %v2968 = vpop.permute.xlu0 %2967
      %2969 = vrot.lane.b32.xlu0 %v2878, 28
      %v2970 = vpop.permute.xlu0 %2969
      %2971 = vrot.lane.b32.xlu0 %v2888, 28
      %v2972 = vpop.permute.xlu0 %2971
      %2973 = vrot.lane.b32.xlu0 %v2902, 28
      %v2974 = vpop.permute.xlu0 %2973
      %2975 = vrot.lane.b32.xlu0 %v2912, 28
      %v2976 = vpop.permute.xlu0 %2975
      %vm3009 = vcmask 257248
      %3010 = vst.msk [vmem:[#allocation2] sm:$0xf] %vm3009, %v2914
      %3011 = vst.msk [vmem:[#allocation2 + $0x4] sm:$0xf] %vm3009, %v2916
      %3012 = vst.msk [vmem:[#allocation2 + $0x8] sm:$0xf] %vm3009, %v2918
      %3013 = vst.msk [vmem:[#allocation2 + $0xc] sm:$0xf] %vm3009, %v2920
      %3014 = vst.msk [vmem:[#allocation2 + $0x10] sm:$0xf] %vm3009, %v2922
      %3015 = vst.msk [vmem:[#allocation2 + $0x14] sm:$0xf] %vm3009, %v2924
      %3016 = vst.msk [vmem:[#allocation2 + $0x18] sm:$0xf] %vm3009, %v2926
      %3017 = vst.msk [vmem:[#allocation2 + $0x1c] sm:$0xf] %vm3009, %v2928
      %3018 = vst.msk [vmem:[#allocation2 + $0x20] sm:$0xf] %vm3009, %v2930
      %3019 = vst.msk [vmem:[#allocation2 + $0x24] sm:$0xf] %vm3009, %v2932
      %3020 = vst.msk [vmem:[#allocation2 + $0x28] sm:$0xf] %vm3009, %v2934
      %3021 = vst.msk [vmem:[#allocation2 + $0x2c] sm:$0xf] %vm3009, %v2936
      %3022 = vst.msk [vmem:[#allocation2 + $0x30] sm:$0xf] %vm3009, %v2938
      %3023 = vst.msk [vmem:[#allocation2 + $0x34] sm:$0xf] %vm3009, %v2940
      %3024 = vst.msk [vmem:[#allocation2 + $0x38] sm:$0xf] %vm3009, %v2942
      %3025 = vst.msk [vmem:[#allocation2 + $0x3c] sm:$0xf] %vm3009, %v2944
      %3026 = vst.msk [vmem:[#allocation2 + $0x40] sm:$0xf] %vm3009, %v2946
      %3027 = vst.msk [vmem:[#allocation2 + $0x44] sm:$0xf] %vm3009, %v2948
      %3028 = vst.msk [vmem:[#allocation2 + $0x48] sm:$0xf] %vm3009, %v2950
      %3029 = vst.msk [vmem:[#allocation2 + $0x4c] sm:$0xf] %vm3009, %v2952
      %3030 = vst.msk [vmem:[#allocation2 + $0x50] sm:$0xf] %vm3009, %v2954
      %3031 = vst.msk [vmem:[#allocation2 + $0x54] sm:$0xf] %vm3009, %v2956
      %3032 = vst.msk [vmem:[#allocation2 + $0x58] sm:$0xf] %vm3009, %v2958
      %3033 = vst.msk [vmem:[#allocation2 + $0x5c] sm:$0xf] %vm3009, %v2960
      %3034 = vst.msk [vmem:[#allocation2 + $0x60] sm:$0xf] %vm3009, %v2962
      %3035 = vst.msk [vmem:[#allocation2 + $0x64] sm:$0xf] %vm3009, %v2964
      %3036 = vst.msk [vmem:[#allocation2 + $0x68] sm:$0xf] %vm3009, %v2966
      %3037 = vst.msk [vmem:[#allocation2 + $0x6c] sm:$0xf] %vm3009, %v2968
      %3038 = vst.msk [vmem:[#allocation2 + $0x70] sm:$0xf] %vm3009, %v2970
      %3039 = vst.msk [vmem:[#allocation2 + $0x74] sm:$0xf] %vm3009, %v2972
      %3040 = vst.msk [vmem:[#allocation2 + $0x78] sm:$0xf] %vm3009, %v2974
      %3041 = vst.msk [vmem:[#allocation2 + $0x7c] sm:$0xf] %vm3009, %v2976
      %v3042 = vld [vmem:[%s2287] sm:$0xe]
      %v3043 = vld [vmem:[%s2287 + $0x4] sm:$0xf]
      %v3044 = vld [vmem:[%s2287 + $0x8] sm:$0x1]
      %v3045 = vld [vmem:[%s2287 + $0xc] sm:$0xe]
      %v3046 = vld [vmem:[%s2287 + $0x10] sm:$0xf]
      %v3047 = vld [vmem:[%s2287 + $0x14] sm:$0x1]
      %v3048 = vld [vmem:[%s2287 + $0x18] sm:$0xe]
      %v3049 = vld [vmem:[%s2287 + $0x1c] sm:$0xf]
      %v3050 = vld [vmem:[%s2287 + $0x20] sm:$0x1]
      %v3051 = vld [vmem:[%s2287 + $0x24] sm:$0xe]
      %v3052 = vld [vmem:[%s2287 + $0x28] sm:$0xf]
      %v3053 = vld [vmem:[%s2287 + $0x2c] sm:$0x1]
      %v3054 = vld [vmem:[%s2287 + $0x30] sm:$0xe]
      %v3055 = vld [vmem:[%s2287 + $0x34] sm:$0xf]
      %v3056 = vld [vmem:[%s2287 + $0x38] sm:$0x1]
      %v3057 = vld [vmem:[%s2287 + $0x3c] sm:$0xe]
      %v3058 = vld [vmem:[%s2287 + $0x40] sm:$0xf]
      %v3059 = vld [vmem:[%s2287 + $0x44] sm:$0x1]
      %v3060 = vld [vmem:[%s2287 + $0x48] sm:$0xe]
      %v3061 = vld [vmem:[%s2287 + $0x4c] sm:$0xf]
      %v3062 = vld [vmem:[%s2287 + $0x50] sm:$0x1]
      %v3063 = vld [vmem:[%s2287 + $0x54] sm:$0xe]
      %v3064 = vld [vmem:[%s2287 + $0x58] sm:$0xf]
      %v3065 = vld [vmem:[%s2287 + $0x5c] sm:$0x1]
      %v3066 = vld [vmem:[%s2287 + $0x60] sm:$0xe]
      %v3067 = vld [vmem:[%s2287 + $0x64] sm:$0xf]
      %v3068 = vld [vmem:[%s2287 + $0x68] sm:$0x1]
      %v3069 = vld [vmem:[%s2287 + $0x6c] sm:$0xe]
      %v3070 = vld [vmem:[%s2287 + $0x70] sm:$0xf]
      %v3071 = vld [vmem:[%s2287 + $0x74] sm:$0x1]
      %v3072 = vld [vmem:[%s2287 + $0x78] sm:$0xe]
      %v3073 = vld [vmem:[%s2287 + $0x7c] sm:$0xf]
      %v3074 = vld [vmem:[%s2287 + $0x80] sm:$0x1]
      %v3075 = vld [vmem:[%s2287 + $0x84] sm:$0xe]
      %v3076 = vld [vmem:[%s2287 + $0x88] sm:$0xf]
      %v3077 = vld [vmem:[%s2287 + $0x8c] sm:$0x1]
      %v3078 = vld [vmem:[%s2287 + $0x90] sm:$0xe]
      %v3079 = vld [vmem:[%s2287 + $0x94] sm:$0xf]
      %v3080 = vld [vmem:[%s2287 + $0x98] sm:$0x1]
      %v3081 = vld [vmem:[%s2287 + $0x9c] sm:$0xe]
      %v3082 = vld [vmem:[%s2287 + $0xa0] sm:$0xf]
      %v3083 = vld [vmem:[%s2287 + $0xa4] sm:$0x1]
      %v3084 = vld [vmem:[%s2287 + $0xa8] sm:$0xe]
      %v3085 = vld [vmem:[%s2287 + $0xac] sm:$0xf]
      %v3086 = vld [vmem:[%s2287 + $0xb0] sm:$0x1]
      %v3087 = vld [vmem:[%s2287 + $0xb4] sm:$0xe]
      %v3088 = vld [vmem:[%s2287 + $0xb8] sm:$0xf]
      %v3089 = vld [vmem:[%s2287 + $0xbc] sm:$0x1]
      %v3138 = vrot.slane %v3042, 5
      %v3139 = vrot.slane %v3138, 4
      %v3140 = vrot.slane %v3043, 5
      %v3141 = vsel %vm947, %v3139, %v3140
      %v3142 = vrot.slane %v3140, 4
      %v3143 = vrot.slane %v3044, 5
      %v3144 = vsel %vm947, %v3142, %v3143
      %v3145 = vrot.slane %v3045, 5
      %v3146 = vrot.slane %v3145, 4
      %v3147 = vrot.slane %v3046, 5
      %v3148 = vsel %vm947, %v3146, %v3147
      %v3149 = vrot.slane %v3147, 4
      %v3150 = vrot.slane %v3047, 5
      %v3151 = vsel %vm947, %v3149, %v3150
      %v3152 = vrot.slane %v3048, 5
      %v3153 = vrot.slane %v3152, 4
      %v3154 = vrot.slane %v3049, 5
      %v3155 = vsel %vm947, %v3153, %v3154
      %v3156 = vrot.slane %v3154, 4
      %v3157 = vrot.slane %v3050, 5
      %v3158 = vsel %vm947, %v3156, %v3157
      %v3159 = vrot.slane %v3051, 5
      %v3160 = vrot.slane %v3159, 4
      %v3161 = vrot.slane %v3052, 5
      %v3162 = vsel %vm947, %v3160, %v3161
      %v3163 = vrot.slane %v3161, 4
      %v3164 = vrot.slane %v3053, 5
      %v3165 = vsel %vm947, %v3163, %v3164
      %v3166 = vrot.slane %v3054, 5
      %v3167 = vrot.slane %v3166, 4
      %v3168 = vrot.slane %v3055, 5
      %v3169 = vsel %vm947, %v3167, %v3168
      %v3170 = vrot.slane %v3168, 4
      %v3171 = vrot.slane %v3056, 5
      %v3172 = vsel %vm947, %v3170, %v3171
      %v3173 = vrot.slane %v3057, 5
      %v3174 = vrot.slane %v3173, 4
      %v3175 = vrot.slane %v3058, 5
      %v3176 = vsel %vm947, %v3174, %v3175
      %v3177 = vrot.slane %v3175, 4
      %v3178 = vrot.slane %v3059, 5
      %v3179 = vsel %vm947, %v3177, %v3178
      %v3180 = vrot.slane %v3060, 5
      %v3181 = vrot.slane %v3180, 4
      %v3182 = vrot.slane %v3061, 5
      %v3183 = vsel %vm947, %v3181, %v3182
      %v3184 = vrot.slane %v3182, 4
      %v3185 = vrot.slane %v3062, 5
      %v3186 = vsel %vm947, %v3184, %v3185
      %v3187 = vrot.slane %v3063, 5
      %v3188 = vrot.slane %v3187, 4
      %v3189 = vrot.slane %v3064, 5
      %v3190 = vsel %vm947, %v3188, %v3189
      %v3191 = vrot.slane %v3189, 4
      %v3192 = vrot.slane %v3065, 5
      %v3193 = vsel %vm947, %v3191, %v3192
      %v3194 = vrot.slane %v3066, 5
      %v3195 = vrot.slane %v3194, 4
      %v3196 = vrot.slane %v3067, 5
      %v3197 = vsel %vm947, %v3195, %v3196
      %v3198 = vrot.slane %v3196, 4
      %v3199 = vrot.slane %v3068, 5
      %v3200 = vsel %vm947, %v3198, %v3199
      %v3201 = vrot.slane %v3069, 5
      %v3202 = vrot.slane %v3201, 4
      %v3203 = vrot.slane %v3070, 5
      %v3204 = vsel %vm947, %v3202, %v3203
      %v3205 = vrot.slane %v3203, 4
      %v3206 = vrot.slane %v3071, 5
      %v3207 = vsel %vm947, %v3205, %v3206
      %v3208 = vrot.slane %v3072, 5
      %v3209 = vrot.slane %v3208, 4
      %v3210 = vrot.slane %v3073, 5
      %v3211 = vsel %vm947, %v3209, %v3210
      %v3212 = vrot.slane %v3210, 4
      %v3213 = vrot.slane %v3074, 5
      %v3214 = vsel %vm947, %v3212, %v3213
      %v3215 = vrot.slane %v3075, 5
      %v3216 = vrot.slane %v3215, 4
      %v3217 = vrot.slane %v3076, 5
      %v3218 = vsel %vm947, %v3216, %v3217
      %v3219 = vrot.slane %v3217, 4
      %v3220 = vrot.slane %v3077, 5
      %v3221 = vsel %vm947, %v3219, %v3220
      %v3222 = vrot.slane %v3078, 5
      %v3223 = vrot.slane %v3222, 4
      %v3224 = vrot.slane %v3079, 5
      %v3225 = vsel %vm947, %v3223, %v3224
      %v3226 = vrot.slane %v3224, 4
      %v3227 = vrot.slane %v3080, 5
      %v3228 = vsel %vm947, %v3226, %v3227
      %v3229 = vrot.slane %v3081, 5
      %v3230 = vrot.slane %v3229, 4
      %v3231 = vrot.slane %v3082, 5
      %v3232 = vsel %vm947, %v3230, %v3231
      %v3233 = vrot.slane %v3231, 4
      %v3234 = vrot.slane %v3083, 5
      %v3235 = vsel %vm947, %v3233, %v3234
      %v3236 = vrot.slane %v3084, 5
      %v3237 = vrot.slane %v3236, 4
      %v3238 = vrot.slane %v3085, 5
      %v3239 = vsel %vm947, %v3237, %v3238
      %v3240 = vrot.slane %v3238, 4
      %v3241 = vrot.slane %v3086, 5
      %v3242 = vsel %vm947, %v3240, %v3241
      %v3243 = vrot.slane %v3087, 5
      %v3244 = vrot.slane %v3243, 4
      %v3245 = vrot.slane %v3088, 5
      %v3246 = vsel %vm947, %v3244, %v3245
      %v3247 = vrot.slane %v3245, 4
      %v3248 = vrot.slane %v3089, 5
      %v3249 = vsel %vm947, %v3247, %v3248
      %3250 = vrot.lane.b32.xlu0 %v3141, 32
      %v3251 = vpop.permute.xlu0 %3250
      %3252 = vrot.lane.b32.xlu0 %v3144, 32
      %v3253 = vpop.permute.xlu0 %3252
      %3254 = vrot.lane.b32.xlu0 %v3148, 32
      %v3255 = vpop.permute.xlu0 %3254
      %3256 = vrot.lane.b32.xlu0 %v3151, 32
      %v3257 = vpop.permute.xlu0 %3256
      %3258 = vrot.lane.b32.xlu0 %v3155, 32
      %v3259 = vpop.permute.xlu0 %3258
      %3260 = vrot.lane.b32.xlu0 %v3158, 32
      %v3261 = vpop.permute.xlu0 %3260
      %3262 = vrot.lane.b32.xlu0 %v3162, 32
      %v3263 = vpop.permute.xlu0 %3262
      %3264 = vrot.lane.b32.xlu0 %v3165, 32
      %v3265 = vpop.permute.xlu0 %3264
      %3266 = vrot.lane.b32.xlu0 %v3169, 32
      %v3267 = vpop.permute.xlu0 %3266
      %3268 = vrot.lane.b32.xlu0 %v3172, 32
      %v3269 = vpop.permute.xlu0 %3268
      %3270 = vrot.lane.b32.xlu0 %v3176, 32
      %v3271 = vpop.permute.xlu0 %3270
      %3272 = vrot.lane.b32.xlu0 %v3179, 32
      %v3273 = vpop.permute.xlu0 %3272
      %3274 = vrot.lane.b32.xlu0 %v3183, 32
      %v3275 = vpop.permute.xlu0 %3274
      %3276 = vrot.lane.b32.xlu0 %v3186, 32
      %v3277 = vpop.permute.xlu0 %3276
      %3278 = vrot.lane.b32.xlu0 %v3190, 32
      %v3279 = vpop.permute.xlu0 %3278
      %3280 = vrot.lane.b32.xlu0 %v3193, 32
      %v3281 = vpop.permute.xlu0 %3280
      %3282 = vrot.lane.b32.xlu0 %v3197, 32
      %v3283 = vpop.permute.xlu0 %3282
      %3284 = vrot.lane.b32.xlu0 %v3200, 32
      %v3285 = vpop.permute.xlu0 %3284
      %3286 = vrot.lane.b32.xlu0 %v3204, 32
      %v3287 = vpop.permute.xlu0 %3286
      %3288 = vrot.lane.b32.xlu0 %v3207, 32
      %v3289 = vpop.permute.xlu0 %3288
      %3290 = vrot.lane.b32.xlu0 %v3211, 32
      %v3291 = vpop.permute.xlu0 %3290
      %3292 = vrot.lane.b32.xlu0 %v3214, 32
      %v3293 = vpop.permute.xlu0 %3292
      %3294 = vrot.lane.b32.xlu0 %v3218, 32
      %v3295 = vpop.permute.xlu0 %3294
      %3296 = vrot.lane.b32.xlu0 %v3221, 32
      %v3297 = vpop.permute.xlu0 %3296
      %3298 = vrot.lane.b32.xlu0 %v3225, 32
      %v3299 = vpop.permute.xlu0 %3298
      %3300 = vrot.lane.b32.xlu0 %v3228, 32
      %v3301 = vpop.permute.xlu0 %3300
      %3302 = vrot.lane.b32.xlu0 %v3232, 32
      %v3303 = vpop.permute.xlu0 %3302
      %3304 = vrot.lane.b32.xlu0 %v3235, 32
      %v3305 = vpop.permute.xlu0 %3304
      %3306 = vrot.lane.b32.xlu0 %v3239, 32
      %v3307 = vpop.permute.xlu0 %3306
      %3308 = vrot.lane.b32.xlu0 %v3242, 32
      %v3309 = vpop.permute.xlu0 %3308
      %3310 = vrot.lane.b32.xlu0 %v3246, 32
      %v3311 = vpop.permute.xlu0 %3310
      %3312 = vrot.lane.b32.xlu0 %v3249, 32
      %v3313 = vpop.permute.xlu0 %3312
      %vm3346 = vcmask 290048
      %3347 = vst.msk [vmem:[#allocation2] sm:$0xf] %vm3346, %v3251
      %3348 = vst.msk [vmem:[#allocation2 + $0x4] sm:$0xf] %vm3346, %v3253
      %3349 = vst.msk [vmem:[#allocation2 + $0x8] sm:$0xf] %vm3346, %v3255
      %3350 = vst.msk [vmem:[#allocation2 + $0xc] sm:$0xf] %vm3346, %v3257
      %3351 = vst.msk [vmem:[#allocation2 + $0x10] sm:$0xf] %vm3346, %v3259
      %3352 = vst.msk [vmem:[#allocation2 + $0x14] sm:$0xf] %vm3346, %v3261
      %3353 = vst.msk [vmem:[#allocation2 + $0x18] sm:$0xf] %vm3346, %v3263
      %3354 = vst.msk [vmem:[#allocation2 + $0x1c] sm:$0xf] %vm3346, %v3265
      %3355 = vst.msk [vmem:[#allocation2 + $0x20] sm:$0xf] %vm3346, %v3267
      %3356 = vst.msk [vmem:[#allocation2 + $0x24] sm:$0xf] %vm3346, %v3269
      %3357 = vst.msk [vmem:[#allocation2 + $0x28] sm:$0xf] %vm3346, %v3271
      %3358 = vst.msk [vmem:[#allocation2 + $0x2c] sm:$0xf] %vm3346, %v3273
      %3359 = vst.msk [vmem:[#allocation2 + $0x30] sm:$0xf] %vm3346, %v3275
      %3360 = vst.msk [vmem:[#allocation2 + $0x34] sm:$0xf] %vm3346, %v3277
      %3361 = vst.msk [vmem:[#allocation2 + $0x38] sm:$0xf] %vm3346, %v3279
      %3362 = vst.msk [vmem:[#allocation2 + $0x3c] sm:$0xf] %vm3346, %v3281
      %3363 = vst.msk [vmem:[#allocation2 + $0x40] sm:$0xf] %vm3346, %v3283
      %3364 = vst.msk [vmem:[#allocation2 + $0x44] sm:$0xf] %vm3346, %v3285
      %3365 = vst.msk [vmem:[#allocation2 + $0x48] sm:$0xf] %vm3346, %v3287
      %3366 = vst.msk [vmem:[#allocation2 + $0x4c] sm:$0xf] %vm3346, %v3289
      %3367 = vst.msk [vmem:[#allocation2 + $0x50] sm:$0xf] %vm3346, %v3291
      %3368 = vst.msk [vmem:[#allocation2 + $0x54] sm:$0xf] %vm3346, %v3293
      %3369 = vst.msk [vmem:[#allocation2 + $0x58] sm:$0xf] %vm3346, %v3295
      %3370 = vst.msk [vmem:[#allocation2 + $0x5c] sm:$0xf] %vm3346, %v3297
      %3371 = vst.msk [vmem:[#allocation2 + $0x60] sm:$0xf] %vm3346, %v3299
      %3372 = vst.msk [vmem:[#allocation2 + $0x64] sm:$0xf] %vm3346, %v3301
      %3373 = vst.msk [vmem:[#allocation2 + $0x68] sm:$0xf] %vm3346, %v3303
      %3374 = vst.msk [vmem:[#allocation2 + $0x6c] sm:$0xf] %vm3346, %v3305
      %3375 = vst.msk [vmem:[#allocation2 + $0x70] sm:$0xf] %vm3346, %v3307
      %3376 = vst.msk [vmem:[#allocation2 + $0x74] sm:$0xf] %vm3346, %v3309
      %3377 = vst.msk [vmem:[#allocation2 + $0x78] sm:$0xf] %vm3346, %v3311
      %3378 = vst.msk [vmem:[#allocation2 + $0x7c] sm:$0xf] %vm3346, %v3313
      %v3379 = vld [vmem:[#allocation2] sm:$0xf]
      %v3380 = vld [vmem:[#allocation2 + $0x4] sm:$0xf]
      %v3381 = vld [vmem:[#allocation2 + $0x8] sm:$0xf]
      %v3382 = vld [vmem:[#allocation2 + $0xc] sm:$0xf]
      %v3383 = vld [vmem:[#allocation2 + $0x10] sm:$0xf]
      %v3384 = vld [vmem:[#allocation2 + $0x14] sm:$0xf]
      %v3385 = vld [vmem:[#allocation2 + $0x18] sm:$0xf]
      %v3386 = vld [vmem:[#allocation2 + $0x1c] sm:$0xf]
      %v3387 = vld [vmem:[#allocation2 + $0x20] sm:$0xf]
      %v3388 = vld [vmem:[#allocation2 + $0x24] sm:$0xf]
      %v3389 = vld [vmem:[#allocation2 + $0x28] sm:$0xf]
      %v3390 = vld [vmem:[#allocation2 + $0x2c] sm:$0xf]
      %v3391 = vld [vmem:[#allocation2 + $0x30] sm:$0xf]
      %v3392 = vld [vmem:[#allocation2 + $0x34] sm:$0xf]
      %v3393 = vld [vmem:[#allocation2 + $0x38] sm:$0xf]
      %v3394 = vld [vmem:[#allocation2 + $0x3c] sm:$0xf]
      %v3395 = vld [vmem:[#allocation2 + $0x40] sm:$0xf]
      %v3396 = vld [vmem:[#allocation2 + $0x44] sm:$0xf]
      %v3397 = vld [vmem:[#allocation2 + $0x48] sm:$0xf]
      %v3398 = vld [vmem:[#allocation2 + $0x4c] sm:$0xf]
      %v3399 = vld [vmem:[#allocation2 + $0x50] sm:$0xf]
      %v3400 = vld [vmem:[#allocation2 + $0x54] sm:$0xf]
      %v3401 = vld [vmem:[#allocation2 + $0x58] sm:$0xf]
      %v3402 = vld [vmem:[#allocation2 + $0x5c] sm:$0xf]
      %v3403 = vld [vmem:[#allocation2 + $0x60] sm:$0xf]
      %v3404 = vld [vmem:[#allocation2 + $0x64] sm:$0xf]
      %v3405 = vld [vmem:[#allocation2 + $0x68] sm:$0xf]
      %v3406 = vld [vmem:[#allocation2 + $0x6c] sm:$0xf]
      %v3407 = vld [vmem:[#allocation2 + $0x70] sm:$0xf]
      %v3408 = vld [vmem:[#allocation2 + $0x74] sm:$0xf]
      %v3409 = vld [vmem:[#allocation2 + $0x78] sm:$0xf]
      %v3410 = vld [vmem:[#allocation2 + $0x7c] sm:$0xf]
      %v3411 = vld [vmem:[%s1] sm:$0xf]
      %v3412 = vld [vmem:[%s1 + $0x4] sm:$0xf]
      %v3413 = vld [vmem:[%s1 + $0x8] sm:$0xf]
      %v3414 = vld [vmem:[%s1 + $0xc] sm:$0xf]
      %v3415 = vld [vmem:[%s1 + $0x10] sm:$0x3]
      %v3448 = vunpack.c.l.b16 %v3379
      %v3449 = vunpack.c.l.b16 %v3380
      %v3450 = vunpack.c.l.b16 %v3381
      %v3451 = vunpack.c.l.b16 %v3382
      %v3452 = vunpack.c.l.b16 %v3383
      %v3453 = vunpack.c.l.b16 %v3384
      %v3454 = vunpack.c.l.b16 %v3385
      %v3455 = vunpack.c.l.b16 %v3386
      %v3456 = vunpack.c.l.b16 %v3387
      %v3457 = vunpack.c.l.b16 %v3388
      %v3458 = vunpack.c.l.b16 %v3389
      %v3459 = vunpack.c.l.b16 %v3390
      %v3460 = vunpack.c.l.b16 %v3391
      %v3461 = vunpack.c.l.b16 %v3392
      %v3462 = vunpack.c.l.b16 %v3393
      %v3463 = vunpack.c.l.b16 %v3394
      %v3464 = vunpack.c.l.b16 %v3395
      %v3465 = vunpack.c.l.b16 %v3396
      %v3466 = vunpack.c.l.b16 %v3397
      %v3467 = vunpack.c.l.b16 %v3398
      %v3468 = vunpack.c.l.b16 %v3399
      %v3469 = vunpack.c.l.b16 %v3400
      %v3470 = vunpack.c.l.b16 %v3401
      %v3471 = vunpack.c.l.b16 %v3402
      %v3472 = vunpack.c.l.b16 %v3403
      %v3473 = vunpack.c.l.b16 %v3404
      %v3474 = vunpack.c.l.b16 %v3405
      %v3475 = vunpack.c.l.b16 %v3406
      %v3476 = vunpack.c.l.b16 %v3407
      %v3477 = vunpack.c.l.b16 %v3408
      %v3478 = vunpack.c.l.b16 %v3409
      %v3479 = vunpack.c.l.b16 %v3410
      %v3480 = vpack.c.b16 %v3449, %v3448
      %v3481 = vpack.c.b16 %v3451, %v3450
      %v3482 = vpack.c.b16 %v3453, %v3452
      %v3483 = vpack.c.b16 %v3455, %v3454
      %v3484 = vpack.c.b16 %v3457, %v3456
      %v3485 = vpack.c.b16 %v3459, %v3458
      %v3486 = vpack.c.b16 %v3461, %v3460
      %v3487 = vpack.c.b16 %v3463, %v3462
      %v3488 = vpack.c.b16 %v3465, %v3464
      %v3489 = vpack.c.b16 %v3467, %v3466
      %v3490 = vpack.c.b16 %v3469, %v3468
      %v3491 = vpack.c.b16 %v3471, %v3470
      %v3492 = vpack.c.b16 %v3473, %v3472
      %v3493 = vpack.c.b16 %v3475, %v3474
      %v3494 = vpack.c.b16 %v3477, %v3476
      %v3495 = vpack.c.b16 %v3479, %v3478
      %v3501 = vunpack.c.l.b16 %v3411
      %v3502 = vunpack.c.l.b16 %v3412
      %v3503 = vunpack.c.l.b16 %v3413
      %v3504 = vunpack.c.l.b16 %v3414
      %v3505 = vunpack.c.l.b16 %v3415
      %v3506 = vpack.c.b16 %v3502, %v3501
      %v3507 = vpack.c.b16 %v3504, %v3503
      %v3508 = vpack.c.b16 %v3505, %v3505
      %vm3511 = vcmask 293888
      %v3513 = vsel %vm3511, %v3480, 0
      %v3516 = vsel %vm3511, %v3481, 0
      %v3519 = vsel %vm3511, %v3482, 0
      %v3522 = vsel %vm3511, %v3483, 0
      %v3525 = vsel %vm3511, %v3484, 0
      %v3528 = vsel %vm3511, %v3485, 0
      %v3531 = vsel %vm3511, %v3486, 0
      %v3534 = vsel %vm3511, %v3487, 0
      %v3537 = vsel %vm3511, %v3488, 0
      %v3540 = vsel %vm3511, %v3489, 0
      %v3543 = vsel %vm3511, %v3490, 0
      %v3546 = vsel %vm3511, %v3491, 0
      %v3549 = vsel %vm3511, %v3492, 0
      %v3552 = vsel %vm3511, %v3493, 0
      %v3555 = vsel %vm3511, %v3494, 0
      %v3558 = vsel %vm3511, %v3495, 0
      %vm3560 = vcmask 1041408
      %v3562 = vsel %vm3560, %v3508, 0
      %3564 = vmatprep.subr.bf16.mxu0 0
      %3565 = vmatpush1.bf16.msra.mxu0 0
      %3566 = vmatprep.subr.bf16.mxu0 0
      %3567 = vmatpush1.bf16.msra.mxu0 0
      %3568 = vmatprep.subr.bf16.mxu0 0
      %3569 = vmatpush1.bf16.msra.mxu0 0
      %3570 = vmatprep.subr.bf16.mxu0 0
      %3571 = vmatpush1.bf16.msra.mxu0 0
      %3572 = vmatprep.subr.bf16.mxu0 0
      %3573 = vmatpush1.bf16.msra.mxu0 0
      %3574 = vmatprep.subr.bf16.mxu0 0
      %3575 = vmatpush1.bf16.msra.mxu0 %v3562
      %3576 = vmatprep.subr.bf16.mxu0 0
      %3577 = vmatpush1.bf16.msra.mxu0 %v3507
      %3578 = vmatprep.subr.bf16.mxu0 0
      %3579 = vmatpush1.bf16.msra.mxu0 %v3506
      %3580 = vmatprep.subr.bf16.mxu0 0
      %3581 = vmatpush2.bf16.msra.mxu0 0
      %3582 = vmatprep.subr.bf16.mxu0 0
      %3583 = vmatpush2.bf16.msra.mxu0 0
      %3584 = vmatprep.subr.bf16.mxu0 0
      %3585 = vmatpush2.bf16.msra.mxu0 0
      %3586 = vmatprep.subr.bf16.mxu0 0
      %3587 = vmatpush2.bf16.msra.mxu0 0
      %3588 = vmatprep.subr.bf16.mxu0 0
      %3589 = vmatpush2.bf16.msra.mxu0 0
      %3590 = vmatprep.subr.bf16.mxu0 0
      %3591 = vmatpush2.bf16.msra.mxu0 0
      %3592 = vmatprep.subr.bf16.mxu0 0
      %3593 = vmatpush2.bf16.msra.mxu0 0
      %3594 = vmatprep.subr.bf16.mxu0 0
      %3595 = vmatpush2.bf16.msra.mxu0 0
      %3596 = vmatprep.mubr.bf16.mxu0 0
      %3597 = vmatmul.mubr.bf16.gmra.mxu0 %v3513
      %v3598 = vpop.f32.mrf.mxu0
      %v3599 = vadd.f32 0.0, %v3598
      %v3600 = vpop.f32.mrf.mxu0
      %v3601 = vpop.f32.mrf.mxu0
      %v3602 = vadd.f32 0.0, %v3601
      %v3603 = vpop.f32.mrf.mxu0
      %3604 = vmatprep.mubr.bf16.mxu0 0
      %3605 = vmatmul.mubr.bf16.gmra.mxu0 %v3516
      %v3606 = vpop.f32.mrf.mxu0
      %v3607 = vadd.f32 0.0, %v3606
      %v3608 = vpop.f32.mrf.mxu0
      %v3609 = vpop.f32.mrf.mxu0
      %v3610 = vadd.f32 0.0, %v3609
      %v3611 = vpop.f32.mrf.mxu0
      %3612 = vmatprep.mubr.bf16.mxu0 0
      %3613 = vmatmul.mubr.bf16.gmra.mxu0 %v3519
      %v3614 = vpop.f32.mrf.mxu0
      %v3615 = vadd.f32 0.0, %v3614
      %v3616 = vpop.f32.mrf.mxu0
      %v3617 = vpop.f32.mrf.mxu0
      %v3618 = vadd.f32 0.0, %v3617
      %v3619 = vpop.f32.mrf.mxu0
      %3620 = vmatprep.mubr.bf16.mxu0 0
      %3621 = vmatmul.mubr.bf16.gmra.mxu0 %v3522
      %v3622 = vpop.f32.mrf.mxu0
      %v3623 = vadd.f32 0.0, %v3622
      %v3624 = vpop.f32.mrf.mxu0
      %v3625 = vpop.f32.mrf.mxu0
      %v3626 = vadd.f32 0.0, %v3625
      %v3627 = vpop.f32.mrf.mxu0
      %3628 = vmatprep.mubr.bf16.mxu0 0
      %3629 = vmatmul.mubr.bf16.gmra.mxu0 %v3525
      %v3630 = vpop.f32.mrf.mxu0
      %v3631 = vadd.f32 0.0, %v3630
      %v3632 = vpop.f32.mrf.mxu0
      %v3633 = vpop.f32.mrf.mxu0
      %v3634 = vadd.f32 0.0, %v3633
      %v3635 = vpop.f32.mrf.mxu0
      %3636 = vmatprep.mubr.bf16.mxu0 0
      %3637 = vmatmul.mubr.bf16.gmra.mxu0 %v3528
      %v3638 = vpop.f32.mrf.mxu0
      %v3639 = vadd.f32 0.0, %v3638
      %v3640 = vpop.f32.mrf.mxu0
      %v3641 = vpop.f32.mrf.mxu0
      %v3642 = vadd.f32 0.0, %v3641
      %v3643 = vpop.f32.mrf.mxu0
      %3644 = vmatprep.mubr.bf16.mxu0 0
      %3645 = vmatmul.mubr.bf16.gmra.mxu0 %v3531
      %v3646 = vpop.f32.mrf.mxu0
      %v3647 = vadd.f32 0.0, %v3646
      %v3648 = vpop.f32.mrf.mxu0
      %v3649 = vpop.f32.mrf.mxu0
      %v3650 = vadd.f32 0.0, %v3649
      %v3651 = vpop.f32.mrf.mxu0
      %3652 = vmatprep.mubr.bf16.mxu0 0
      %3653 = vmatmul.mubr.bf16.gmra.mxu0 %v3534
      %v3654 = vpop.f32.mrf.mxu0
      %v3655 = vadd.f32 0.0, %v3654
      %v3656 = vpop.f32.mrf.mxu0
      %v3657 = vpop.f32.mrf.mxu0
      %v3658 = vadd.f32 0.0, %v3657
      %v3659 = vpop.f32.mrf.mxu0
      %3660 = vmatprep.mubr.bf16.mxu0 0
      %3661 = vmatmul.mubr.bf16.gmra.mxu0 %v3537
      %v3662 = vpop.f32.mrf.mxu0
      %v3663 = vadd.f32 0.0, %v3662
      %v3664 = vpop.f32.mrf.mxu0
      %v3665 = vpop.f32.mrf.mxu0
      %v3666 = vadd.f32 0.0, %v3665
      %v3667 = vpop.f32.mrf.mxu0
      %3668 = vmatprep.mubr.bf16.mxu0 0
      %3669 = vmatmul.mubr.bf16.gmra.mxu0 %v3540
      %v3670 = vpop.f32.mrf.mxu0
      %v3671 = vadd.f32 0.0, %v3670
      %v3672 = vpop.f32.mrf.mxu0
      %v3673 = vpop.f32.mrf.mxu0
      %v3674 = vadd.f32 0.0, %v3673
      %v3675 = vpop.f32.mrf.mxu0
      %3676 = vmatprep.mubr.bf16.mxu0 0
      %3677 = vmatmul.mubr.bf16.gmra.mxu0 %v3543
      %v3678 = vpop.f32.mrf.mxu0
      %v3679 = vadd.f32 0.0, %v3678
      %v3680 = vpop.f32.mrf.mxu0
      %v3681 = vpop.f32.mrf.mxu0
      %v3682 = vadd.f32 0.0, %v3681
      %v3683 = vpop.f32.mrf.mxu0
      %3684 = vmatprep.mubr.bf16.mxu0 0
      %3685 = vmatmul.mubr.bf16.gmra.mxu0 %v3546
      %v3686 = vpop.f32.mrf.mxu0
      %v3687 = vadd.f32 0.0, %v3686
      %v3688 = vpop.f32.mrf.mxu0
      %v3689 = vpop.f32.mrf.mxu0
      %v3690 = vadd.f32 0.0, %v3689
      %v3691 = vpop.f32.mrf.mxu0
      %3692 = vmatprep.mubr.bf16.mxu0 0
      %3693 = vmatmul.mubr.bf16.gmra.mxu0 %v3549
      %v3694 = vpop.f32.mrf.mxu0
      %v3695 = vadd.f32 0.0, %v3694
      %v3696 = vpop.f32.mrf.mxu0
      %v3697 = vpop.f32.mrf.mxu0
      %v3698 = vadd.f32 0.0, %v3697
      %v3699 = vpop.f32.mrf.mxu0
      %3700 = vmatprep.mubr.bf16.mxu0 0
      %3701 = vmatmul.mubr.bf16.gmra.mxu0 %v3552
      %v3702 = vpop.f32.mrf.mxu0
      %v3703 = vadd.f32 0.0, %v3702
      %v3704 = vpop.f32.mrf.mxu0
      %v3705 = vpop.f32.mrf.mxu0
      %v3706 = vadd.f32 0.0, %v3705
      %v3707 = vpop.f32.mrf.mxu0
      %3708 = vmatprep.mubr.bf16.mxu0 0
      %3709 = vmatmul.mubr.bf16.gmra.mxu0 %v3555
      %v3710 = vpop.f32.mrf.mxu0
      %v3711 = vadd.f32 0.0, %v3710
      %v3712 = vpop.f32.mrf.mxu0
      %v3713 = vpop.f32.mrf.mxu0
      %v3714 = vadd.f32 0.0, %v3713
      %v3715 = vpop.f32.mrf.mxu0
      %3716 = vmatprep.mubr.bf16.mxu0 0
      %3717 = vmatmul.mubr.bf16.gmra.mxu0 %v3558
      %v3718 = vpop.f32.mrf.mxu0
      %v3719 = vadd.f32 0.0, %v3718
      %v3720 = vpop.f32.mrf.mxu0
      %v3721 = vpop.f32.mrf.mxu0
      %v3722 = vadd.f32 0.0, %v3721
      %v3723 = vpop.f32.mrf.mxu0
      %3724 = vdwg.mxu0
      %v3725 = vpack.c.bf16 %v3602, %v3599
      %v3726 = vpack.c.bf16 %v3610, %v3607
      %v3727 = vpack.c.bf16 %v3618, %v3615
      %v3728 = vpack.c.bf16 %v3626, %v3623
      %v3729 = vpack.c.bf16 %v3634, %v3631
      %v3730 = vpack.c.bf16 %v3642, %v3639
      %v3731 = vpack.c.bf16 %v3650, %v3647
      %v3732 = vpack.c.bf16 %v3658, %v3655
      %v3733 = vpack.c.bf16 %v3666, %v3663
      %v3734 = vpack.c.bf16 %v3674, %v3671
      %v3735 = vpack.c.bf16 %v3682, %v3679
      %v3736 = vpack.c.bf16 %v3690, %v3687
      %v3737 = vpack.c.bf16 %v3698, %v3695
      %v3738 = vpack.c.bf16 %v3706, %v3703
      %v3739 = vpack.c.bf16 %v3714, %v3711
      %v3740 = vpack.c.bf16 %v3722, %v3719
      %v3757 = vunpack.c.l.b16 %v3725
      %v3758 = vunpack.c.h.b16 %v3725
      %v3759 = vunpack.c.l.b16 %v3726
      %v3760 = vunpack.c.h.b16 %v3726
      %v3761 = vunpack.c.l.b16 %v3727
      %v3762 = vunpack.c.h.b16 %v3727
      %v3763 = vunpack.c.l.b16 %v3728
      %v3764 = vunpack.c.h.b16 %v3728
      %v3765 = vunpack.c.l.b16 %v3729
      %v3766 = vunpack.c.h.b16 %v3729
      %v3767 = vunpack.c.l.b16 %v3730
      %v3768 = vunpack.c.h.b16 %v3730
      %v3769 = vunpack.c.l.b16 %v3731
      %v3770 = vunpack.c.h.b16 %v3731
      %v3771 = vunpack.c.l.b16 %v3732
      %v3772 = vunpack.c.h.b16 %v3732
      %v3773 = vunpack.c.l.b16 %v3733
      %v3774 = vunpack.c.h.b16 %v3733
      %v3775 = vunpack.c.l.b16 %v3734
      %v3776 = vunpack.c.h.b16 %v3734
      %v3777 = vunpack.c.l.b16 %v3735
      %v3778 = vunpack.c.h.b16 %v3735
      %v3779 = vunpack.c.l.b16 %v3736
      %v3780 = vunpack.c.h.b16 %v3736
      %v3781 = vunpack.c.l.b16 %v3737
      %v3782 = vunpack.c.h.b16 %v3737
      %v3783 = vunpack.c.l.b16 %v3738
      %v3784 = vunpack.c.h.b16 %v3738
      %v3785 = vunpack.c.l.b16 %v3739
      %v3786 = vunpack.c.h.b16 %v3739
      %v3787 = vunpack.c.l.b16 %v3740
      %v3788 = vunpack.c.h.b16 %v3740
      %v3789 = vpack.c.b16 %v3757, %v3757
      %v3790 = vpack.c.b16 %v3758, %v3758
      %v3791 = vpack.c.b16 %v3759, %v3759
      %v3792 = vpack.c.b16 %v3760, %v3760
      %v3793 = vpack.c.b16 %v3761, %v3761
      %v3794 = vpack.c.b16 %v3762, %v3762
      %v3795 = vpack.c.b16 %v3763, %v3763
      %v3796 = vpack.c.b16 %v3764, %v3764
      %v3797 = vpack.c.b16 %v3765, %v3765
      %v3798 = vpack.c.b16 %v3766, %v3766
      %v3799 = vpack.c.b16 %v3767, %v3767
      %v3800 = vpack.c.b16 %v3768, %v3768
      %v3801 = vpack.c.b16 %v3769, %v3769
      %v3802 = vpack.c.b16 %v3770, %v3770
      %v3803 = vpack.c.b16 %v3771, %v3771
      %v3804 = vpack.c.b16 %v3772, %v3772
      %v3805 = vpack.c.b16 %v3773, %v3773
      %v3806 = vpack.c.b16 %v3774, %v3774
      %v3807 = vpack.c.b16 %v3775, %v3775
      %v3808 = vpack.c.b16 %v3776, %v3776
      %v3809 = vpack.c.b16 %v3777, %v3777
      %v3810 = vpack.c.b16 %v3778, %v3778
      %v3811 = vpack.c.b16 %v3779, %v3779
      %v3812 = vpack.c.b16 %v3780, %v3780
      %v3813 = vpack.c.b16 %v3781, %v3781
      %v3814 = vpack.c.b16 %v3782, %v3782
      %v3815 = vpack.c.b16 %v3783, %v3783
      %v3816 = vpack.c.b16 %v3784, %v3784
      %v3817 = vpack.c.b16 %v3785, %v3785
      %v3818 = vpack.c.b16 %v3786, %v3786
      %v3819 = vpack.c.b16 %v3787, %v3787
      %v3820 = vpack.c.b16 %v3788, %v3788
      %vm3853 = vcmask 60416
      %3854 = vst.msk [vmem:[%s206] sm:$0xf] %vm3853, %v3789
      %3855 = vst.msk [vmem:[%s206 + $0x4] sm:$0xf] %vm3853, %v3790
      %3856 = vst.msk [vmem:[%s206 + $0x8] sm:$0xf] %vm3853, %v3791
      %3857 = vst.msk [vmem:[%s206 + $0xc] sm:$0xf] %vm3853, %v3792
      %3858 = vst.msk [vmem:[%s206 + $0x10] sm:$0xf] %vm3853, %v3793
      %3859 = vst.msk [vmem:[%s206 + $0x14] sm:$0xf] %vm3853, %v3794
      %3860 = vst.msk [vmem:[%s206 + $0x18] sm:$0xf] %vm3853, %v3795
      %3861 = vst.msk [vmem:[%s206 + $0x1c] sm:$0xf] %vm3853, %v3796
      %3862 = vst.msk [vmem:[%s206 + $0x20] sm:$0xf] %vm3853, %v3797
      %3863 = vst.msk [vmem:[%s206 + $0x24] sm:$0xf] %vm3853, %v3798
      %3864 = vst.msk [vmem:[%s206 + $0x28] sm:$0xf] %vm3853, %v3799
      %3865 = vst.msk [vmem:[%s206 + $0x2c] sm:$0xf] %vm3853, %v3800
      %3866 = vst.msk [vmem:[%s206 + $0x30] sm:$0xf] %vm3853, %v3801
      %3867 = vst.msk [vmem:[%s206 + $0x34] sm:$0xf] %vm3853, %v3802
      %3868 = vst.msk [vmem:[%s206 + $0x38] sm:$0xf] %vm3853, %v3803
      %3869 = vst.msk [vmem:[%s206 + $0x3c] sm:$0xf] %vm3853, %v3804
      %3870 = vst.msk [vmem:[%s206 + $0x40] sm:$0xf] %vm3853, %v3805
      %3871 = vst.msk [vmem:[%s206 + $0x44] sm:$0xf] %vm3853, %v3806
      %3872 = vst.msk [vmem:[%s206 + $0x48] sm:$0xf] %vm3853, %v3807
      %3873 = vst.msk [vmem:[%s206 + $0x4c] sm:$0xf] %vm3853, %v3808
      %3874 = vst.msk [vmem:[%s206 + $0x50] sm:$0xf] %vm3853, %v3809
      %3875 = vst.msk [vmem:[%s206 + $0x54] sm:$0xf] %vm3853, %v3810
      %3876 = vst.msk [vmem:[%s206 + $0x58] sm:$0xf] %vm3853, %v3811
      %3877 = vst.msk [vmem:[%s206 + $0x5c] sm:$0xf] %vm3853, %v3812
      %3878 = vst.msk [vmem:[%s206 + $0x60] sm:$0xf] %vm3853, %v3813
      %3879 = vst.msk [vmem:[%s206 + $0x64] sm:$0xf] %vm3853, %v3814
      %3880 = vst.msk [vmem:[%s206 + $0x68] sm:$0xf] %vm3853, %v3815
      %3881 = vst.msk [vmem:[%s206 + $0x6c] sm:$0xf] %vm3853, %v3816
      %3882 = vst.msk [vmem:[%s206 + $0x70] sm:$0xf] %vm3853, %v3817
      %3883 = vst.msk [vmem:[%s206 + $0x74] sm:$0xf] %vm3853, %v3818
      %3884 = vst.msk [vmem:[%s206 + $0x78] sm:$0xf] %vm3853, %v3819
      %3885 = vst.msk [vmem:[%s206 + $0x7c] sm:$0xf] %vm3853, %v3820
      %vm3886 = vcmask 64512
      %v3887 = vsel %vm3886, %v3599, 0.0
      %v3888 = vsel %vm3886, %v3602, 0.0
      %v3889 = vadd.f32 %v3887, %v3888
      %v3890 = vsel %vm3886, %v3607, 0.0
      %v3891 = vadd.f32 %v3889, %v3890
      %v3892 = vsel %vm3886, %v3610, 0.0
      %v3893 = vadd.f32 %v3891, %v3892
      %v3894 = vsel %vm3886, %v3615, 0.0
      %v3895 = vadd.f32 %v3893, %v3894
      %v3896 = vsel %vm3886, %v3618, 0.0
      %v3897 = vadd.f32 %v3895, %v3896
      %v3898 = vsel %vm3886, %v3623, 0.0
      %v3899 = vadd.f32 %v3897, %v3898
      %v3900 = vsel %vm3886, %v3626, 0.0
      %v3901 = vadd.f32 %v3899, %v3900
      %v3902 = vsel %vm3886, %v3631, 0.0
      %v3903 = vadd.f32 %v3901, %v3902
      %v3904 = vsel %vm3886, %v3634, 0.0
      %v3905 = vadd.f32 %v3903, %v3904
      %v3906 = vsel %vm3886, %v3639, 0.0
      %v3907 = vadd.f32 %v3905, %v3906
      %v3908 = vsel %vm3886, %v3642, 0.0
      %v3909 = vadd.f32 %v3907, %v3908
      %v3910 = vsel %vm3886, %v3647, 0.0
      %v3911 = vadd.f32 %v3909, %v3910
      %v3912 = vsel %vm3886, %v3650, 0.0
      %v3913 = vadd.f32 %v3911, %v3912
      %v3914 = vsel %vm3886, %v3655, 0.0
      %v3915 = vadd.f32 %v3913, %v3914
      %v3916 = vsel %vm3886, %v3658, 0.0
      %v3917 = vadd.f32 %v3915, %v3916
      %v3918 = vsel %vm3886, %v3663, 0.0
      %v3919 = vadd.f32 %v3917, %v3918
      %v3920 = vsel %vm3886, %v3666, 0.0
      %v3921 = vadd.f32 %v3919, %v3920
      %v3922 = vsel %vm3886, %v3671, 0.0
      %v3923 = vadd.f32 %v3921, %v3922
      %v3924 = vsel %vm3886, %v3674, 0.0
      %v3925 = vadd.f32 %v3923, %v3924
      %v3926 = vsel %vm3886, %v3679, 0.0
      %v3927 = vadd.f32 %v3925, %v3926
      %v3928 = vsel %vm3886, %v3682, 0.0
      %v3929 = vadd.f32 %v3927, %v3928
      %v3930 = vsel %vm3886, %v3687, 0.0
      %v3931 = vadd.f32 %v3929, %v3930
      %v3932 = vsel %vm3886, %v3690, 0.0
      %v3933 = vadd.f32 %v3931, %v3932
      %v3934 = vsel %vm3886, %v3695, 0.0
      %v3935 = vadd.f32 %v3933, %v3934
      %v3936 = vsel %vm3886, %v3698, 0.0
      %v3937 = vadd.f32 %v3935, %v3936
      %v3938 = vsel %vm3886, %v3703, 0.0
      %v3939 = vadd.f32 %v3937, %v3938
      %v3940 = vsel %vm3886, %v3706, 0.0
      %v3941 = vadd.f32 %v3939, %v3940
      %v3942 = vsel %vm3886, %v3711, 0.0
      %v3943 = vadd.f32 %v3941, %v3942
      %v3944 = vsel %vm3886, %v3714, 0.0
      %v3945 = vadd.f32 %v3943, %v3944
      %v3946 = vsel %vm3886, %v3719, 0.0
      %v3947 = vadd.f32 %v3945, %v3946
      %v3948 = vsel %vm3886, %v3722, 0.0
      %v3949 = vadd.f32 %v3947, %v3948
      %v3950 = vrot.slane %v3949, 4
      %v3951 = vadd.f32 %v3949, %v3950
      %v3952 = vrot.slane %v3951, 2
      %v3953 = vadd.f32 %v3951, %v3952
      %v3954 = vrot.slane %v3953, 1
      %v3955 = vadd.f32 %v3953, %v3954
      %v3956 = vmul.f32 %v3599, %v3599
      %v3957 = vmul.f32 %v3602, %v3602
      %v3958 = vmul.f32 %v3607, %v3607
      %v3959 = vmul.f32 %v3610, %v3610
      %v3960 = vmul.f32 %v3615, %v3615
      %v3961 = vmul.f32 %v3618, %v3618
      %v3962 = vmul.f32 %v3623, %v3623
      %v3963 = vmul.f32 %v3626, %v3626
      %v3964 = vmul.f32 %v3631, %v3631
      %v3965 = vmul.f32 %v3634, %v3634
      %v3966 = vmul.f32 %v3639, %v3639
      %v3967 = vmul.f32 %v3642, %v3642
      %v3968 = vmul.f32 %v3647, %v3647
      %v3969 = vmul.f32 %v3650, %v3650
      %v3970 = vmul.f32 %v3655, %v3655
      %v3971 = vmul.f32 %v3658, %v3658
      %v3972 = vmul.f32 %v3663, %v3663
      %v3973 = vmul.f32 %v3666, %v3666
      %v3974 = vmul.f32 %v3671, %v3671
      %v3975 = vmul.f32 %v3674, %v3674
      %v3976 = vmul.f32 %v3679, %v3679
      %v3977 = vmul.f32 %v3682, %v3682
      %v3978 = vmul.f32 %v3687, %v3687
      %v3979 = vmul.f32 %v3690, %v3690
      %v3980 = vmul.f32 %v3695, %v3695
      %v3981 = vmul.f32 %v3698, %v3698
      %v3982 = vmul.f32 %v3703, %v3703
      %v3983 = vmul.f32 %v3706, %v3706
      %v3984 = vmul.f32 %v3711, %v3711
      %v3985 = vmul.f32 %v3714, %v3714
      %v3986 = vmul.f32 %v3719, %v3719
      %v3987 = vmul.f32 %v3722, %v3722
      %v3988 = vsel %vm3886, %v3956, 0.0
      %v3989 = vsel %vm3886, %v3957, 0.0
      %v3990 = vadd.f32 %v3988, %v3989
      %v3991 = vsel %vm3886, %v3958, 0.0
      %v3992 = vadd.f32 %v3990, %v3991
      %v3993 = vsel %vm3886, %v3959, 0.0
      %v3994 = vadd.f32 %v3992, %v3993
      %v3995 = vsel %vm3886, %v3960, 0.0
      %v3996 = vadd.f32 %v3994, %v3995
      %v3997 = vsel %vm3886, %v3961, 0.0
      %v3998 = vadd.f32 %v3996, %v3997
      %v3999 = vsel %vm3886, %v3962, 0.0
      %v4000 = vadd.f32 %v3998, %v3999
      %v4001 = vsel %vm3886, %v3963, 0.0
      %v4002 = vadd.f32 %v4000, %v4001
      %v4003 = vsel %vm3886, %v3964, 0.0
      %v4004 = vadd.f32 %v4002, %v4003
      %v4005 = vsel %vm3886, %v3965, 0.0
      %v4006 = vadd.f32 %v4004, %v4005
      %v4007 = vsel %vm3886, %v3966, 0.0
      %v4008 = vadd.f32 %v4006, %v4007
      %v4009 = vsel %vm3886, %v3967, 0.0
      %v4010 = vadd.f32 %v4008, %v4009
      %v4011 = vsel %vm3886, %v3968, 0.0
      %v4012 = vadd.f32 %v4010, %v4011
      %v4013 = vsel %vm3886, %v3969, 0.0
      %v4014 = vadd.f32 %v4012, %v4013
      %v4015 = vsel %vm3886, %v3970, 0.0
      %v4016 = vadd.f32 %v4014, %v4015
      %v4017 = vsel %vm3886, %v3971, 0.0
      %v4018 = vadd.f32 %v4016, %v4017
      %v4019 = vsel %vm3886, %v3972, 0.0
      %v4020 = vadd.f32 %v4018, %v4019
      %v4021 = vsel %vm3886, %v3973, 0.0
      %v4022 = vadd.f32 %v4020, %v4021
      %v4023 = vsel %vm3886, %v3974, 0.0
      %v4024 = vadd.f32 %v4022, %v4023
      %v4025 = vsel %vm3886, %v3975, 0.0
      %v4026 = vadd.f32 %v4024, %v4025
      %v4027 = vsel %vm3886, %v3976, 0.0
      %v4028 = vadd.f32 %v4026, %v4027
      %v4029 = vsel %vm3886, %v3977, 0.0
      %v4030 = vadd.f32 %v4028, %v4029
      %v4031 = vsel %vm3886, %v3978, 0.0
      %v4032 = vadd.f32 %v4030, %v4031
      %v4033 = vsel %vm3886, %v3979, 0.0
      %v4034 = vadd.f32 %v4032, %v4033
      %v4035 = vsel %vm3886, %v3980, 0.0
      %v4036 = vadd.f32 %v4034, %v4035
      %v4037 = vsel %vm3886, %v3981, 0.0
      %v4038 = vadd.f32 %v4036, %v4037
      %v4039 = vsel %vm3886, %v3982, 0.0
      %v4040 = vadd.f32 %v4038, %v4039
      %v4041 = vsel %vm3886, %v3983, 0.0
      %v4042 = vadd.f32 %v4040, %v4041
      %v4043 = vsel %vm3886, %v3984, 0.0
      %v4044 = vadd.f32 %v4042, %v4043
      %v4045 = vsel %vm3886, %v3985, 0.0
      %v4046 = vadd.f32 %v4044, %v4045
      %v4047 = vsel %vm3886, %v3986, 0.0
      %v4048 = vadd.f32 %v4046, %v4047
      %v4049 = vsel %vm3886, %v3987, 0.0
      %v4050 = vadd.f32 %v4048, %v4049
      %v4051 = vrot.slane %v4050, 4
      %v4052 = vadd.f32 %v4050, %v4051
      %v4053 = vrot.slane %v4052, 2
      %v4054 = vadd.f32 %v4052, %v4053
      %v4055 = vrot.slane %v4054, 1
      %v4056 = vadd.f32 %v4054, %v4055
      %vm4057 = vcmask 1040384
      %v4058 = vsel %vm4057, %v3955, %v4056
      %vm4059 = vcmask 58368
      %4060 = vst.msk [vmem:[%s214] sm:$0x3] %vm4059, %v4058
      %s4061 = smul.u32 16, %s20
      %p4062 = scmp.lt.s32.totalorder %s19, 1
      %s4063 = scalar_select %p4062, %s19, 1
      %p4064 = scmp.lt.s32.totalorder %s4061, 15
      %s4065 = scalar_select %p4064, %s4061, 15
      %s4066 = smul.addr %s4065, 2
      %s4067 = smul.addr %s4063, 32
      %s4068 = sadd.s32 %s4066, %s4067
      %s4069 = smul.addr %s4068, 4
      %s4070 = scalar_lea.vmem %s2, %s4069
      %p4071 = scmp.lt.s32.totalorder %s19, 1
      %s4072 = scalar_select %p4071, %s19, 1
      %p4073 = scmp.lt.s32.totalorder %s20, 0
      %s4074 = scalar_select %p4073, %s20, 0
      %s4075 = sadd.s32 %s4074, %s4072
      %s4076 = smul.addr %s4075, 2
      %s4077 = scalar_lea.vmem %s3, %s4076
      // Predicated region
      $region29: #{conv_block_2d.2} parent=27 // pred_check
        %p4078 = pneg %p94
      $region30: #{conv_block_2d.2} parent=27 // pred_check_branch
        %4080 = sbr.rel (%p4078) target = $region32
      $region31: #{conv_block_2d.2} parent=27 // pred_region
        %s4081 = smul.u32 16, %s20
      $region32: #{conv_block_2d.2} parent=27 // pred_fallthru
        _
      // Predicated region
      $region33: #{conv_block_2d.2} parent=27 // pred_check
        %p4082 = pneg %p122
      $region34: #{conv_block_2d.2} parent=27 // pred_check_branch
        %4084 = sbr.rel (%p4082) target = $region36
      $region35: #{conv_block_2d.2} parent=27 // pred_region
        _
      $region36: #{conv_block_2d.2} parent=27 // pred_fallthru
        _
    $region28: #{conv_block_2d.2} parent=5 // pred_fallthru
      _
    %p4085 = scmp.le.s32.totalorder 2, %s10
    // Predicated region
    $region37: #{conv_block_2d.2} parent=5 // pred_check
      %p4086 = pneg %p4085
    $region38: #{conv_block_2d.2} parent=5 // pred_check_branch
      %4088 = sbr.rel (%p4086) target = $region40
    $region39: #{conv_block_2d.2} parent=5 // pred_region
      %s4089 = ssub.s32 %s10, 2
      // Predicated region
      $region41: #{conv_block_2d.2} parent=39 // pred_check
        %p4090 = pneg %p100
      $region42: #{conv_block_2d.2} parent=39 // pred_check_branch
        %4092 = sbr.rel (%p4090) target = $region44
      $region43: #{conv_block_2d.2} parent=39 // pred_region
        %s4093 = smul.u32 16, %s22
        %p4094 = scmp.lt.s32.totalorder %s21, 1
        %s4095 = scalar_select %p4094, %s21, 1
        %p4096 = scmp.lt.s32.totalorder %s4093, 15
        %s4097 = scalar_select %p4096, %s4093, 15
        %s4098 = smul.addr %s4097, 2
        %s4099 = smul.addr %s4095, 32
        %s4100 = sadd.s32 %s4098, %s4099
        %s4101 = smul.addr %s4100, 4
        %s4102 = scalar_lea.vmem %s2, %s4101
      $region44: #{conv_block_2d.2} parent=39 // pred_fallthru
        _
      // Predicated region
      $region45: #{conv_block_2d.2} parent=39 // pred_check
        %p4103 = pneg %p128
      $region46: #{conv_block_2d.2} parent=39 // pred_check_branch
        %4105 = sbr.rel (%p4103) target = $region48
      $region47: #{conv_block_2d.2} parent=39 // pred_region
        %p4106 = scmp.lt.s32.totalorder %s21, 1
        %s4107 = scalar_select %p4106, %s21, 1
        %p4108 = scmp.lt.s32.totalorder %s22, 0
        %s4109 = scalar_select %p4108, %s22, 0
        %s4110 = sadd.s32 %s4109, %s4107
        %s4111 = smul.addr %s4110, 2
        %s4112 = scalar_lea.vmem %s3, %s4111
      $region48: #{conv_block_2d.2} parent=39 // pred_fallthru
        _
    $region40: #{conv_block_2d.2} parent=5 // pred_fallthru
      _
  $region6: #{conv_block_2d.2} parent=0 // loop_footer
    %s14 = sadd.s32 1, %s10
  $region7: #{conv_block_2d.2} parent=0 // loop_footer_branch
    %9 = sbr.rel target = $region3
  $region8: #{conv_block_2d.2} parent=0 // loop_exit
    _

</llo_original>
